<compile_context>
chip_gen: v7x
topology: tpu7x:2x2x1
jax: 0.10.0
libtpu: 0.0.40
codegen_flags: <defaults>
</compile_context>

<pallas_src>
import numpy as np

import jax
import jax.numpy as jnp
from jax import lax
from jax.experimental import pallas as pl
from jax.experimental.pallas import tpu as pltpu

_CompilerParams = getattr(pltpu, "CompilerParams", None)
if _CompilerParams is None:  # compatibility with older jax releases
    _CompilerParams = getattr(pltpu, "TPUCompilerParams")


# ----------------------------------------------------------------------------
# Fused LeNet kernel: one image per grid step, everything in VMEM/vregs.
#
# Activation layouts (per image):
#   conv1 out  y1 : (28, 168)  lane = 6*w  + co   (co in 0..5,  w in 0..27)
#   pool1 out  p1 : (14,  84)  lane = 6*w  + ci
#   conv2 out  y2 : (10, 160)  lane = 16*w + co   (co in 0..15, w in 0..9)
#   pool2 out  p2 : ( 5,  80)  lane = 16*w + co
#   fc hidden     : (1, 128)   (120 / 84 valid lanes, rest zero-padded)
#   logits        : (1, 128)   (10 valid lanes)
# ----------------------------------------------------------------------------
def _lenet_kernel(x_ref,
                  w1_ref, b1_ref, srE1_ref, srO1_ref, scE1_ref, scO1_ref,
                  w2_ref, b2_ref, srE2_ref, srO2_ref, scE2_ref, scO2_ref,
                  wf1_ref, bf1_ref, wf2_ref, bf2_ref, wf3_ref, bf3_ref,
                  o_ref):
    def dot(a, b):
        return jnp.dot(a, b, preferred_element_type=jnp.float32)

    xp = x_ref[0]                                   # (32, 32) zero-padded image

    # ---- conv1 (5 row-shifted banded matmuls) + bias + ReLU -> (28, 168)
    acc1 = dot(xp[0:28, :], w1_ref[0])
    for i in range(1, 5):
        acc1 = acc1 + dot(xp[i:i + 28, :], w1_ref[i])
    y1 = jnp.maximum(acc1 + b1_ref[...], 0.0)

    # ---- 2x2 max-pool -> (14, 84): pick even/odd rows, max; even/odd lane
    #      pairs via 0/1 selection matmuls, max.
    rmax1 = jnp.maximum(dot(srE1_ref[...], y1), dot(srO1_ref[...], y1))
    p1 = jnp.maximum(dot(rmax1, scE1_ref[...]), dot(rmax1, scO1_ref[...]))

    # ---- conv2 + bias + ReLU -> (10, 160)
    acc2 = dot(p1[0:10, :], w2_ref[0])
    for i in range(1, 5):
        acc2 = acc2 + dot(p1[i:i + 10, :], w2_ref[i])
    y2 = jnp.maximum(acc2 + b2_ref[...], 0.0)

    # ---- 2x2 max-pool -> (5, 80)
    rmax2 = jnp.maximum(dot(srE2_ref[...], y2), dot(srO2_ref[...], y2))
    p2 = jnp.maximum(dot(rmax2, scE2_ref[...]), dot(rmax2, scO2_ref[...]))

    # ---- fc1: torch's (C,H,W) flatten order is baked into wf1's row packing,
    #      so the "flatten" is just a sum of per-row matmuls. -> (1, 128)
    accf = dot(p2[0:1, :], wf1_ref[0])
    for h in range(1, 5):
        accf = accf + dot(p2[h:h + 1, :], wf1_ref[h])
    h1 = jnp.maximum(accf + bf1_ref[...], 0.0)

    # ---- fc2 + ReLU, fc3 (all lane-dense 128-wide)
    h2 = jnp.maximum(dot(h1, wf2_ref[...]) + bf2_ref[...], 0.0)
    o_ref[0] = (dot(h2, wf3_ref[...]) + bf3_ref[...]).astype(o_ref.dtype)


# ----------------------------------------------------------------------------
# One-time host-side (numpy) repacking of torch-layout weights into the
# kernel's banded / permuted / lane-padded operand matrices.  Zero runtime cost.
# ----------------------------------------------------------------------------
def pack_params(p):
    w1 = np.asarray(p["w1"], np.float32)    # (6, 1, 5, 5)  OIHW
    b1 = np.asarray(p["b1"], np.float32)
    w2 = np.asarray(p["w2"], np.float32)    # (16, 6, 5, 5)
    b2 = np.asarray(p["b2"], np.float32)
    wf1 = np.asarray(p["wf1"], np.float32)  # (120, 400)
    bf1 = np.asarray(p["bf1"], np.float32)
    wf2 = np.asarray(p["wf2"], np.float32)  # (84, 120)
    bf2 = np.asarray(p["bf2"], np.float32)
    wf3 = np.asarray(p["wf3"], np.float32)  # (10, 84)
    bf3 = np.asarray(p["bf3"], np.float32)

    # conv1: y1[h, 6w+co] = sum_i xpad[h+i, :] @ W1[i]
    W1 = np.zeros((5, 32, 28 * 6), np.float32)
    for i in range(5):
        for j in range(5):
            for w in range(28):
                W1[i, w + j, 6 * w:6 * w + 6] = w1[:, 0, i, j]
    B1 = np.tile(b1, 28)[None, :]                               # (1, 168)

    # conv2: p1 lanes = 6*w + ci ; y2 lanes = 16*w + co
    W2 = np.zeros((5, 14 * 6, 10 * 16), np.float32)
    for i in range(5):
        for j in range(5):
            for w in range(10):
                for ci in range(6):
                    W2[i, 6 * (w + j) + ci, 16 * w:16 * w + 16] = w2[:, ci, i, j]
    B2 = np.tile(b2, 10)[None, :]                               # (1, 160)

    # 2x2 max-pool selection matrices (pick even/odd rows, even/odd lane pairs)
    def row_pick(n_out, n_in, off):
        m = np.zeros((n_out, n_in), np.float32)
        m[np.arange(n_out), 2 * np.arange(n_out) + off] = 1.0
        return m

    def col_pick(n_w_out, c, off):
        m = np.zeros((2 * c * n_w_out, c * n_w_out), np.float32)
        for w in range(n_w_out):
            for ch in range(c):
                m[2 * c * w + off * c + ch, c * w + ch] = 1.0
        return m

    # fc1: lane (16w+co) of pooled row h == torch flat feature 25*co + 5*h + w.
    # Pad 120 -> 128 output lanes so every FC matmul / store is lane-dense.
    Wf1 = np.zeros((5, 80, 128), np.float32)
    for h in range(5):
        for w in range(5):
            for co in range(16):
                Wf1[h, 16 * w + co, :120] = wf1[:, 25 * co + 5 * h + w]
    Bf1 = np.zeros((1, 128), np.float32); Bf1[0, :120] = bf1
    Wf2 = np.zeros((128, 128), np.float32); Wf2[:120, :84] = wf2.T
    Bf2 = np.zeros((1, 128), np.float32); Bf2[0, :84] = bf2
    Wf3 = np.zeros((128, 128), np.float32); Wf3[:84, :10] = wf3.T
    Bf3 = np.zeros((1, 128), np.float32); Bf3[0, :10] = bf3

    packed = dict(
        W1=W1, B1=B1,
        SrE1=row_pick(14, 28, 0), SrO1=row_pick(14, 28, 1),
        ScE1=col_pick(14, 6, 0), ScO1=col_pick(14, 6, 1),
        W2=W2, B2=B2,
        SrE2=row_pick(5, 10, 0), SrO2=row_pick(5, 10, 1),
        ScE2=col_pick(5, 16, 0), ScO2=col_pick(5, 16, 1),
        Wf1=Wf1, Bf1=Bf1, Wf2=Wf2, Bf2=Bf2, Wf3=Wf3, Bf3=Bf3,
    )
    return {k: jnp.asarray(v) for k, v in packed.items()}


_ARG_ORDER = ("W1", "B1", "SrE1", "SrO1", "ScE1", "ScO1",
              "W2", "B2", "SrE2", "SrO2", "ScE2", "ScO2",
              "Wf1", "Bf1", "Wf2", "Bf2", "Wf3", "Bf3")


# ----------------------------------------------------------------------------
# Forward: (B, 1, 28, 28) NCHW -> (B, 10) logits, one pallas_call total.
# ----------------------------------------------------------------------------
def lenet_pallas(x, packed):
    B = x.shape[0]
    xpad = jnp.pad(x[:, 0], ((0, 0), (2, 2), (2, 2)))           # (B, 32, 32)

    def _const_spec(a):
        nd = a.ndim
        return pl.BlockSpec(a.shape, lambda b: (0,) * nd)        # fetched once

    consts = [packed[k] for k in _ARG_ORDER]
    out = pl.pallas_call(
        _lenet_kernel,
        out_shape=jax.ShapeDtypeStruct((B, 1, 128), jnp.float32),
        grid=(B,),
        in_specs=[pl.BlockSpec((1, 32, 32), lambda b: (b, 0, 0))]
                 + [_const_spec(a) for a in consts],
        out_specs=pl.BlockSpec((1, 1, 128), lambda b: (b, 0, 0)),
        compiler_params=_CompilerParams(dimension_semantics=("parallel",)),
    )(xpad, *consts)
    return out[:, 0, :10]


# ----------------------------------------------------------------------------
# Pure-JAX reference (ground truth, f32 HIGHEST precision)
# ----------------------------------------------------------------------------
def lenet_ref(x, p):
    dn = ("NCHW", "OIHW", "NCHW")
    hi = lax.Precision.HIGHEST

    y = lax.conv_general_dilated(x, p["w1"], (1, 1), [(2, 2), (2, 2)],
                                 dimension_numbers=dn, precision=hi)
    y = jnp.maximum(y + p["b1"][None, :, None, None], 0.0)
    y = lax.reduce_window(y, -jnp.inf, lax.max, (1, 1, 2, 2), (1, 1, 2, 2), "VALID")

    y = lax.conv_general_dilated(y, p["w2"], (1, 1), "VALID",
                                 dimension_numbers=dn, precision=hi)
    y = jnp.maximum(y + p["b2"][None, :, None, None], 0.0)
    y = lax.reduce_window(y, -jnp.inf, lax.max, (1, 1, 2, 2), (1, 1, 2, 2), "VALID")

    y = y.reshape(y.shape[0], -1)
    y = jnp.maximum(jnp.dot(y, p["wf1"].T, precision=hi) + p["bf1"], 0.0)
    y = jnp.maximum(jnp.dot(y, p["wf2"].T, precision=hi) + p["bf2"], 0.0)
    y = jnp.dot(y, p["wf3"].T, precision=hi) + p["bf3"]
    return y


# ----------------------------------------------------------------------------
# Deterministic parameter init (shapes from LeNet.__init__)
# ----------------------------------------------------------------------------
def init_params(key):
    ks = jax.random.split(key, 10)
    s = 0.1
    return {
        "w1": s * jax.random.normal(ks[0], (6, 1, 5, 5), jnp.float32),
        "b1": s * jax.random.normal(ks[1], (6,), jnp.float32),
        "w2": s * jax.random.normal(ks[2], (16, 6, 5, 5), jnp.float32),
        "b2": s * jax.random.normal(ks[3], (16,), jnp.float32),
        "wf1": s * jax.random.normal(ks[4], (120, 400), jnp.float32),
        "bf1": s * jax.random.normal(ks[5], (120,), jnp.float32),
        "wf2": s * jax.random.normal(ks[6], (84, 120), jnp.float32),
        "bf2": s * jax.random.normal(ks[7], (84,), jnp.float32),
        "wf3": s * jax.random.normal(ks[8], (10, 84), jnp.float32),
        "bf3": s * jax.random.normal(ks[9], (10,), jnp.float32),
    }


if __name__ == "__main__":
    key = jax.random.PRNGKey(0)
    k_x, k_p = jax.random.split(key)
    # LeNet geometry requires 28x28 single-channel input (16*5*5 = 400 flatten).
    x = jax.random.normal(k_x, (2, 1, 28, 28), jnp.float32)
    params = init_params(k_p)
    packed = pack_params(params)          # one-time host-side weight repack

    out = jax.block_until_ready(jax.jit(lenet_pallas)(x, packed))
    ref = jax.block_until_ready(jax.jit(lenet_ref)(x, params))

    assert out.shape == (2, 10), out.shape
    assert bool(jnp.all(jnp.isfinite(out)))
    # Kernel uses default (single-pass) MXU precision vs. the HIGHEST-precision
    # f32 reference, so allow bf16-class tolerance.
    max_diff = float(jnp.max(jnp.abs(out - ref)))
    assert bool(jnp.allclose(out, ref, atol=3e-2, rtol=3e-2)), (
        f"max abs diff = {max_diff}")
    print("KERNEL_OK")
</pallas_src>

<mosaic_0001>
module attributes {stable_mosaic.version = 11 : i64} {
  func.func @_lenet_kernel(%arg0: i32, %arg1: memref<1x32x32xf32, #tpu.memory_space<vmem>>, %arg2: memref<5x32x168xf32, #tpu.memory_space<vmem>>, %arg3: memref<1x168xf32, #tpu.memory_space<vmem>>, %arg4: memref<14x28xf32, #tpu.memory_space<vmem>>, %arg5: memref<14x28xf32, #tpu.memory_space<vmem>>, %arg6: memref<168x84xf32, #tpu.memory_space<vmem>>, %arg7: memref<168x84xf32, #tpu.memory_space<vmem>>, %arg8: memref<5x84x160xf32, #tpu.memory_space<vmem>>, %arg9: memref<1x160xf32, #tpu.memory_space<vmem>>, %arg10: memref<5x10xf32, #tpu.memory_space<vmem>>, %arg11: memref<5x10xf32, #tpu.memory_space<vmem>>, %arg12: memref<160x80xf32, #tpu.memory_space<vmem>>, %arg13: memref<160x80xf32, #tpu.memory_space<vmem>>, %arg14: memref<5x80x128xf32, #tpu.memory_space<vmem>>, %arg15: memref<1x128xf32, #tpu.memory_space<vmem>>, %arg16: memref<128x128xf32, #tpu.memory_space<vmem>>, %arg17: memref<1x128xf32, #tpu.memory_space<vmem>>, %arg18: memref<128x128xf32, #tpu.memory_space<vmem>>, %arg19: memref<1x128xf32, #tpu.memory_space<vmem>>, %arg20: memref<1x1x128xf32, #tpu.memory_space<vmem>>) attributes {dimension_semantics = [#tpu.dimension_semantics<parallel>], iteration_bounds = array<i64: 2>, scalar_prefetch = 0 : i64, scratch_operands = 0 : i64, tpu.core_type = #tpu.core_type<tc>, window_params = [{transform_indices = @transform_0, window_bounds = array<i64: 1, 32, 32>}, {pipeline_mode = #tpu.pipeline_mode<synchronous>, transform_indices = @transform_1, window_bounds = array<i64: 5, 32, 168>}, {pipeline_mode = #tpu.pipeline_mode<synchronous>, transform_indices = @transform_2, window_bounds = array<i64: 1, 168>}, {pipeline_mode = #tpu.pipeline_mode<synchronous>, transform_indices = @transform_3, window_bounds = array<i64: 14, 28>}, {pipeline_mode = #tpu.pipeline_mode<synchronous>, transform_indices = @transform_4, window_bounds = array<i64: 14, 28>}, {pipeline_mode = #tpu.pipeline_mode<synchronous>, transform_indices = @transform_5, window_bounds = array<i64: 168, 84>}, {pipeline_mode = #tpu.pipeline_mode<synchronous>, transform_indices = @transform_6, window_bounds = array<i64: 168, 84>}, {pipeline_mode = #tpu.pipeline_mode<synchronous>, transform_indices = @transform_7, window_bounds = array<i64: 5, 84, 160>}, {pipeline_mode = #tpu.pipeline_mode<synchronous>, transform_indices = @transform_8, window_bounds = array<i64: 1, 160>}, {pipeline_mode = #tpu.pipeline_mode<synchronous>, transform_indices = @transform_9, window_bounds = array<i64: 5, 10>}, {pipeline_mode = #tpu.pipeline_mode<synchronous>, transform_indices = @transform_10, window_bounds = array<i64: 5, 10>}, {pipeline_mode = #tpu.pipeline_mode<synchronous>, transform_indices = @transform_11, window_bounds = array<i64: 160, 80>}, {pipeline_mode = #tpu.pipeline_mode<synchronous>, transform_indices = @transform_12, window_bounds = array<i64: 160, 80>}, {pipeline_mode = #tpu.pipeline_mode<synchronous>, transform_indices = @transform_13, window_bounds = array<i64: 5, 80, 128>}, {pipeline_mode = #tpu.pipeline_mode<synchronous>, transform_indices = @transform_14, window_bounds = array<i64: 1, 128>}, {pipeline_mode = #tpu.pipeline_mode<synchronous>, transform_indices = @transform_15, window_bounds = array<i64: 128, 128>}, {pipeline_mode = #tpu.pipeline_mode<synchronous>, transform_indices = @transform_16, window_bounds = array<i64: 1, 128>}, {pipeline_mode = #tpu.pipeline_mode<synchronous>, transform_indices = @transform_17, window_bounds = array<i64: 128, 128>}, {pipeline_mode = #tpu.pipeline_mode<synchronous>, transform_indices = @transform_18, window_bounds = array<i64: 1, 128>}, {transform_indices = @transform_19, window_bounds = array<i64: 1, 1, 128>}]} {
    %c0 = arith.constant 0 : index
    %c0_0 = arith.constant 0 : index
    %c0_1 = arith.constant 0 : index
    %0 = vector.load %arg1[%c0, %c0_0, %c0_1] : memref<1x32x32xf32, #tpu.memory_space<vmem>>, vector<1x32x32xf32>
    %1 = vector.shape_cast %0 : vector<1x32x32xf32> to vector<32x32xf32>
    %2 = vector.extract_strided_slice %1 {offsets = [0, 0], sizes = [28, 32], strides = [1, 1]} : vector<32x32xf32> to vector<28x32xf32>
    %c0_2 = arith.constant 0 : index
    %c0_3 = arith.constant 0 : index
    %c0_4 = arith.constant 0 : index
    %3 = vector.load %arg2[%c0_2, %c0_3, %c0_4] : memref<5x32x168xf32, #tpu.memory_space<vmem>>, vector<1x32x168xf32>
    %4 = vector.shape_cast %3 : vector<1x32x168xf32> to vector<32x168xf32>
    %cst = arith.constant dense<0.000000e+00> : vector<28x168xf32>
    %5 = tpu.matmul %2, %4, %cst {dimension_numbers = #tpu.dot_dimension_numbers<[1], [0], [0], [1], [0, 0, 1, 1], [], []>} : vector<28x32xf32>, vector<32x168xf32>, vector<28x168xf32> -> vector<28x168xf32>
    %6 = vector.extract_strided_slice %1 {offsets = [1, 0], sizes = [28, 32], strides = [1, 1]} : vector<32x32xf32> to vector<28x32xf32>
    %c1 = arith.constant 1 : index
    %c0_5 = arith.constant 0 : index
    %c0_6 = arith.constant 0 : index
    %7 = vector.load %arg2[%c1, %c0_5, %c0_6] : memref<5x32x168xf32, #tpu.memory_space<vmem>>, vector<1x32x168xf32>
    %8 = vector.shape_cast %7 : vector<1x32x168xf32> to vector<32x168xf32>
    %cst_7 = arith.constant dense<0.000000e+00> : vector<28x168xf32>
    %9 = tpu.matmul %6, %8, %cst_7 {dimension_numbers = #tpu.dot_dimension_numbers<[1], [0], [0], [1], [0, 0, 1, 1], [], []>} : vector<28x32xf32>, vector<32x168xf32>, vector<28x168xf32> -> vector<28x168xf32>
    %10 = arith.addf %5, %9 : vector<28x168xf32>
    %11 = vector.extract_strided_slice %1 {offsets = [2, 0], sizes = [28, 32], strides = [1, 1]} : vector<32x32xf32> to vector<28x32xf32>
    %c2 = arith.constant 2 : index
    %c0_8 = arith.constant 0 : index
    %c0_9 = arith.constant 0 : index
    %12 = vector.load %arg2[%c2, %c0_8, %c0_9] : memref<5x32x168xf32, #tpu.memory_space<vmem>>, vector<1x32x168xf32>
    %13 = vector.shape_cast %12 : vector<1x32x168xf32> to vector<32x168xf32>
    %cst_10 = arith.constant dense<0.000000e+00> : vector<28x168xf32>
    %14 = tpu.matmul %11, %13, %cst_10 {dimension_numbers = #tpu.dot_dimension_numbers<[1], [0], [0], [1], [0, 0, 1, 1], [], []>} : vector<28x32xf32>, vector<32x168xf32>, vector<28x168xf32> -> vector<28x168xf32>
    %15 = arith.addf %10, %14 : vector<28x168xf32>
    %16 = vector.extract_strided_slice %1 {offsets = [3, 0], sizes = [28, 32], strides = [1, 1]} : vector<32x32xf32> to vector<28x32xf32>
    %c3 = arith.constant 3 : index
    %c0_11 = arith.constant 0 : index
    %c0_12 = arith.constant 0 : index
    %17 = vector.load %arg2[%c3, %c0_11, %c0_12] : memref<5x32x168xf32, #tpu.memory_space<vmem>>, vector<1x32x168xf32>
    %18 = vector.shape_cast %17 : vector<1x32x168xf32> to vector<32x168xf32>
    %cst_13 = arith.constant dense<0.000000e+00> : vector<28x168xf32>
    %19 = tpu.matmul %16, %18, %cst_13 {dimension_numbers = #tpu.dot_dimension_numbers<[1], [0], [0], [1], [0, 0, 1, 1], [], []>} : vector<28x32xf32>, vector<32x168xf32>, vector<28x168xf32> -> vector<28x168xf32>
    %20 = arith.addf %15, %19 : vector<28x168xf32>
    %21 = vector.extract_strided_slice %1 {offsets = [4, 0], sizes = [28, 32], strides = [1, 1]} : vector<32x32xf32> to vector<28x32xf32>
    %c4 = arith.constant 4 : index
    %c0_14 = arith.constant 0 : index
    %c0_15 = arith.constant 0 : index
    %22 = vector.load %arg2[%c4, %c0_14, %c0_15] : memref<5x32x168xf32, #tpu.memory_space<vmem>>, vector<1x32x168xf32>
    %23 = vector.shape_cast %22 : vector<1x32x168xf32> to vector<32x168xf32>
    %cst_16 = arith.constant dense<0.000000e+00> : vector<28x168xf32>
    %24 = tpu.matmul %21, %23, %cst_16 {dimension_numbers = #tpu.dot_dimension_numbers<[1], [0], [0], [1], [0, 0, 1, 1], [], []>} : vector<28x32xf32>, vector<32x168xf32>, vector<28x168xf32> -> vector<28x168xf32>
    %25 = arith.addf %20, %24 : vector<28x168xf32>
    %c0_17 = arith.constant 0 : index
    %c0_18 = arith.constant 0 : index
    %26 = vector.load %arg3[%c0_17, %c0_18] : memref<1x168xf32, #tpu.memory_space<vmem>>, vector<1x168xf32>
    %27 = vector.broadcast %26 : vector<1x168xf32> to vector<28x168xf32>
    %28 = arith.addf %25, %27 : vector<28x168xf32>
    %cst_19 = arith.constant 0.000000e+00 : f32
    %29 = vector.broadcast %cst_19 : f32 to vector<28x168xf32>
    %30 = arith.maximumf %28, %29 : vector<28x168xf32>
    %c0_20 = arith.constant 0 : index
    %c0_21 = arith.constant 0 : index
    %31 = vector.load %arg4[%c0_20, %c0_21] : memref<14x28xf32, #tpu.memory_space<vmem>>, vector<14x28xf32>
    %cst_22 = arith.constant dense<0.000000e+00> : vector<14x168xf32>
    %32 = tpu.matmul %31, %30, %cst_22 {dimension_numbers = #tpu.dot_dimension_numbers<[1], [0], [0], [1], [0, 0, 1, 1], [], []>} : vector<14x28xf32>, vector<28x168xf32>, vector<14x168xf32> -> vector<14x168xf32>
    %c0_23 = arith.constant 0 : index
    %c0_24 = arith.constant 0 : index
    %33 = vector.load %arg5[%c0_23, %c0_24] : memref<14x28xf32, #tpu.memory_space<vmem>>, vector<14x28xf32>
    %cst_25 = arith.constant dense<0.000000e+00> : vector<14x168xf32>
    %34 = tpu.matmul %33, %30, %cst_25 {dimension_numbers = #tpu.dot_dimension_numbers<[1], [0], [0], [1], [0, 0, 1, 1], [], []>} : vector<14x28xf32>, vector<28x168xf32>, vector<14x168xf32> -> vector<14x168xf32>
    %35 = arith.maximumf %32, %34 : vector<14x168xf32>
    %c0_26 = arith.constant 0 : index
    %c0_27 = arith.constant 0 : index
    %36 = vector.load %arg6[%c0_26, %c0_27] : memref<168x84xf32, #tpu.memory_space<vmem>>, vector<168x84xf32>
    %cst_28 = arith.constant dense<0.000000e+00> : vector<14x84xf32>
    %37 = tpu.matmul %35, %36, %cst_28 {dimension_numbers = #tpu.dot_dimension_numbers<[1], [0], [0], [1], [0, 0, 1, 1], [], []>} : vector<14x168xf32>, vector<168x84xf32>, vector<14x84xf32> -> vector<14x84xf32>
    %c0_29 = arith.constant 0 : index
    %c0_30 = arith.constant 0 : index
    %38 = vector.load %arg7[%c0_29, %c0_30] : memref<168x84xf32, #tpu.memory_space<vmem>>, vector<168x84xf32>
    %cst_31 = arith.constant dense<0.000000e+00> : vector<14x84xf32>
    %39 = tpu.matmul %35, %38, %cst_31 {dimension_numbers = #tpu.dot_dimension_numbers<[1], [0], [0], [1], [0, 0, 1, 1], [], []>} : vector<14x168xf32>, vector<168x84xf32>, vector<14x84xf32> -> vector<14x84xf32>
    %40 = arith.maximumf %37, %39 : vector<14x84xf32>
    %41 = vector.extract_strided_slice %40 {offsets = [0, 0], sizes = [10, 84], strides = [1, 1]} : vector<14x84xf32> to vector<10x84xf32>
    %c0_32 = arith.constant 0 : index
    %c0_33 = arith.constant 0 : index
    %c0_34 = arith.constant 0 : index
    %42 = vector.load %arg8[%c0_32, %c0_33, %c0_34] : memref<5x84x160xf32, #tpu.memory_space<vmem>>, vector<1x84x160xf32>
    %43 = vector.shape_cast %42 : vector<1x84x160xf32> to vector<84x160xf32>
    %cst_35 = arith.constant dense<0.000000e+00> : vector<10x160xf32>
    %44 = tpu.matmul %41, %43, %cst_35 {dimension_numbers = #tpu.dot_dimension_numbers<[1], [0], [0], [1], [0, 0, 1, 1], [], []>} : vector<10x84xf32>, vector<84x160xf32>, vector<10x160xf32> -> vector<10x160xf32>
    %45 = vector.extract_strided_slice %40 {offsets = [1, 0], sizes = [10, 84], strides = [1, 1]} : vector<14x84xf32> to vector<10x84xf32>
    %c1_36 = arith.constant 1 : index
    %c0_37 = arith.constant 0 : index
    %c0_38 = arith.constant 0 : index
    %46 = vector.load %arg8[%c1_36, %c0_37, %c0_38] : memref<5x84x160xf32, #tpu.memory_space<vmem>>, vector<1x84x160xf32>
    %47 = vector.shape_cast %46 : vector<1x84x160xf32> to vector<84x160xf32>
    %cst_39 = arith.constant dense<0.000000e+00> : vector<10x160xf32>
    %48 = tpu.matmul %45, %47, %cst_39 {dimension_numbers = #tpu.dot_dimension_numbers<[1], [0], [0], [1], [0, 0, 1, 1], [], []>} : vector<10x84xf32>, vector<84x160xf32>, vector<10x160xf32> -> vector<10x160xf32>
    %49 = arith.addf %44, %48 : vector<10x160xf32>
    %50 = vector.extract_strided_slice %40 {offsets = [2, 0], sizes = [10, 84], strides = [1, 1]} : vector<14x84xf32> to vector<10x84xf32>
    %c2_40 = arith.constant 2 : index
    %c0_41 = arith.constant 0 : index
    %c0_42 = arith.constant 0 : index
    %51 = vector.load %arg8[%c2_40, %c0_41, %c0_42] : memref<5x84x160xf32, #tpu.memory_space<vmem>>, vector<1x84x160xf32>
    %52 = vector.shape_cast %51 : vector<1x84x160xf32> to vector<84x160xf32>
    %cst_43 = arith.constant dense<0.000000e+00> : vector<10x160xf32>
    %53 = tpu.matmul %50, %52, %cst_43 {dimension_numbers = #tpu.dot_dimension_numbers<[1], [0], [0], [1], [0, 0, 1, 1], [], []>} : vector<10x84xf32>, vector<84x160xf32>, vector<10x160xf32> -> vector<10x160xf32>
    %54 = arith.addf %49, %53 : vector<10x160xf32>
    %55 = vector.extract_strided_slice %40 {offsets = [3, 0], sizes = [10, 84], strides = [1, 1]} : vector<14x84xf32> to vector<10x84xf32>
    %c3_44 = arith.constant 3 : index
    %c0_45 = arith.constant 0 : index
    %c0_46 = arith.constant 0 : index
    %56 = vector.load %arg8[%c3_44, %c0_45, %c0_46] : memref<5x84x160xf32, #tpu.memory_space<vmem>>, vector<1x84x160xf32>
    %57 = vector.shape_cast %56 : vector<1x84x160xf32> to vector<84x160xf32>
    %cst_47 = arith.constant dense<0.000000e+00> : vector<10x160xf32>
    %58 = tpu.matmul %55, %57, %cst_47 {dimension_numbers = #tpu.dot_dimension_numbers<[1], [0], [0], [1], [0, 0, 1, 1], [], []>} : vector<10x84xf32>, vector<84x160xf32>, vector<10x160xf32> -> vector<10x160xf32>
    %59 = arith.addf %54, %58 : vector<10x160xf32>
    %60 = vector.extract_strided_slice %40 {offsets = [4, 0], sizes = [10, 84], strides = [1, 1]} : vector<14x84xf32> to vector<10x84xf32>
    %c4_48 = arith.constant 4 : index
    %c0_49 = arith.constant 0 : index
    %c0_50 = arith.constant 0 : index
    %61 = vector.load %arg8[%c4_48, %c0_49, %c0_50] : memref<5x84x160xf32, #tpu.memory_space<vmem>>, vector<1x84x160xf32>
    %62 = vector.shape_cast %61 : vector<1x84x160xf32> to vector<84x160xf32>
    %cst_51 = arith.constant dense<0.000000e+00> : vector<10x160xf32>
    %63 = tpu.matmul %60, %62, %cst_51 {dimension_numbers = #tpu.dot_dimension_numbers<[1], [0], [0], [1], [0, 0, 1, 1], [], []>} : vector<10x84xf32>, vector<84x160xf32>, vector<10x160xf32> -> vector<10x160xf32>
    %64 = arith.addf %59, %63 : vector<10x160xf32>
    %c0_52 = arith.constant 0 : index
    %c0_53 = arith.constant 0 : index
    %65 = vector.load %arg9[%c0_52, %c0_53] : memref<1x160xf32, #tpu.memory_space<vmem>>, vector<1x160xf32>
    %66 = vector.broadcast %65 : vector<1x160xf32> to vector<10x160xf32>
    %67 = arith.addf %64, %66 : vector<10x160xf32>
    %cst_54 = arith.constant 0.000000e+00 : f32
    %68 = vector.broadcast %cst_54 : f32 to vector<10x160xf32>
    %69 = arith.maximumf %67, %68 : vector<10x160xf32>
    %c0_55 = arith.constant 0 : index
    %c0_56 = arith.constant 0 : index
    %70 = vector.load %arg10[%c0_55, %c0_56] : memref<5x10xf32, #tpu.memory_space<vmem>>, vector<5x10xf32>
    %cst_57 = arith.constant dense<0.000000e+00> : vector<5x160xf32>
    %71 = tpu.matmul %70, %69, %cst_57 {dimension_numbers = #tpu.dot_dimension_numbers<[1], [0], [0], [1], [0, 0, 1, 1], [], []>} : vector<5x10xf32>, vector<10x160xf32>, vector<5x160xf32> -> vector<5x160xf32>
    %c0_58 = arith.constant 0 : index
    %c0_59 = arith.constant 0 : index
    %72 = vector.load %arg11[%c0_58, %c0_59] : memref<5x10xf32, #tpu.memory_space<vmem>>, vector<5x10xf32>
    %cst_60 = arith.constant dense<0.000000e+00> : vector<5x160xf32>
    %73 = tpu.matmul %72, %69, %cst_60 {dimension_numbers = #tpu.dot_dimension_numbers<[1], [0], [0], [1], [0, 0, 1, 1], [], []>} : vector<5x10xf32>, vector<10x160xf32>, vector<5x160xf32> -> vector<5x160xf32>
    %74 = arith.maximumf %71, %73 : vector<5x160xf32>
    %c0_61 = arith.constant 0 : index
    %c0_62 = arith.constant 0 : index
    %75 = vector.load %arg12[%c0_61, %c0_62] : memref<160x80xf32, #tpu.memory_space<vmem>>, vector<160x80xf32>
    %cst_63 = arith.constant dense<0.000000e+00> : vector<5x80xf32>
    %76 = tpu.matmul %74, %75, %cst_63 {dimension_numbers = #tpu.dot_dimension_numbers<[1], [0], [0], [1], [0, 0, 1, 1], [], []>} : vector<5x160xf32>, vector<160x80xf32>, vector<5x80xf32> -> vector<5x80xf32>
    %c0_64 = arith.constant 0 : index
    %c0_65 = arith.constant 0 : index
    %77 = vector.load %arg13[%c0_64, %c0_65] : memref<160x80xf32, #tpu.memory_space<vmem>>, vector<160x80xf32>
    %cst_66 = arith.constant dense<0.000000e+00> : vector<5x80xf32>
    %78 = tpu.matmul %74, %77, %cst_66 {dimension_numbers = #tpu.dot_dimension_numbers<[1], [0], [0], [1], [0, 0, 1, 1], [], []>} : vector<5x160xf32>, vector<160x80xf32>, vector<5x80xf32> -> vector<5x80xf32>
    %79 = arith.maximumf %76, %78 : vector<5x80xf32>
    %80 = vector.extract_strided_slice %79 {offsets = [0, 0], sizes = [1, 80], strides = [1, 1]} : vector<5x80xf32> to vector<1x80xf32>
    %c0_67 = arith.constant 0 : index
    %c0_68 = arith.constant 0 : index
    %c0_69 = arith.constant 0 : index
    %81 = vector.load %arg14[%c0_67, %c0_68, %c0_69] : memref<5x80x128xf32, #tpu.memory_space<vmem>>, vector<1x80x128xf32>
    %82 = vector.shape_cast %81 : vector<1x80x128xf32> to vector<80x128xf32>
    %cst_70 = arith.constant dense<0.000000e+00> : vector<1x128xf32>
    %83 = tpu.matmul %80, %82, %cst_70 {dimension_numbers = #tpu.dot_dimension_numbers<[1], [0], [0], [1], [0, 0, 1, 1], [], []>} : vector<1x80xf32>, vector<80x128xf32>, vector<1x128xf32> -> vector<1x128xf32>
    %84 = vector.extract_strided_slice %79 {offsets = [1, 0], sizes = [1, 80], strides = [1, 1]} : vector<5x80xf32> to vector<1x80xf32>
    %c1_71 = arith.constant 1 : index
    %c0_72 = arith.constant 0 : index
    %c0_73 = arith.constant 0 : index
    %85 = vector.load %arg14[%c1_71, %c0_72, %c0_73] : memref<5x80x128xf32, #tpu.memory_space<vmem>>, vector<1x80x128xf32>
    %86 = vector.shape_cast %85 : vector<1x80x128xf32> to vector<80x128xf32>
    %cst_74 = arith.constant dense<0.000000e+00> : vector<1x128xf32>
    %87 = tpu.matmul %84, %86, %cst_74 {dimension_numbers = #tpu.dot_dimension_numbers<[1], [0], [0], [1], [0, 0, 1, 1], [], []>} : vector<1x80xf32>, vector<80x128xf32>, vector<1x128xf32> -> vector<1x128xf32>
    %88 = arith.addf %83, %87 : vector<1x128xf32>
    %89 = vector.extract_strided_slice %79 {offsets = [2, 0], sizes = [1, 80], strides = [1, 1]} : vector<5x80xf32> to vector<1x80xf32>
    %c2_75 = arith.constant 2 : index
    %c0_76 = arith.constant 0 : index
    %c0_77 = arith.constant 0 : index
    %90 = vector.load %arg14[%c2_75, %c0_76, %c0_77] : memref<5x80x128xf32, #tpu.memory_space<vmem>>, vector<1x80x128xf32>
    %91 = vector.shape_cast %90 : vector<1x80x128xf32> to vector<80x128xf32>
    %cst_78 = arith.constant dense<0.000000e+00> : vector<1x128xf32>
    %92 = tpu.matmul %89, %91, %cst_78 {dimension_numbers = #tpu.dot_dimension_numbers<[1], [0], [0], [1], [0, 0, 1, 1], [], []>} : vector<1x80xf32>, vector<80x128xf32>, vector<1x128xf32> -> vector<1x128xf32>
    %93 = arith.addf %88, %92 : vector<1x128xf32>
    %94 = vector.extract_strided_slice %79 {offsets = [3, 0], sizes = [1, 80], strides = [1, 1]} : vector<5x80xf32> to vector<1x80xf32>
    %c3_79 = arith.constant 3 : index
    %c0_80 = arith.constant 0 : index
    %c0_81 = arith.constant 0 : index
    %95 = vector.load %arg14[%c3_79, %c0_80, %c0_81] : memref<5x80x128xf32, #tpu.memory_space<vmem>>, vector<1x80x128xf32>
    %96 = vector.shape_cast %95 : vector<1x80x128xf32> to vector<80x128xf32>
    %cst_82 = arith.constant dense<0.000000e+00> : vector<1x128xf32>
    %97 = tpu.matmul %94, %96, %cst_82 {dimension_numbers = #tpu.dot_dimension_numbers<[1], [0], [0], [1], [0, 0, 1, 1], [], []>} : vector<1x80xf32>, vector<80x128xf32>, vector<1x128xf32> -> vector<1x128xf32>
    %98 = arith.addf %93, %97 : vector<1x128xf32>
    %99 = vector.extract_strided_slice %79 {offsets = [4, 0], sizes = [1, 80], strides = [1, 1]} : vector<5x80xf32> to vector<1x80xf32>
    %c4_83 = arith.constant 4 : index
    %c0_84 = arith.constant 0 : index
    %c0_85 = arith.constant 0 : index
    %100 = vector.load %arg14[%c4_83, %c0_84, %c0_85] : memref<5x80x128xf32, #tpu.memory_space<vmem>>, vector<1x80x128xf32>
    %101 = vector.shape_cast %100 : vector<1x80x128xf32> to vector<80x128xf32>
    %cst_86 = arith.constant dense<0.000000e+00> : vector<1x128xf32>
    %102 = tpu.matmul %99, %101, %cst_86 {dimension_numbers = #tpu.dot_dimension_numbers<[1], [0], [0], [1], [0, 0, 1, 1], [], []>} : vector<1x80xf32>, vector<80x128xf32>, vector<1x128xf32> -> vector<1x128xf32>
    %103 = arith.addf %98, %102 : vector<1x128xf32>
    %c0_87 = arith.constant 0 : index
    %c0_88 = arith.constant 0 : index
    %104 = vector.load %arg15[%c0_87, %c0_88] : memref<1x128xf32, #tpu.memory_space<vmem>>, vector<1x128xf32>
    %105 = arith.addf %103, %104 : vector<1x128xf32>
    %cst_89 = arith.constant 0.000000e+00 : f32
    %106 = vector.broadcast %cst_89 : f32 to vector<1x128xf32>
    %107 = arith.maximumf %105, %106 : vector<1x128xf32>
    %c0_90 = arith.constant 0 : index
    %c0_91 = arith.constant 0 : index
    %108 = vector.load %arg16[%c0_90, %c0_91] : memref<128x128xf32, #tpu.memory_space<vmem>>, vector<128x128xf32>
    %cst_92 = arith.constant dense<0.000000e+00> : vector<1x128xf32>
    %109 = tpu.matmul %107, %108, %cst_92 {dimension_numbers = #tpu.dot_dimension_numbers<[1], [0], [0], [1], [0, 0, 1, 1], [], []>} : vector<1x128xf32>, vector<128x128xf32>, vector<1x128xf32> -> vector<1x128xf32>
    %c0_93 = arith.constant 0 : index
    %c0_94 = arith.constant 0 : index
    %110 = vector.load %arg17[%c0_93, %c0_94] : memref<1x128xf32, #tpu.memory_space<vmem>>, vector<1x128xf32>
    %111 = arith.addf %109, %110 : vector<1x128xf32>
    %cst_95 = arith.constant 0.000000e+00 : f32
    %112 = vector.broadcast %cst_95 : f32 to vector<1x128xf32>
    %113 = arith.maximumf %111, %112 : vector<1x128xf32>
    %c0_96 = arith.constant 0 : index
    %c0_97 = arith.constant 0 : index
    %114 = vector.load %arg18[%c0_96, %c0_97] : memref<128x128xf32, #tpu.memory_space<vmem>>, vector<128x128xf32>
    %cst_98 = arith.constant dense<0.000000e+00> : vector<1x128xf32>
    %115 = tpu.matmul %113, %114, %cst_98 {dimension_numbers = #tpu.dot_dimension_numbers<[1], [0], [0], [1], [0, 0, 1, 1], [], []>} : vector<1x128xf32>, vector<128x128xf32>, vector<1x128xf32> -> vector<1x128xf32>
    %c0_99 = arith.constant 0 : index
    %c0_100 = arith.constant 0 : index
    %116 = vector.load %arg19[%c0_99, %c0_100] : memref<1x128xf32, #tpu.memory_space<vmem>>, vector<1x128xf32>
    %117 = arith.addf %115, %116 : vector<1x128xf32>
    %c0_101 = arith.constant 0 : index
    %c0_102 = arith.constant 0 : index
    %c0_103 = arith.constant 0 : index
    %118 = vector.load %arg20[%c0_101, %c0_102, %c0_103] : memref<1x1x128xf32, #tpu.memory_space<vmem>>, vector<1x1x128xf32>
    %119 = vector.shape_cast %118 : vector<1x1x128xf32> to vector<1x128xf32>
    %120 = vector.shape_cast %117 : vector<1x128xf32> to vector<1x1x128xf32>
    tpu.vector_store %arg20[%c0_101, %c0_102, %c0_103], %120 {strides = array<i32>} : memref<1x1x128xf32, #tpu.memory_space<vmem>>, vector<1x1x128xf32>,
    return
  }
  func.func @transform_0(%arg0: i32) -> (i32, i32, i32) {
    %c0_i32 = arith.constant 0 : i32
    %c0_i32_0 = arith.constant 0 : i32
    %c0_i32_1 = arith.constant 0 : i32
    return %arg0, %c0_i32, %c0_i32_0 : i32, i32, i32
  }
  func.func @transform_1(%arg0: i32) -> (i32, i32, i32) {
    %c0_i32 = arith.constant 0 : i32
    %c0_i32_0 = arith.constant 0 : i32
    %c0_i32_1 = arith.constant 0 : i32
    %c0_i32_2 = arith.constant 0 : i32
    return %c0_i32, %c0_i32_0, %c0_i32_1 : i32, i32, i32
  }
  func.func @transform_2(%arg0: i32) -> (i32, i32) {
    %c0_i32 = arith.constant 0 : i32
    %c0_i32_0 = arith.constant 0 : i32
    %c0_i32_1 = arith.constant 0 : i32
    return %c0_i32, %c0_i32_0 : i32, i32
  }
  func.func @transform_3(%arg0: i32) -> (i32, i32) {
    %c0_i32 = arith.constant 0 : i32
    %c0_i32_0 = arith.constant 0 : i32
    %c0_i32_1 = arith.constant 0 : i32
    return %c0_i32, %c0_i32_0 : i32, i32
  }
  func.func @transform_4(%arg0: i32) -> (i32, i32) {
    %c0_i32 = arith.constant 0 : i32
    %c0_i32_0 = arith.constant 0 : i32
    %c0_i32_1 = arith.constant 0 : i32
    return %c0_i32, %c0_i32_0 : i32, i32
  }
  func.func @transform_5(%arg0: i32) -> (i32, i32) {
    %c0_i32 = arith.constant 0 : i32
    %c0_i32_0 = arith.constant 0 : i32
    %c0_i32_1 = arith.constant 0 : i32
    return %c0_i32, %c0_i32_0 : i32, i32
  }
  func.func @transform_6(%arg0: i32) -> (i32, i32) {
    %c0_i32 = arith.constant 0 : i32
    %c0_i32_0 = arith.constant 0 : i32
    %c0_i32_1 = arith.constant 0 : i32
    return %c0_i32, %c0_i32_0 : i32, i32
  }
  func.func @transform_7(%arg0: i32) -> (i32, i32, i32) {
    %c0_i32 = arith.constant 0 : i32
    %c0_i32_0 = arith.constant 0 : i32
    %c0_i32_1 = arith.constant 0 : i32
    %c0_i32_2 = arith.constant 0 : i32
    return %c0_i32, %c0_i32_0, %c0_i32_1 : i32, i32, i32
  }
  func.func @transform_8(%arg0: i32) -> (i32, i32) {
    %c0_i32 = arith.constant 0 : i32
    %c0_i32_0 = arith.constant 0 : i32
    %c0_i32_1 = arith.constant 0 : i32
    return %c0_i32, %c0_i32_0 : i32, i32
  }
  func.func @transform_9(%arg0: i32) -> (i32, i32) {
    %c0_i32 = arith.constant 0 : i32
    %c0_i32_0 = arith.constant 0 : i32
    %c0_i32_1 = arith.constant 0 : i32
    return %c0_i32, %c0_i32_0 : i32, i32
  }
  func.func @transform_10(%arg0: i32) -> (i32, i32) {
    %c0_i32 = arith.constant 0 : i32
    %c0_i32_0 = arith.constant 0 : i32
    %c0_i32_1 = arith.constant 0 : i32
    return %c0_i32, %c0_i32_0 : i32, i32
  }
  func.func @transform_11(%arg0: i32) -> (i32, i32) {
    %c0_i32 = arith.constant 0 : i32
    %c0_i32_0 = arith.constant 0 : i32
    %c0_i32_1 = arith.constant 0 : i32
    return %c0_i32, %c0_i32_0 : i32, i32
  }
  func.func @transform_12(%arg0: i32) -> (i32, i32) {
    %c0_i32 = arith.constant 0 : i32
    %c0_i32_0 = arith.constant 0 : i32
    %c0_i32_1 = arith.constant 0 : i32
    return %c0_i32, %c0_i32_0 : i32, i32
  }
  func.func @transform_13(%arg0: i32) -> (i32, i32, i32) {
    %c0_i32 = arith.constant 0 : i32
    %c0_i32_0 = arith.constant 0 : i32
    %c0_i32_1 = arith.constant 0 : i32
    %c0_i32_2 = arith.constant 0 : i32
    return %c0_i32, %c0_i32_0, %c0_i32_1 : i32, i32, i32
  }
  func.func @transform_14(%arg0: i32) -> (i32, i32) {
    %c0_i32 = arith.constant 0 : i32
    %c0_i32_0 = arith.constant 0 : i32
    %c0_i32_1 = arith.constant 0 : i32
    return %c0_i32, %c0_i32_0 : i32, i32
  }
  func.func @transform_15(%arg0: i32) -> (i32, i32) {
    %c0_i32 = arith.constant 0 : i32
    %c0_i32_0 = arith.constant 0 : i32
    %c0_i32_1 = arith.constant 0 : i32
    return %c0_i32, %c0_i32_0 : i32, i32
  }
  func.func @transform_16(%arg0: i32) -> (i32, i32) {
    %c0_i32 = arith.constant 0 : i32
    %c0_i32_0 = arith.constant 0 : i32
    %c0_i32_1 = arith.constant 0 : i32
    return %c0_i32, %c0_i32_0 : i32, i32
  }
  func.func @transform_17(%arg0: i32) -> (i32, i32) {
    %c0_i32 = arith.constant 0 : i32
    %c0_i32_0 = arith.constant 0 : i32
    %c0_i32_1 = arith.constant 0 : i32
    return %c0_i32, %c0_i32_0 : i32, i32
  }
  func.func @transform_18(%arg0: i32) -> (i32, i32) {
    %c0_i32 = arith.constant 0 : i32
    %c0_i32_0 = arith.constant 0 : i32
    %c0_i32_1 = arith.constant 0 : i32
    return %c0_i32, %c0_i32_0 : i32, i32
  }
  func.func @transform_19(%arg0: i32) -> (i32, i32, i32) {
    %c0_i32 = arith.constant 0 : i32
    %c0_i32_0 = arith.constant 0 : i32
    %c0_i32_1 = arith.constant 0 : i32
    return %arg0, %c0_i32, %c0_i32_0 : i32, i32, i32
  }
}

</mosaic_0001>

<llo_original>
// kernel: lenet_pallas.1
$region0: #{lenet_pallas.1}
  #allocation0 [shape = 'u32[]', space=smem, size = 0x4, offset = 0x4, fixed_abs, tag = 'smem constant byte address 0x4 - core index']
  #allocation1 [shape = 'u32[144,128]{1,0:T(1,128)}', space=vmem, size = 0x12000, scoped, tag = 'internal scratch']
  %s0 = inlined_call_operand.vmem [shape: f32[2,32,32], index: 0, kind: input, shape index: {}]
  %s1 = inlined_call_operand.vmem [shape: f32[5,32,168], index: 1, kind: input, shape index: {}]
  %s2 = inlined_call_operand.vmem [shape: f32[1,168], index: 2, kind: input, shape index: {}]
  %s3 = inlined_call_operand.vmem [shape: f32[14,28], index: 3, kind: input, shape index: {}]
  %s4 = inlined_call_operand.vmem [shape: f32[14,28], index: 4, kind: input, shape index: {}]
  %s5 = inlined_call_operand.vmem [shape: f32[168,84], index: 5, kind: input, shape index: {}]
  %s6 = inlined_call_operand.vmem [shape: f32[168,84], index: 6, kind: input, shape index: {}]
  %s7 = inlined_call_operand.vmem [shape: f32[5,84,160], index: 7, kind: input, shape index: {}]
  %s8 = inlined_call_operand.vmem [shape: f32[1,160], index: 8, kind: input, shape index: {}]
  %s9 = inlined_call_operand.vmem [shape: f32[5,10], index: 9, kind: input, shape index: {}]
  %s10 = inlined_call_operand.vmem [shape: f32[5,10], index: 10, kind: input, shape index: {}]
  %s11 = inlined_call_operand.vmem [shape: f32[160,80], index: 11, kind: input, shape index: {}]
  %s12 = inlined_call_operand.vmem [shape: f32[160,80], index: 12, kind: input, shape index: {}]
  %s13 = inlined_call_operand.vmem [shape: f32[5,80,128], index: 13, kind: input, shape index: {}]
  %s14 = inlined_call_operand.vmem [shape: f32[1,128], index: 14, kind: input, shape index: {}]
  %s15 = inlined_call_operand.vmem [shape: f32[128,128], index: 15, kind: input, shape index: {}]
  %s16 = inlined_call_operand.vmem [shape: f32[1,128], index: 16, kind: input, shape index: {}]
  %s17 = inlined_call_operand.vmem [shape: f32[128,128], index: 17, kind: input, shape index: {}]
  %s18 = inlined_call_operand.vmem [shape: f32[1,128], index: 18, kind: input, shape index: {}]
  %s19 = inlined_call_operand.hbm [shape: f32[2,1,128], index: 19, kind: output, shape index: {}]
  %s20 = sld [smem:[#allocation0]]
  $region109: #{lenet_pallas.1} parent=0
    _
  %s22 = ssub.s32 1, %s20
  %s23 = scalar_select 0, %s22, %s20
  $region1: #{lenet_pallas.1} parent=0
    #allocation2 [shape = 'u8[1024]{0}', space=vmem, size = 0x400, scoped, tag = 'output window, operand 0']
    #allocation3 [shape = 's32[2]{0}', space=sflag, size = 0x8, scoped, tag = 'scoped memory for lenet_pallas.1']
    %24 = vsyncpa [#allocation3], 0
    %s25 = scalar_lea.sflag [#allocation3], 1
    %26 = vsyncpa %s25, 0
    loop: start=0, step=1, limit=4
    $region2: #{lenet_pallas.1} parent=1 // loop_pre_header
      _
    $region3: #{lenet_pallas.1} parent=1 // loop_header
      %s28 = sphi 0, %s32
      %p29 = scmp.ge.s32.totalorder %s28, 4
      %s38 = sphi 0, %s40
      %s41 = sphi 0, %s38
      %s42 = sphi 0, %s41
      %s58 = sphi 0, %s42
      %s62 = sphi 0, %s62
      %s64 = sphi 0, %s62
      %s65 = sphi 0, %s64
      %s79 = sphi 0, %s65
      %s83 = sphi 0, %s83
      %s85 = sphi 0, %s83
      %s86 = sphi 0, %s85
      %s100 = sphi 0, %s86
      %s104 = sphi 0, %s104
      %s106 = sphi 0, %s104
      %s107 = sphi 0, %s106
      %s121 = sphi 0, %s107
      %s125 = sphi 0, %s125
      %s127 = sphi 0, %s125
      %s128 = sphi 0, %s127
      %s142 = sphi 0, %s128
      %s146 = sphi 0, %s146
      %s148 = sphi 0, %s146
      %s149 = sphi 0, %s148
      %s163 = sphi 0, %s149
      %s167 = sphi 0, %s167
      %s169 = sphi 0, %s167
      %s170 = sphi 0, %s169
      %s184 = sphi 0, %s170
      %s188 = sphi 0, %s188
      %s190 = sphi 0, %s188
      %s191 = sphi 0, %s190
      %s205 = sphi 0, %s191
      %s209 = sphi 0, %s209
      %s211 = sphi 0, %s209
      %s212 = sphi 0, %s211
      %s226 = sphi 0, %s212
      %s230 = sphi 0, %s230
      %s232 = sphi 0, %s230
      %s233 = sphi 0, %s232
      %s247 = sphi 0, %s233
      %s251 = sphi 0, %s251
      %s253 = sphi 0, %s251
      %s254 = sphi 0, %s253
      %s268 = sphi 0, %s254
      %s272 = sphi 0, %s272
      %s274 = sphi 0, %s272
      %s275 = sphi 0, %s274
      %s289 = sphi 0, %s275
      %s293 = sphi 0, %s293
      %s295 = sphi 0, %s293
      %s296 = sphi 0, %s295
      %s310 = sphi 0, %s296
      %s314 = sphi 0, %s314
      %s316 = sphi 0, %s314
      %s317 = sphi 0, %s316
      %s331 = sphi 0, %s317
      %s335 = sphi 0, %s335
      %s337 = sphi 0, %s335
      %s338 = sphi 0, %s337
      %s352 = sphi 0, %s338
      %s356 = sphi 0, %s356
      %s358 = sphi 0, %s356
      %s359 = sphi 0, %s358
      %s373 = sphi 0, %s359
      %s377 = sphi 0, %s377
      %s379 = sphi 0, %s377
      %s380 = sphi 0, %s379
      %s394 = sphi 0, %s380
      %s398 = sphi 0, %s398
      %s400 = sphi 0, %s398
      %s401 = sphi 0, %s400
      %s415 = sphi 0, %s401
      %s419 = sphi 0, %s419
      %s421 = sphi 0, %s419
      %s422 = sphi 0, %s421
      %s436 = sphi 0, %s422
      %s442 = sphi 0, %s444
      %s445 = sphi 0, %s442
      %s446 = sphi 0, %s445
      %s462 = sphi 0, %s446
    $region4: #{lenet_pallas.1} parent=1 // loop_header_branch
      %31 = sbr.rel (%p29) target = $region8
    $region5: #{lenet_pallas.1} parent=1 // loop_body
      %s33 = ssub.s32 %s28, 1
      %s34 = ssub.s32 %s28, 2
      %s35 = sadd.s32 %s28, 1
      %s36 = ssub.s32 %s28, %s35
      %p37 = scmp.eq.s32.totalorder %s36, 0
      %s39 = sadd.s32 %s38, 1
      %s40 = scalar_select %p37, %s38, %s39
      %p43 = pneg %p37
      %p44 = scmp.eq.s32.totalorder %s28, 1
      %p45 = por %p43, %p44
      %p46 = scmp.ne.s32.totalorder %s38, %s41
      %p47 = scmp.eq.s32.totalorder %s28, 0
      %p48 = por %p46, %p47
      %p49 = scmp.ne.s32.totalorder %s38, %s41
      %p50 = scmp.eq.s32.totalorder %s33, 1
      %p51 = por %p49, %p50
      %p52 = scmp.ne.s32.totalorder %s41, %s42
      %p53 = scmp.eq.s32.totalorder %s33, 0
      %p54 = por %p52, %p53
      %p55 = scmp.ne.s32.totalorder %s41, %s42
      %p56 = scmp.eq.s32.totalorder %s34, 1
      %p57 = por %p55, %p56
      %p59 = scmp.ne.s32.totalorder %s42, %s58
      %p60 = scmp.eq.s32.totalorder %s34, 0
      %p61 = por %p59, %p60
      %s63 = sadd.s32 %s62, 1
      %p66 = scmp.eq.s32.totalorder %s28, 1
      %p67 = scmp.ne.s32.totalorder %s62, %s64
      %p68 = scmp.eq.s32.totalorder %s28, 0
      %p69 = por %p67, %p68
      %p70 = scmp.ne.s32.totalorder %s62, %s64
      %p71 = scmp.eq.s32.totalorder %s33, 1
      %p72 = por %p70, %p71
      %p73 = scmp.ne.s32.totalorder %s64, %s65
      %p74 = scmp.eq.s32.totalorder %s33, 0
      %p75 = por %p73, %p74
      %p76 = scmp.ne.s32.totalorder %s64, %s65
      %p77 = scmp.eq.s32.totalorder %s34, 1
      %p78 = por %p76, %p77
      %p80 = scmp.ne.s32.totalorder %s65, %s79
      %p81 = scmp.eq.s32.totalorder %s34, 0
      %p82 = por %p80, %p81
      %s84 = sadd.s32 %s83, 1
      %p87 = scmp.eq.s32.totalorder %s28, 1
      %p88 = scmp.ne.s32.totalorder %s83, %s85
      %p89 = scmp.eq.s32.totalorder %s28, 0
      %p90 = por %p88, %p89
      %p91 = scmp.ne.s32.totalorder %s83, %s85
      %p92 = scmp.eq.s32.totalorder %s33, 1
      %p93 = por %p91, %p92
      %p94 = scmp.ne.s32.totalorder %s85, %s86
      %p95 = scmp.eq.s32.totalorder %s33, 0
      %p96 = por %p94, %p95
      %p97 = scmp.ne.s32.totalorder %s85, %s86
      %p98 = scmp.eq.s32.totalorder %s34, 1
      %p99 = por %p97, %p98
      %p101 = scmp.ne.s32.totalorder %s86, %s100
      %p102 = scmp.eq.s32.totalorder %s34, 0
      %p103 = por %p101, %p102
      %s105 = sadd.s32 %s104, 1
      %p108 = scmp.eq.s32.totalorder %s28, 1
      %p109 = scmp.ne.s32.totalorder %s104, %s106
      %p110 = scmp.eq.s32.totalorder %s28, 0
      %p111 = por %p109, %p110
      %p112 = scmp.ne.s32.totalorder %s104, %s106
      %p113 = scmp.eq.s32.totalorder %s33, 1
      %p114 = por %p112, %p113
      %p115 = scmp.ne.s32.totalorder %s106, %s107
      %p116 = scmp.eq.s32.totalorder %s33, 0
      %p117 = por %p115, %p116
      %p118 = scmp.ne.s32.totalorder %s106, %s107
      %p119 = scmp.eq.s32.totalorder %s34, 1
      %p120 = por %p118, %p119
      %p122 = scmp.ne.s32.totalorder %s107, %s121
      %p123 = scmp.eq.s32.totalorder %s34, 0
      %p124 = por %p122, %p123
      %s126 = sadd.s32 %s125, 1
      %p129 = scmp.eq.s32.totalorder %s28, 1
      %p130 = scmp.ne.s32.totalorder %s125, %s127
      %p131 = scmp.eq.s32.totalorder %s28, 0
      %p132 = por %p130, %p131
      %p133 = scmp.ne.s32.totalorder %s125, %s127
      %p134 = scmp.eq.s32.totalorder %s33, 1
      %p135 = por %p133, %p134
      %p136 = scmp.ne.s32.totalorder %s127, %s128
      %p137 = scmp.eq.s32.totalorder %s33, 0
      %p138 = por %p136, %p137
      %p139 = scmp.ne.s32.totalorder %s127, %s128
      %p140 = scmp.eq.s32.totalorder %s34, 1
      %p141 = por %p139, %p140
      %p143 = scmp.ne.s32.totalorder %s128, %s142
      %p144 = scmp.eq.s32.totalorder %s34, 0
      %p145 = por %p143, %p144
      %s147 = sadd.s32 %s146, 1
      %p150 = scmp.eq.s32.totalorder %s28, 1
      %p151 = scmp.ne.s32.totalorder %s146, %s148
      %p152 = scmp.eq.s32.totalorder %s28, 0
      %p153 = por %p151, %p152
      %p154 = scmp.ne.s32.totalorder %s146, %s148
      %p155 = scmp.eq.s32.totalorder %s33, 1
      %p156 = por %p154, %p155
      %p157 = scmp.ne.s32.totalorder %s148, %s149
      %p158 = scmp.eq.s32.totalorder %s33, 0
      %p159 = por %p157, %p158
      %p160 = scmp.ne.s32.totalorder %s148, %s149
      %p161 = scmp.eq.s32.totalorder %s34, 1
      %p162 = por %p160, %p161
      %p164 = scmp.ne.s32.totalorder %s149, %s163
      %p165 = scmp.eq.s32.totalorder %s34, 0
      %p166 = por %p164, %p165
      %s168 = sadd.s32 %s167, 1
      %p171 = scmp.eq.s32.totalorder %s28, 1
      %p172 = scmp.ne.s32.totalorder %s167, %s169
      %p173 = scmp.eq.s32.totalorder %s28, 0
      %p174 = por %p172, %p173
      %p175 = scmp.ne.s32.totalorder %s167, %s169
      %p176 = scmp.eq.s32.totalorder %s33, 1
      %p177 = por %p175, %p176
      %p178 = scmp.ne.s32.totalorder %s169, %s170
      %p179 = scmp.eq.s32.totalorder %s33, 0
      %p180 = por %p178, %p179
      %p181 = scmp.ne.s32.totalorder %s169, %s170
      %p182 = scmp.eq.s32.totalorder %s34, 1
      %p183 = por %p181, %p182
      %p185 = scmp.ne.s32.totalorder %s170, %s184
      %p186 = scmp.eq.s32.totalorder %s34, 0
      %p187 = por %p185, %p186
      %s189 = sadd.s32 %s188, 1
      %p192 = scmp.eq.s32.totalorder %s28, 1
      %p193 = scmp.ne.s32.totalorder %s188, %s190
      %p194 = scmp.eq.s32.totalorder %s28, 0
      %p195 = por %p193, %p194
      %p196 = scmp.ne.s32.totalorder %s188, %s190
      %p197 = scmp.eq.s32.totalorder %s33, 1
      %p198 = por %p196, %p197
      %p199 = scmp.ne.s32.totalorder %s190, %s191
      %p200 = scmp.eq.s32.totalorder %s33, 0
      %p201 = por %p199, %p200
      %p202 = scmp.ne.s32.totalorder %s190, %s191
      %p203 = scmp.eq.s32.totalorder %s34, 1
      %p204 = por %p202, %p203
      %p206 = scmp.ne.s32.totalorder %s191, %s205
      %p207 = scmp.eq.s32.totalorder %s34, 0
      %p208 = por %p206, %p207
      %s210 = sadd.s32 %s209, 1
      %p213 = scmp.eq.s32.totalorder %s28, 1
      %p214 = scmp.ne.s32.totalorder %s209, %s211
      %p215 = scmp.eq.s32.totalorder %s28, 0
      %p216 = por %p214, %p215
      %p217 = scmp.ne.s32.totalorder %s209, %s211
      %p218 = scmp.eq.s32.totalorder %s33, 1
      %p219 = por %p217, %p218
      %p220 = scmp.ne.s32.totalorder %s211, %s212
      %p221 = scmp.eq.s32.totalorder %s33, 0
      %p222 = por %p220, %p221
      %p223 = scmp.ne.s32.totalorder %s211, %s212
      %p224 = scmp.eq.s32.totalorder %s34, 1
      %p225 = por %p223, %p224
      %p227 = scmp.ne.s32.totalorder %s212, %s226
      %p228 = scmp.eq.s32.totalorder %s34, 0
      %p229 = por %p227, %p228
      %s231 = sadd.s32 %s230, 1
      %p234 = scmp.eq.s32.totalorder %s28, 1
      %p235 = scmp.ne.s32.totalorder %s230, %s232
      %p236 = scmp.eq.s32.totalorder %s28, 0
      %p237 = por %p235, %p236
      %p238 = scmp.ne.s32.totalorder %s230, %s232
      %p239 = scmp.eq.s32.totalorder %s33, 1
      %p240 = por %p238, %p239
      %p241 = scmp.ne.s32.totalorder %s232, %s233
      %p242 = scmp.eq.s32.totalorder %s33, 0
      %p243 = por %p241, %p242
      %p244 = scmp.ne.s32.totalorder %s232, %s233
      %p245 = scmp.eq.s32.totalorder %s34, 1
      %p246 = por %p244, %p245
      %p248 = scmp.ne.s32.totalorder %s233, %s247
      %p249 = scmp.eq.s32.totalorder %s34, 0
      %p250 = por %p248, %p249
      %s252 = sadd.s32 %s251, 1
      %p255 = scmp.eq.s32.totalorder %s28, 1
      %p256 = scmp.ne.s32.totalorder %s251, %s253
      %p257 = scmp.eq.s32.totalorder %s28, 0
      %p258 = por %p256, %p257
      %p259 = scmp.ne.s32.totalorder %s251, %s253
      %p260 = scmp.eq.s32.totalorder %s33, 1
      %p261 = por %p259, %p260
      %p262 = scmp.ne.s32.totalorder %s253, %s254
      %p263 = scmp.eq.s32.totalorder %s33, 0
      %p264 = por %p262, %p263
      %p265 = scmp.ne.s32.totalorder %s253, %s254
      %p266 = scmp.eq.s32.totalorder %s34, 1
      %p267 = por %p265, %p266
      %p269 = scmp.ne.s32.totalorder %s254, %s268
      %p270 = scmp.eq.s32.totalorder %s34, 0
      %p271 = por %p269, %p270
      %s273 = sadd.s32 %s272, 1
      %p276 = scmp.eq.s32.totalorder %s28, 1
      %p277 = scmp.ne.s32.totalorder %s272, %s274
      %p278 = scmp.eq.s32.totalorder %s28, 0
      %p279 = por %p277, %p278
      %p280 = scmp.ne.s32.totalorder %s272, %s274
      %p281 = scmp.eq.s32.totalorder %s33, 1
      %p282 = por %p280, %p281
      %p283 = scmp.ne.s32.totalorder %s274, %s275
      %p284 = scmp.eq.s32.totalorder %s33, 0
      %p285 = por %p283, %p284
      %p286 = scmp.ne.s32.totalorder %s274, %s275
      %p287 = scmp.eq.s32.totalorder %s34, 1
      %p288 = por %p286, %p287
      %p290 = scmp.ne.s32.totalorder %s275, %s289
      %p291 = scmp.eq.s32.totalorder %s34, 0
      %p292 = por %p290, %p291
      %s294 = sadd.s32 %s293, 1
      %p297 = scmp.eq.s32.totalorder %s28, 1
      %p298 = scmp.ne.s32.totalorder %s293, %s295
      %p299 = scmp.eq.s32.totalorder %s28, 0
      %p300 = por %p298, %p299
      %p301 = scmp.ne.s32.totalorder %s293, %s295
      %p302 = scmp.eq.s32.totalorder %s33, 1
      %p303 = por %p301, %p302
      %p304 = scmp.ne.s32.totalorder %s295, %s296
      %p305 = scmp.eq.s32.totalorder %s33, 0
      %p306 = por %p304, %p305
      %p307 = scmp.ne.s32.totalorder %s295, %s296
      %p308 = scmp.eq.s32.totalorder %s34, 1
      %p309 = por %p307, %p308
      %p311 = scmp.ne.s32.totalorder %s296, %s310
      %p312 = scmp.eq.s32.totalorder %s34, 0
      %p313 = por %p311, %p312
      %s315 = sadd.s32 %s314, 1
      %p318 = scmp.eq.s32.totalorder %s28, 1
      %p319 = scmp.ne.s32.totalorder %s314, %s316
      %p320 = scmp.eq.s32.totalorder %s28, 0
      %p321 = por %p319, %p320
      %p322 = scmp.ne.s32.totalorder %s314, %s316
      %p323 = scmp.eq.s32.totalorder %s33, 1
      %p324 = por %p322, %p323
      %p325 = scmp.ne.s32.totalorder %s316, %s317
      %p326 = scmp.eq.s32.totalorder %s33, 0
      %p327 = por %p325, %p326
      %p328 = scmp.ne.s32.totalorder %s316, %s317
      %p329 = scmp.eq.s32.totalorder %s34, 1
      %p330 = por %p328, %p329
      %p332 = scmp.ne.s32.totalorder %s317, %s331
      %p333 = scmp.eq.s32.totalorder %s34, 0
      %p334 = por %p332, %p333
      %s336 = sadd.s32 %s335, 1
      %p339 = scmp.eq.s32.totalorder %s28, 1
      %p340 = scmp.ne.s32.totalorder %s335, %s337
      %p341 = scmp.eq.s32.totalorder %s28, 0
      %p342 = por %p340, %p341
      %p343 = scmp.ne.s32.totalorder %s335, %s337
      %p344 = scmp.eq.s32.totalorder %s33, 1
      %p345 = por %p343, %p344
      %p346 = scmp.ne.s32.totalorder %s337, %s338
      %p347 = scmp.eq.s32.totalorder %s33, 0
      %p348 = por %p346, %p347
      %p349 = scmp.ne.s32.totalorder %s337, %s338
      %p350 = scmp.eq.s32.totalorder %s34, 1
      %p351 = por %p349, %p350
      %p353 = scmp.ne.s32.totalorder %s338, %s352
      %p354 = scmp.eq.s32.totalorder %s34, 0
      %p355 = por %p353, %p354
      %s357 = sadd.s32 %s356, 1
      %p360 = scmp.eq.s32.totalorder %s28, 1
      %p361 = scmp.ne.s32.totalorder %s356, %s358
      %p362 = scmp.eq.s32.totalorder %s28, 0
      %p363 = por %p361, %p362
      %p364 = scmp.ne.s32.totalorder %s356, %s358
      %p365 = scmp.eq.s32.totalorder %s33, 1
      %p366 = por %p364, %p365
      %p367 = scmp.ne.s32.totalorder %s358, %s359
      %p368 = scmp.eq.s32.totalorder %s33, 0
      %p369 = por %p367, %p368
      %p370 = scmp.ne.s32.totalorder %s358, %s359
      %p371 = scmp.eq.s32.totalorder %s34, 1
      %p372 = por %p370, %p371
      %p374 = scmp.ne.s32.totalorder %s359, %s373
      %p375 = scmp.eq.s32.totalorder %s34, 0
      %p376 = por %p374, %p375
      %s378 = sadd.s32 %s377, 1
      %p381 = scmp.eq.s32.totalorder %s28, 1
      %p382 = scmp.ne.s32.totalorder %s377, %s379
      %p383 = scmp.eq.s32.totalorder %s28, 0
      %p384 = por %p382, %p383
      %p385 = scmp.ne.s32.totalorder %s377, %s379
      %p386 = scmp.eq.s32.totalorder %s33, 1
      %p387 = por %p385, %p386
      %p388 = scmp.ne.s32.totalorder %s379, %s380
      %p389 = scmp.eq.s32.totalorder %s33, 0
      %p390 = por %p388, %p389
      %p391 = scmp.ne.s32.totalorder %s379, %s380
      %p392 = scmp.eq.s32.totalorder %s34, 1
      %p393 = por %p391, %p392
      %p395 = scmp.ne.s32.totalorder %s380, %s394
      %p396 = scmp.eq.s32.totalorder %s34, 0
      %p397 = por %p395, %p396
      %s399 = sadd.s32 %s398, 1
      %p402 = scmp.eq.s32.totalorder %s28, 1
      %p403 = scmp.ne.s32.totalorder %s398, %s400
      %p404 = scmp.eq.s32.totalorder %s28, 0
      %p405 = por %p403, %p404
      %p406 = scmp.ne.s32.totalorder %s398, %s400
      %p407 = scmp.eq.s32.totalorder %s33, 1
      %p408 = por %p406, %p407
      %p409 = scmp.ne.s32.totalorder %s400, %s401
      %p410 = scmp.eq.s32.totalorder %s33, 0
      %p411 = por %p409, %p410
      %p412 = scmp.ne.s32.totalorder %s400, %s401
      %p413 = scmp.eq.s32.totalorder %s34, 1
      %p414 = por %p412, %p413
      %p416 = scmp.ne.s32.totalorder %s401, %s415
      %p417 = scmp.eq.s32.totalorder %s34, 0
      %p418 = por %p416, %p417
      %s420 = sadd.s32 %s419, 1
      %p423 = scmp.eq.s32.totalorder %s28, 1
      %p424 = scmp.ne.s32.totalorder %s419, %s421
      %p425 = scmp.eq.s32.totalorder %s28, 0
      %p426 = por %p424, %p425
      %p427 = scmp.ne.s32.totalorder %s419, %s421
      %p428 = scmp.eq.s32.totalorder %s33, 1
      %p429 = por %p427, %p428
      %p430 = scmp.ne.s32.totalorder %s421, %s422
      %p431 = scmp.eq.s32.totalorder %s33, 0
      %p432 = por %p430, %p431
      %p433 = scmp.ne.s32.totalorder %s421, %s422
      %p434 = scmp.eq.s32.totalorder %s34, 1
      %p435 = por %p433, %p434
      %p437 = scmp.ne.s32.totalorder %s422, %s436
      %p438 = scmp.eq.s32.totalorder %s34, 0
      %p439 = por %p437, %p438
      %s440 = ssub.s32 %s28, %s35
      %p441 = scmp.eq.s32.totalorder %s440, 0
      %s443 = sadd.s32 %s442, 1
      %s444 = scalar_select %p441, %s442, %s443
      %p447 = pneg %p441
      %p448 = scmp.eq.s32.totalorder %s28, 1
      %p449 = por %p447, %p448
      %p450 = scmp.ne.s32.totalorder %s442, %s445
      %p451 = scmp.eq.s32.totalorder %s28, 0
      %p452 = por %p450, %p451
      %p453 = scmp.ne.s32.totalorder %s442, %s445
      %p454 = scmp.eq.s32.totalorder %s33, 1
      %p455 = por %p453, %p454
      %p456 = scmp.ne.s32.totalorder %s445, %s446
      %p457 = scmp.eq.s32.totalorder %s33, 0
      %p458 = por %p456, %p457
      %p459 = scmp.ne.s32.totalorder %s445, %s446
      %p460 = scmp.eq.s32.totalorder %s34, 1
      %p461 = por %p459, %p460
      %p463 = scmp.ne.s32.totalorder %s446, %s462
      %p464 = scmp.eq.s32.totalorder %s34, 0
      %p465 = por %p463, %p464
      %p466 = scmp.le.s32.totalorder 1, %s28
      %p467 = scmp.lt.s32.totalorder %s28, 3
      %p468 = pnand %p466, %p467
      %p469 = pneg %p468
      // Predicated region
      $region9: #{lenet_pallas.1} parent=5 // pred_check
        _
      $region10: #{lenet_pallas.1} parent=5 // pred_check_branch
        %471 = sbr.rel (%p468) target = $region12
      $region11: #{lenet_pallas.1} parent=5 // pred_region
        %s472 = ssub.s32 %s28, 1
        // Predicated region
        $region13: #{lenet_pallas.1} parent=11 // pred_check
          %p473 = pneg %p75
        $region14: #{lenet_pallas.1} parent=11 // pred_check_branch
          %475 = sbr.rel (%p473) target = $region16
        $region15: #{lenet_pallas.1} parent=11 // pred_region
          _
        $region16: #{lenet_pallas.1} parent=11 // pred_fallthru
          _
        // Predicated region
        $region17: #{lenet_pallas.1} parent=11 // pred_check
          %p476 = pneg %p96
        $region18: #{lenet_pallas.1} parent=11 // pred_check_branch
          %478 = sbr.rel (%p476) target = $region20
        $region19: #{lenet_pallas.1} parent=11 // pred_region
          _
        $region20: #{lenet_pallas.1} parent=11 // pred_fallthru
          _
        // Predicated region
        $region21: #{lenet_pallas.1} parent=11 // pred_check
          %p479 = pneg %p117
        $region22: #{lenet_pallas.1} parent=11 // pred_check_branch
          %481 = sbr.rel (%p479) target = $region24
        $region23: #{lenet_pallas.1} parent=11 // pred_region
          _
        $region24: #{lenet_pallas.1} parent=11 // pred_fallthru
          _
        // Predicated region
        $region25: #{lenet_pallas.1} parent=11 // pred_check
          %p482 = pneg %p138
        $region26: #{lenet_pallas.1} parent=11 // pred_check_branch
          %484 = sbr.rel (%p482) target = $region28
        $region27: #{lenet_pallas.1} parent=11 // pred_region
          _
        $region28: #{lenet_pallas.1} parent=11 // pred_fallthru
          _
        // Predicated region
        $region29: #{lenet_pallas.1} parent=11 // pred_check
          %p485 = pneg %p159
        $region30: #{lenet_pallas.1} parent=11 // pred_check_branch
          %487 = sbr.rel (%p485) target = $region32
        $region31: #{lenet_pallas.1} parent=11 // pred_region
          _
        $region32: #{lenet_pallas.1} parent=11 // pred_fallthru
          _
        // Predicated region
        $region33: #{lenet_pallas.1} parent=11 // pred_check
          %p488 = pneg %p180
        $region34: #{lenet_pallas.1} parent=11 // pred_check_branch
          %490 = sbr.rel (%p488) target = $region36
        $region35: #{lenet_pallas.1} parent=11 // pred_region
          _
        $region36: #{lenet_pallas.1} parent=11 // pred_fallthru
          _
        // Predicated region
        $region37: #{lenet_pallas.1} parent=11 // pred_check
          %p491 = pneg %p201
        $region38: #{lenet_pallas.1} parent=11 // pred_check_branch
          %493 = sbr.rel (%p491) target = $region40
        $region39: #{lenet_pallas.1} parent=11 // pred_region
          _
        $region40: #{lenet_pallas.1} parent=11 // pred_fallthru
          _
        // Predicated region
        $region41: #{lenet_pallas.1} parent=11 // pred_check
          %p494 = pneg %p222
        $region42: #{lenet_pallas.1} parent=11 // pred_check_branch
          %496 = sbr.rel (%p494) target = $region44
        $region43: #{lenet_pallas.1} parent=11 // pred_region
          _
        $region44: #{lenet_pallas.1} parent=11 // pred_fallthru
          _
        // Predicated region
        $region45: #{lenet_pallas.1} parent=11 // pred_check
          %p497 = pneg %p243
        $region46: #{lenet_pallas.1} parent=11 // pred_check_branch
          %499 = sbr.rel (%p497) target = $region48
        $region47: #{lenet_pallas.1} parent=11 // pred_region
          _
        $region48: #{lenet_pallas.1} parent=11 // pred_fallthru
          _
        // Predicated region
        $region49: #{lenet_pallas.1} parent=11 // pred_check
          %p500 = pneg %p264
        $region50: #{lenet_pallas.1} parent=11 // pred_check_branch
          %502 = sbr.rel (%p500) target = $region52
        $region51: #{lenet_pallas.1} parent=11 // pred_region
          _
        $region52: #{lenet_pallas.1} parent=11 // pred_fallthru
          _
        // Predicated region
        $region53: #{lenet_pallas.1} parent=11 // pred_check
          %p503 = pneg %p285
        $region54: #{lenet_pallas.1} parent=11 // pred_check_branch
          %505 = sbr.rel (%p503) target = $region56
        $region55: #{lenet_pallas.1} parent=11 // pred_region
          _
        $region56: #{lenet_pallas.1} parent=11 // pred_fallthru
          _
        // Predicated region
        $region57: #{lenet_pallas.1} parent=11 // pred_check
          %p506 = pneg %p306
        $region58: #{lenet_pallas.1} parent=11 // pred_check_branch
          %508 = sbr.rel (%p506) target = $region60
        $region59: #{lenet_pallas.1} parent=11 // pred_region
          _
        $region60: #{lenet_pallas.1} parent=11 // pred_fallthru
          _
        // Predicated region
        $region61: #{lenet_pallas.1} parent=11 // pred_check
          %p509 = pneg %p327
        $region62: #{lenet_pallas.1} parent=11 // pred_check_branch
          %511 = sbr.rel (%p509) target = $region64
        $region63: #{lenet_pallas.1} parent=11 // pred_region
          _
        $region64: #{lenet_pallas.1} parent=11 // pred_fallthru
          _
        // Predicated region
        $region65: #{lenet_pallas.1} parent=11 // pred_check
          %p512 = pneg %p348
        $region66: #{lenet_pallas.1} parent=11 // pred_check_branch
          %514 = sbr.rel (%p512) target = $region68
        $region67: #{lenet_pallas.1} parent=11 // pred_region
          _
        $region68: #{lenet_pallas.1} parent=11 // pred_fallthru
          _
        // Predicated region
        $region69: #{lenet_pallas.1} parent=11 // pred_check
          %p515 = pneg %p369
        $region70: #{lenet_pallas.1} parent=11 // pred_check_branch
          %517 = sbr.rel (%p515) target = $region72
        $region71: #{lenet_pallas.1} parent=11 // pred_region
          _
        $region72: #{lenet_pallas.1} parent=11 // pred_fallthru
          _
        // Predicated region
        $region73: #{lenet_pallas.1} parent=11 // pred_check
          %p518 = pneg %p390
        $region74: #{lenet_pallas.1} parent=11 // pred_check_branch
          %520 = sbr.rel (%p518) target = $region76
        $region75: #{lenet_pallas.1} parent=11 // pred_region
          _
        $region76: #{lenet_pallas.1} parent=11 // pred_fallthru
          _
        // Predicated region
        $region77: #{lenet_pallas.1} parent=11 // pred_check
          %p521 = pneg %p411
        $region78: #{lenet_pallas.1} parent=11 // pred_check_branch
          %523 = sbr.rel (%p521) target = $region80
        $region79: #{lenet_pallas.1} parent=11 // pred_region
          _
        $region80: #{lenet_pallas.1} parent=11 // pred_fallthru
          _
        // Predicated region
        $region81: #{lenet_pallas.1} parent=11 // pred_check
          %p524 = pneg %p432
        $region82: #{lenet_pallas.1} parent=11 // pred_check_branch
          %526 = sbr.rel (%p524) target = $region84
        $region83: #{lenet_pallas.1} parent=11 // pred_region
          _
        $region84: #{lenet_pallas.1} parent=11 // pred_fallthru
          _
      $region12: #{lenet_pallas.1} parent=5 // pred_fallthru
        _
      %p527 = scmp.lt.s32.totalorder %s28, 2
      // Predicated region
      $region85: #{lenet_pallas.1} parent=5 // pred_check
        %p528 = pneg %p527
      $region86: #{lenet_pallas.1} parent=5 // pred_check_branch
        %530 = sbr.rel (%p528) target = $region88
      $region87: #{lenet_pallas.1} parent=5 // pred_region
        // Predicated region
        $region89: #{lenet_pallas.1} parent=87 // pred_check
          %p531 = pneg %p48
        $region90: #{lenet_pallas.1} parent=87 // pred_check_branch
          %533 = sbr.rel (%p531) target = $region92
        $region91: #{lenet_pallas.1} parent=87 // pred_region
          %p534 = scmp.lt.s32.totalorder %s28, 1
          %s535 = scalar_select %p534, %s28, 1
          %s536 = smul.addr %s535, 4
          %s537 = smul.addr %s536, 8
          %s538 = scalar_lea.vmem %s0, %s537
        $region92: #{lenet_pallas.1} parent=87 // pred_fallthru
          _
      $region88: #{lenet_pallas.1} parent=5 // pred_fallthru
        _
      %p539 = scmp.le.s32.totalorder 1, %s28
      %p540 = scmp.lt.s32.totalorder %s28, 3
      %p541 = pnand %p539, %p540
      %p542 = pneg %p541
      // Predicated region
      $region93: #{lenet_pallas.1} parent=5 // pred_check
        _
      $region94: #{lenet_pallas.1} parent=5 // pred_check_branch
        %544 = sbr.rel (%p541) target = $region96
      $region95: #{lenet_pallas.1} parent=5 // pred_region
        %s545 = ssub.s32 %s28, 1
        %p546 = scmp.lt.s32.totalorder %s33, 1
        %s547 = scalar_select %p546, %s33, 1
        %s548 = smul.addr %s547, 4
        %s549 = smul.addr %s548, 8
        %s550 = scalar_lea.vmem %s0, %s549
        %p551 = pneg %p54
        %p552 = pneg %p51
        %p553 = pneg %p75
        %p554 = pneg %p72
        %p555 = pneg %p96
        %p556 = pneg %p93
        %p557 = pneg %p117
        %p558 = pneg %p114
        %p559 = pneg %p138
        %p560 = pneg %p135
        %p561 = pneg %p159
        %p562 = pneg %p156
        %p563 = pneg %p180
        %p564 = pneg %p177
        %p565 = pneg %p201
        %p566 = pneg %p198
        %p567 = pneg %p222
        %p568 = pneg %p219
        %p569 = pneg %p243
        %p570 = pneg %p240
        %p571 = pneg %p264
        %p572 = pneg %p261
        %p573 = pneg %p285
        %p574 = pneg %p282
        %p575 = pneg %p306
        %p576 = pneg %p303
        %p577 = pneg %p327
        %p578 = pneg %p324
        %p579 = pneg %p348
        %p580 = pneg %p345
        %p581 = pneg %p369
        %p582 = pneg %p366
        %p583 = pneg %p390
        %p584 = pneg %p387
        %p585 = pneg %p411
        %p586 = pneg %p408
        %p587 = pneg %p432
        %p588 = pneg %p429
        %p589 = pneg %p458
        %p590 = pneg %p455
        %s591 = sand.u32 %s445, 1
        %s592 = scalar_lea.sflag [#allocation3], %s591
        %s593 = sand.u32 %s445, 1
        %s594 = scalar_lea.vmem [#allocation2], %s593
        %p595 = scmp.lt.s32.totalorder %s33, 1
        %s596 = scalar_select %p595, %s33, 1
        %s597 = smul.addr %s596, 4
        %s598 = smul.addr %s597, 8
        %s599 = scalar_lea.vmem %s0, %s598
        %v600 = vld [vmem:[%s599] sm:$0xff]
        %v601 = vld [vmem:[%s599 + $0x8] sm:$0xff]
        %v602 = vld [vmem:[%s599 + $0x10] sm:$0xff]
        %v603 = vld [vmem:[%s599 + $0x18] sm:$0xff]
        %v604 = vld [vmem:[%s1] sm:$0xff]
        %v605 = vld [vmem:[%s1 + $0x8] sm:$0xff]
        %v606 = vld [vmem:[%s1 + $0x10] sm:$0xff]
        %v607 = vld [vmem:[%s1 + $0x18] sm:$0xff]
        %v608 = vld [vmem:[%s1 + $0x20] sm:$0xff]
        %v609 = vld [vmem:[%s1 + $0x28] sm:$0xff]
        %v610 = vld [vmem:[%s1 + $0x30] sm:$0xff]
        %v611 = vld [vmem:[%s1 + $0x38] sm:$0xff]
        %s612 = scalar_lea.vmem %s1, 64
        %v613 = vld [vmem:[%s612] sm:$0xff]
        %v614 = vld [vmem:[%s612 + $0x8] sm:$0xff]
        %v615 = vld [vmem:[%s612 + $0x10] sm:$0xff]
        %v616 = vld [vmem:[%s612 + $0x18] sm:$0xff]
        %v617 = vld [vmem:[%s612 + $0x20] sm:$0xff]
        %v618 = vld [vmem:[%s612 + $0x28] sm:$0xff]
        %v619 = vld [vmem:[%s612 + $0x30] sm:$0xff]
        %v620 = vld [vmem:[%s612 + $0x38] sm:$0xff]
        %vm625 = vcmask 1046528
        %v626 = vrot.slane %v600, 1
        %v627 = vrot.slane %v601, 1
        %v628 = vsel %vm625, %v626, %v627
        %v629 = vrot.slane %v602, 1
        %v630 = vsel %vm625, %v627, %v629
        %v631 = vrot.slane %v603, 1
        %v632 = vsel %vm625, %v629, %v631
        %vm633 = vcmask 261120
        %v634 = vsel %vm633, %v628, 0
        %v636 = vsel %vm633, %v630, 0
        %v638 = vsel %vm633, %v632, 0
        %v640 = vsel %vm633, %v631, 0
        %642 = vmatprep.subr.mxu0 %v614
        %643 = vmatpush1.msra.mxu0 %v613
        %644 = vmatprep.subr.mxu0 %v616
        %645 = vmatpush1.msra.mxu0 %v615
        %646 = vmatprep.subr.mxu0 %v618
        %647 = vmatpush1.msra.mxu0 %v617
        %648 = vmatprep.subr.mxu0 %v620
        %649 = vmatpush1.msra.mxu0 %v619
        %650 = vmatprep.subr.mxu0 0.0
        %651 = vmatpush1.msra.mxu0 0.0
        %652 = vmatprep.subr.mxu0 0.0
        %653 = vmatpush1.msra.mxu0 0.0
        %654 = vmatprep.subr.mxu0 0.0
        %655 = vmatpush1.msra.mxu0 0.0
        %656 = vmatprep.subr.mxu0 0.0
        %657 = vmatpush1.msra.mxu0 0.0
        %658 = vmatprep.subr.mxu0 0.0
        %659 = vmatpush1.msra.mxu0 0.0
        %660 = vmatprep.subr.mxu0 0.0
        %661 = vmatpush1.msra.mxu0 0.0
        %662 = vmatprep.subr.mxu0 0.0
        %663 = vmatpush1.msra.mxu0 0.0
        %664 = vmatprep.subr.mxu0 0.0
        %665 = vmatpush1.msra.mxu0 0.0
        %666 = vmatprep.subr.mxu0 0.0
        %667 = vmatpush1.msra.mxu0 0.0
        %668 = vmatprep.subr.mxu0 0.0
        %669 = vmatpush1.msra.mxu0 0.0
        %670 = vmatprep.subr.mxu0 0.0
        %671 = vmatpush1.msra.mxu0 0.0
        %672 = vmatprep.subr.mxu0 0.0
        %673 = vmatpush1.msra.mxu0 0.0
        %674 = vmatprep.subr.mxu0 0.0
        %675 = vmatpush1.msra.mxu0 0.0
        %676 = vmatprep.subr.mxu0 0.0
        %677 = vmatpush1.msra.mxu0 0.0
        %678 = vmatprep.subr.mxu0 0.0
        %679 = vmatpush1.msra.mxu0 0.0
        %680 = vmatprep.subr.mxu0 0.0
        %681 = vmatpush1.msra.mxu0 0.0
        %682 = vmatprep.subr.mxu0 0.0
        %683 = vmatpush1.msra.mxu0 0.0
        %684 = vmatprep.subr.mxu0 0.0
        %685 = vmatpush1.msra.mxu0 0.0
        %686 = vmatprep.subr.mxu0 0.0
        %687 = vmatpush1.msra.mxu0 0.0
        %688 = vmatprep.subr.mxu0 0.0
        %689 = vmatpush1.msra.mxu0 0.0
        %690 = vmatprep.subr.mxu0 0.0
        %691 = vmatpush1.msra.mxu0 0.0
        %692 = vmatprep.subr.mxu0 0.0
        %693 = vmatpush1.msra.mxu0 0.0
        %694 = vmatprep.subr.mxu0 0.0
        %695 = vmatpush1.msra.mxu0 0.0
        %696 = vmatprep.subr.mxu0 0.0
        %697 = vmatpush1.msra.mxu0 0.0
        %698 = vmatprep.subr.mxu0 0.0
        %699 = vmatpush1.msra.mxu0 0.0
        %700 = vmatprep.subr.mxu0 0.0
        %701 = vmatpush1.msra.mxu0 0.0
        %702 = vmatprep.subr.mxu0 0.0
        %703 = vmatpush1.msra.mxu0 0.0
        %704 = vmatprep.subr.mxu0 0.0
        %705 = vmatpush1.msra.mxu0 0.0
        %706 = vmatprep.mubr.f32.mxu0 0.0
        %707 = vmatmul.mubr.f32.gmra.mrb[0].mxu0 %v634
        %v708 = vpop.f32.mrb[0].mxu0
        %v709 = vadd.f32 0.0, %v708
        %v710 = vpop.f32.mrb[0].mxu0
        %v711 = vadd.f32 0.0, %v710
        %712 = vmatprep.mubr.f32.mxu0 0.0
        %713 = vmatmul.mubr.f32.gmra.mrb[0].mxu0 %v636
        %v714 = vpop.f32.mrb[0].mxu0
        %v715 = vadd.f32 0.0, %v714
        %v716 = vpop.f32.mrb[0].mxu0
        %v717 = vadd.f32 0.0, %v716
        %718 = vmatprep.mubr.f32.mxu0 0.0
        %719 = vmatmul.mubr.f32.gmra.mrb[0].mxu0 %v638
        %v720 = vpop.f32.mrb[0].mxu0
        %v721 = vadd.f32 0.0, %v720
        %v722 = vpop.f32.mrb[0].mxu0
        %v723 = vadd.f32 0.0, %v722
        %724 = vmatprep.mubr.f32.mxu0 0.0
        %725 = vmatmul.mubr.f32.gmra.mrb[0].mxu0 %v640
        %v726 = vpop.f32.mrb[0].mxu0
        %v727 = vadd.f32 0.0, %v726
        %v728 = vpop.f32.mrb[0].mxu0
        %v729 = vadd.f32 0.0, %v728
        %730 = vdwg.mxu0
        %v731 = vsel %vm633, %v600, 0
        %v733 = vsel %vm633, %v601, 0
        %v735 = vsel %vm633, %v602, 0
        %v737 = vsel %vm633, %v603, 0
        %739 = vmatprep.subr.mxu0 %v605
        %740 = vmatpush1.msra.mxu0 %v604
        %741 = vmatprep.subr.mxu0 %v607
        %742 = vmatpush1.msra.mxu0 %v606
        %743 = vmatprep.subr.mxu0 %v609
        %744 = vmatpush1.msra.mxu0 %v608
        %745 = vmatprep.subr.mxu0 %v611
        %746 = vmatpush1.msra.mxu0 %v610
        %747 = vmatprep.subr.mxu0 0.0
        %748 = vmatpush1.msra.mxu0 0.0
        %749 = vmatprep.subr.mxu0 0.0
        %750 = vmatpush1.msra.mxu0 0.0
        %751 = vmatprep.subr.mxu0 0.0
        %752 = vmatpush1.msra.mxu0 0.0
        %753 = vmatprep.subr.mxu0 0.0
        %754 = vmatpush1.msra.mxu0 0.0
        %755 = vmatprep.subr.mxu0 0.0
        %756 = vmatpush1.msra.mxu0 0.0
        %757 = vmatprep.subr.mxu0 0.0
        %758 = vmatpush1.msra.mxu0 0.0
        %759 = vmatprep.subr.mxu0 0.0
        %760 = vmatpush1.msra.mxu0 0.0
        %761 = vmatprep.subr.mxu0 0.0
        %762 = vmatpush1.msra.mxu0 0.0
        %763 = vmatprep.subr.mxu0 0.0
        %764 = vmatpush1.msra.mxu0 0.0
        %765 = vmatprep.subr.mxu0 0.0
        %766 = vmatpush1.msra.mxu0 0.0
        %767 = vmatprep.subr.mxu0 0.0
        %768 = vmatpush1.msra.mxu0 0.0
        %769 = vmatprep.subr.mxu0 0.0
        %770 = vmatpush1.msra.mxu0 0.0
        %771 = vmatprep.subr.mxu0 0.0
        %772 = vmatpush1.msra.mxu0 0.0
        %773 = vmatprep.subr.mxu0 0.0
        %774 = vmatpush1.msra.mxu0 0.0
        %775 = vmatprep.subr.mxu0 0.0
        %776 = vmatpush1.msra.mxu0 0.0
        %777 = vmatprep.subr.mxu0 0.0
        %778 = vmatpush1.msra.mxu0 0.0
        %779 = vmatprep.subr.mxu0 0.0
        %780 = vmatpush1.msra.mxu0 0.0
        %781 = vmatprep.subr.mxu0 0.0
        %782 = vmatpush1.msra.mxu0 0.0
        %783 = vmatprep.subr.mxu0 0.0
        %784 = vmatpush1.msra.mxu0 0.0
        %785 = vmatprep.subr.mxu0 0.0
        %786 = vmatpush1.msra.mxu0 0.0
        %787 = vmatprep.subr.mxu0 0.0
        %788 = vmatpush1.msra.mxu0 0.0
        %789 = vmatprep.subr.mxu0 0.0
        %790 = vmatpush1.msra.mxu0 0.0
        %791 = vmatprep.subr.mxu0 0.0
        %792 = vmatpush1.msra.mxu0 0.0
        %793 = vmatprep.subr.mxu0 0.0
        %794 = vmatpush1.msra.mxu0 0.0
        %795 = vmatprep.subr.mxu0 0.0
        %796 = vmatpush1.msra.mxu0 0.0
        %797 = vmatprep.subr.mxu0 0.0
        %798 = vmatpush1.msra.mxu0 0.0
        %799 = vmatprep.subr.mxu0 0.0
        %800 = vmatpush1.msra.mxu0 0.0
        %801 = vmatprep.subr.mxu0 0.0
        %802 = vmatpush1.msra.mxu0 0.0
        %803 = vmatprep.mubr.f32.mxu0 0.0
        %804 = vmatmul.mubr.f32.gmra.mrb[0].mxu0 %v731
        %v805 = vpop.f32.mrb[0].mxu0
        %v806 = vadd.f32 %v709, %v805
        %v807 = vpop.f32.mrb[0].mxu0
        %v808 = vadd.f32 %v711, %v807
        %809 = vmatprep.mubr.f32.mxu0 0.0
        %810 = vmatmul.mubr.f32.gmra.mrb[0].mxu0 %v733
        %v811 = vpop.f32.mrb[0].mxu0
        %v812 = vadd.f32 %v715, %v811
        %v813 = vpop.f32.mrb[0].mxu0
        %v814 = vadd.f32 %v717, %v813
        %815 = vmatprep.mubr.f32.mxu0 0.0
        %816 = vmatmul.mubr.f32.gmra.mrb[0].mxu0 %v735
        %v817 = vpop.f32.mrb[0].mxu0
        %v818 = vadd.f32 %v721, %v817
        %v819 = vpop.f32.mrb[0].mxu0
        %v820 = vadd.f32 %v723, %v819
        %821 = vmatprep.mubr.f32.mxu0 0.0
        %822 = vmatmul.mubr.f32.gmra.mrb[0].mxu0 %v737
        %v823 = vpop.f32.mrb[0].mxu0
        %v824 = vadd.f32 %v727, %v823
        %v825 = vpop.f32.mrb[0].mxu0
        %v826 = vadd.f32 %v729, %v825
        %827 = vdwg.mxu0
        %s828 = scalar_lea.vmem %s1, 128
        %v829 = vld [vmem:[%s828] sm:$0xff]
        %v830 = vld [vmem:[%s828 + $0x8] sm:$0xff]
        %v831 = vld [vmem:[%s828 + $0x10] sm:$0xff]
        %v832 = vld [vmem:[%s828 + $0x18] sm:$0xff]
        %v833 = vld [vmem:[%s828 + $0x20] sm:$0xff]
        %v834 = vld [vmem:[%s828 + $0x28] sm:$0xff]
        %v835 = vld [vmem:[%s828 + $0x30] sm:$0xff]
        %v836 = vld [vmem:[%s828 + $0x38] sm:$0xff]
        %vm837 = vcmask 1045504
        %v838 = vrot.slane %v600, 2
        %v839 = vrot.slane %v601, 2
        %v840 = vsel %vm837, %v838, %v839
        %v841 = vrot.slane %v602, 2
        %v842 = vsel %vm837, %v839, %v841
        %v843 = vrot.slane %v603, 2
        %v844 = vsel %vm837, %v841, %v843
        %v845 = vsel %vm633, %v840, 0
        %v847 = vsel %vm633, %v842, 0
        %v849 = vsel %vm633, %v844, 0
        %v851 = vsel %vm633, %v843, 0
        %853 = vmatprep.subr.mxu0 %v830
        %854 = vmatpush1.msra.mxu0 %v829
        %855 = vmatprep.subr.mxu0 %v832
        %856 = vmatpush1.msra.mxu0 %v831
        %857 = vmatprep.subr.mxu0 %v834
        %858 = vmatpush1.msra.mxu0 %v833
        %859 = vmatprep.subr.mxu0 %v836
        %860 = vmatpush1.msra.mxu0 %v835
        %861 = vmatprep.subr.mxu0 0.0
        %862 = vmatpush1.msra.mxu0 0.0
        %863 = vmatprep.subr.mxu0 0.0
        %864 = vmatpush1.msra.mxu0 0.0
        %865 = vmatprep.subr.mxu0 0.0
        %866 = vmatpush1.msra.mxu0 0.0
        %867 = vmatprep.subr.mxu0 0.0
        %868 = vmatpush1.msra.mxu0 0.0
        %869 = vmatprep.subr.mxu0 0.0
        %870 = vmatpush1.msra.mxu0 0.0
        %871 = vmatprep.subr.mxu0 0.0
        %872 = vmatpush1.msra.mxu0 0.0
        %873 = vmatprep.subr.mxu0 0.0
        %874 = vmatpush1.msra.mxu0 0.0
        %875 = vmatprep.subr.mxu0 0.0
        %876 = vmatpush1.msra.mxu0 0.0
        %877 = vmatprep.subr.mxu0 0.0
        %878 = vmatpush1.msra.mxu0 0.0
        %879 = vmatprep.subr.mxu0 0.0
        %880 = vmatpush1.msra.mxu0 0.0
        %881 = vmatprep.subr.mxu0 0.0
        %882 = vmatpush1.msra.mxu0 0.0
        %883 = vmatprep.subr.mxu0 0.0
        %884 = vmatpush1.msra.mxu0 0.0
        %885 = vmatprep.subr.mxu0 0.0
        %886 = vmatpush1.msra.mxu0 0.0
        %887 = vmatprep.subr.mxu0 0.0
        %888 = vmatpush1.msra.mxu0 0.0
        %889 = vmatprep.subr.mxu0 0.0
        %890 = vmatpush1.msra.mxu0 0.0
        %891 = vmatprep.subr.mxu0 0.0
        %892 = vmatpush1.msra.mxu0 0.0
        %893 = vmatprep.subr.mxu0 0.0
        %894 = vmatpush1.msra.mxu0 0.0
        %895 = vmatprep.subr.mxu0 0.0
        %896 = vmatpush1.msra.mxu0 0.0
        %897 = vmatprep.subr.mxu0 0.0
        %898 = vmatpush1.msra.mxu0 0.0
        %899 = vmatprep.subr.mxu0 0.0
        %900 = vmatpush1.msra.mxu0 0.0
        %901 = vmatprep.subr.mxu0 0.0
        %902 = vmatpush1.msra.mxu0 0.0
        %903 = vmatprep.subr.mxu0 0.0
        %904 = vmatpush1.msra.mxu0 0.0
        %905 = vmatprep.subr.mxu0 0.0
        %906 = vmatpush1.msra.mxu0 0.0
        %907 = vmatprep.subr.mxu0 0.0
        %908 = vmatpush1.msra.mxu0 0.0
        %909 = vmatprep.subr.mxu0 0.0
        %910 = vmatpush1.msra.mxu0 0.0
        %911 = vmatprep.subr.mxu0 0.0
        %912 = vmatpush1.msra.mxu0 0.0
        %913 = vmatprep.subr.mxu0 0.0
        %914 = vmatpush1.msra.mxu0 0.0
        %915 = vmatprep.subr.mxu0 0.0
        %916 = vmatpush1.msra.mxu0 0.0
        %917 = vmatprep.mubr.f32.mxu0 0.0
        %918 = vmatmul.mubr.f32.gmra.mrb[0].mxu0 %v845
        %v919 = vpop.f32.mrb[0].mxu0
        %v920 = vadd.f32 0.0, %v919
        %v921 = vpop.f32.mrb[0].mxu0
        %v922 = vadd.f32 0.0, %v921
        %923 = vmatprep.mubr.f32.mxu0 0.0
        %924 = vmatmul.mubr.f32.gmra.mrb[0].mxu0 %v847
        %v925 = vpop.f32.mrb[0].mxu0
        %v926 = vadd.f32 0.0, %v925
        %v927 = vpop.f32.mrb[0].mxu0
        %v928 = vadd.f32 0.0, %v927
        %929 = vmatprep.mubr.f32.mxu0 0.0
        %930 = vmatmul.mubr.f32.gmra.mrb[0].mxu0 %v849
        %v931 = vpop.f32.mrb[0].mxu0
        %v932 = vadd.f32 0.0, %v931
        %v933 = vpop.f32.mrb[0].mxu0
        %v934 = vadd.f32 0.0, %v933
        %935 = vmatprep.mubr.f32.mxu0 0.0
        %936 = vmatmul.mubr.f32.gmra.mrb[0].mxu0 %v851
        %v937 = vpop.f32.mrb[0].mxu0
        %v938 = vadd.f32 0.0, %v937
        %v939 = vpop.f32.mrb[0].mxu0
        %v940 = vadd.f32 0.0, %v939
        %941 = vdwg.mxu0
        %v942 = vadd.f32 %v806, %v920
        %v943 = vadd.f32 %v808, %v922
        %v944 = vadd.f32 %v812, %v926
        %v945 = vadd.f32 %v814, %v928
        %v946 = vadd.f32 %v818, %v932
        %v947 = vadd.f32 %v820, %v934
        %v948 = vadd.f32 %v824, %v938
        %v949 = vadd.f32 %v826, %v940
        %s950 = scalar_lea.vmem %s1, 192
        %v951 = vld [vmem:[%s950] sm:$0xff]
        %v952 = vld [vmem:[%s950 + $0x8] sm:$0xff]
        %v953 = vld [vmem:[%s950 + $0x10] sm:$0xff]
        %v954 = vld [vmem:[%s950 + $0x18] sm:$0xff]
        %v955 = vld [vmem:[%s950 + $0x20] sm:$0xff]
        %v956 = vld [vmem:[%s950 + $0x28] sm:$0xff]
        %v957 = vld [vmem:[%s950 + $0x30] sm:$0xff]
        %v958 = vld [vmem:[%s950 + $0x38] sm:$0xff]
        %vm959 = vcmask 1044480
        %v960 = vrot.slane %v600, 3
        %v961 = vrot.slane %v601, 3
        %v962 = vsel %vm959, %v960, %v961
        %v963 = vrot.slane %v602, 3
        %v964 = vsel %vm959, %v961, %v963
        %v965 = vrot.slane %v603, 3
        %v966 = vsel %vm959, %v963, %v965
        %v967 = vsel %vm633, %v962, 0
        %v969 = vsel %vm633, %v964, 0
        %v971 = vsel %vm633, %v966, 0
        %v973 = vsel %vm633, %v965, 0
        %975 = vmatprep.subr.mxu0 %v952
        %976 = vmatpush1.msra.mxu0 %v951
        %977 = vmatprep.subr.mxu0 %v954
        %978 = vmatpush1.msra.mxu0 %v953
        %979 = vmatprep.subr.mxu0 %v956
        %980 = vmatpush1.msra.mxu0 %v955
        %981 = vmatprep.subr.mxu0 %v958
        %982 = vmatpush1.msra.mxu0 %v957
        %983 = vmatprep.subr.mxu0 0.0
        %984 = vmatpush1.msra.mxu0 0.0
        %985 = vmatprep.subr.mxu0 0.0
        %986 = vmatpush1.msra.mxu0 0.0
        %987 = vmatprep.subr.mxu0 0.0
        %988 = vmatpush1.msra.mxu0 0.0
        %989 = vmatprep.subr.mxu0 0.0
        %990 = vmatpush1.msra.mxu0 0.0
        %991 = vmatprep.subr.mxu0 0.0
        %992 = vmatpush1.msra.mxu0 0.0
        %993 = vmatprep.subr.mxu0 0.0
        %994 = vmatpush1.msra.mxu0 0.0
        %995 = vmatprep.subr.mxu0 0.0
        %996 = vmatpush1.msra.mxu0 0.0
        %997 = vmatprep.subr.mxu0 0.0
        %998 = vmatpush1.msra.mxu0 0.0
        %999 = vmatprep.subr.mxu0 0.0
        %1000 = vmatpush1.msra.mxu0 0.0
        %1001 = vmatprep.subr.mxu0 0.0
        %1002 = vmatpush1.msra.mxu0 0.0
        %1003 = vmatprep.subr.mxu0 0.0
        %1004 = vmatpush1.msra.mxu0 0.0
        %1005 = vmatprep.subr.mxu0 0.0
        %1006 = vmatpush1.msra.mxu0 0.0
        %1007 = vmatprep.subr.mxu0 0.0
        %1008 = vmatpush1.msra.mxu0 0.0
        %1009 = vmatprep.subr.mxu0 0.0
        %1010 = vmatpush1.msra.mxu0 0.0
        %1011 = vmatprep.subr.mxu0 0.0
        %1012 = vmatpush1.msra.mxu0 0.0
        %1013 = vmatprep.subr.mxu0 0.0
        %1014 = vmatpush1.msra.mxu0 0.0
        %1015 = vmatprep.subr.mxu0 0.0
        %1016 = vmatpush1.msra.mxu0 0.0
        %1017 = vmatprep.subr.mxu0 0.0
        %1018 = vmatpush1.msra.mxu0 0.0
        %1019 = vmatprep.subr.mxu0 0.0
        %1020 = vmatpush1.msra.mxu0 0.0
        %1021 = vmatprep.subr.mxu0 0.0
        %1022 = vmatpush1.msra.mxu0 0.0
        %1023 = vmatprep.subr.mxu0 0.0
        %1024 = vmatpush1.msra.mxu0 0.0
        %1025 = vmatprep.subr.mxu0 0.0
        %1026 = vmatpush1.msra.mxu0 0.0
        %1027 = vmatprep.subr.mxu0 0.0
        %1028 = vmatpush1.msra.mxu0 0.0
        %1029 = vmatprep.subr.mxu0 0.0
        %1030 = vmatpush1.msra.mxu0 0.0
        %1031 = vmatprep.subr.mxu0 0.0
        %1032 = vmatpush1.msra.mxu0 0.0
        %1033 = vmatprep.subr.mxu0 0.0
        %1034 = vmatpush1.msra.mxu0 0.0
        %1035 = vmatprep.subr.mxu0 0.0
        %1036 = vmatpush1.msra.mxu0 0.0
        %1037 = vmatprep.subr.mxu0 0.0
        %1038 = vmatpush1.msra.mxu0 0.0
        %1039 = vmatprep.mubr.f32.mxu0 0.0
        %1040 = vmatmul.mubr.f32.gmra.mrb[0].mxu0 %v967
        %v1041 = vpop.f32.mrb[0].mxu0
        %v1042 = vadd.f32 0.0, %v1041
        %v1043 = vpop.f32.mrb[0].mxu0
        %v1044 = vadd.f32 0.0, %v1043
        %1045 = vmatprep.mubr.f32.mxu0 0.0
        %1046 = vmatmul.mubr.f32.gmra.mrb[0].mxu0 %v969
        %v1047 = vpop.f32.mrb[0].mxu0
        %v1048 = vadd.f32 0.0, %v1047
        %v1049 = vpop.f32.mrb[0].mxu0
        %v1050 = vadd.f32 0.0, %v1049
        %1051 = vmatprep.mubr.f32.mxu0 0.0
        %1052 = vmatmul.mubr.f32.gmra.mrb[0].mxu0 %v971
        %v1053 = vpop.f32.mrb[0].mxu0
        %v1054 = vadd.f32 0.0, %v1053
        %v1055 = vpop.f32.mrb[0].mxu0
        %v1056 = vadd.f32 0.0, %v1055
        %1057 = vmatprep.mubr.f32.mxu0 0.0
        %1058 = vmatmul.mubr.f32.gmra.mrb[0].mxu0 %v973
        %v1059 = vpop.f32.mrb[0].mxu0
        %v1060 = vadd.f32 0.0, %v1059
        %v1061 = vpop.f32.mrb[0].mxu0
        %v1062 = vadd.f32 0.0, %v1061
        %1063 = vdwg.mxu0
        %v1064 = vadd.f32 %v942, %v1042
        %v1065 = vadd.f32 %v943, %v1044
        %v1066 = vadd.f32 %v944, %v1048
        %v1067 = vadd.f32 %v945, %v1050
        %v1068 = vadd.f32 %v946, %v1054
        %v1069 = vadd.f32 %v947, %v1056
        %v1070 = vadd.f32 %v948, %v1060
        %v1071 = vadd.f32 %v949, %v1062
        %s1072 = scalar_lea.vmem %s1, 256
        %v1073 = vld [vmem:[%s1072] sm:$0xff]
        %v1074 = vld [vmem:[%s1072 + $0x8] sm:$0xff]
        %v1075 = vld [vmem:[%s1072 + $0x10] sm:$0xff]
        %v1076 = vld [vmem:[%s1072 + $0x18] sm:$0xff]
        %v1077 = vld [vmem:[%s1072 + $0x20] sm:$0xff]
        %v1078 = vld [vmem:[%s1072 + $0x28] sm:$0xff]
        %v1079 = vld [vmem:[%s1072 + $0x30] sm:$0xff]
        %v1080 = vld [vmem:[%s1072 + $0x38] sm:$0xff]
        %vm1081 = vcmask 1043456
        %v1082 = vrot.slane %v600, 4
        %v1083 = vrot.slane %v601, 4
        %v1084 = vsel %vm1081, %v1082, %v1083
        %v1085 = vrot.slane %v602, 4
        %v1086 = vsel %vm1081, %v1083, %v1085
        %v1087 = vrot.slane %v603, 4
        %v1088 = vsel %vm1081, %v1085, %v1087
        %v1089 = vsel %vm633, %v1084, 0
        %v1091 = vsel %vm633, %v1086, 0
        %v1093 = vsel %vm633, %v1088, 0
        %v1095 = vsel %vm633, %v1087, 0
        %1097 = vmatprep.subr.mxu0 %v1074
        %1098 = vmatpush1.msra.mxu0 %v1073
        %1099 = vmatprep.subr.mxu0 %v1076
        %1100 = vmatpush1.msra.mxu0 %v1075
        %1101 = vmatprep.subr.mxu0 %v1078
        %1102 = vmatpush1.msra.mxu0 %v1077
        %1103 = vmatprep.subr.mxu0 %v1080
        %1104 = vmatpush1.msra.mxu0 %v1079
        %1105 = vmatprep.subr.mxu0 0.0
        %1106 = vmatpush1.msra.mxu0 0.0
        %1107 = vmatprep.subr.mxu0 0.0
        %1108 = vmatpush1.msra.mxu0 0.0
        %1109 = vmatprep.subr.mxu0 0.0
        %1110 = vmatpush1.msra.mxu0 0.0
        %1111 = vmatprep.subr.mxu0 0.0
        %1112 = vmatpush1.msra.mxu0 0.0
        %1113 = vmatprep.subr.mxu0 0.0
        %1114 = vmatpush1.msra.mxu0 0.0
        %1115 = vmatprep.subr.mxu0 0.0
        %1116 = vmatpush1.msra.mxu0 0.0
        %1117 = vmatprep.subr.mxu0 0.0
        %1118 = vmatpush1.msra.mxu0 0.0
        %1119 = vmatprep.subr.mxu0 0.0
        %1120 = vmatpush1.msra.mxu0 0.0
        %1121 = vmatprep.subr.mxu0 0.0
        %1122 = vmatpush1.msra.mxu0 0.0
        %1123 = vmatprep.subr.mxu0 0.0
        %1124 = vmatpush1.msra.mxu0 0.0
        %1125 = vmatprep.subr.mxu0 0.0
        %1126 = vmatpush1.msra.mxu0 0.0
        %1127 = vmatprep.subr.mxu0 0.0
        %1128 = vmatpush1.msra.mxu0 0.0
        %1129 = vmatprep.subr.mxu0 0.0
        %1130 = vmatpush1.msra.mxu0 0.0
        %1131 = vmatprep.subr.mxu0 0.0
        %1132 = vmatpush1.msra.mxu0 0.0
        %1133 = vmatprep.subr.mxu0 0.0
        %1134 = vmatpush1.msra.mxu0 0.0
        %1135 = vmatprep.subr.mxu0 0.0
        %1136 = vmatpush1.msra.mxu0 0.0
        %1137 = vmatprep.subr.mxu0 0.0
        %1138 = vmatpush1.msra.mxu0 0.0
        %1139 = vmatprep.subr.mxu0 0.0
        %1140 = vmatpush1.msra.mxu0 0.0
        %1141 = vmatprep.subr.mxu0 0.0
        %1142 = vmatpush1.msra.mxu0 0.0
        %1143 = vmatprep.subr.mxu0 0.0
        %1144 = vmatpush1.msra.mxu0 0.0
        %1145 = vmatprep.subr.mxu0 0.0
        %1146 = vmatpush1.msra.mxu0 0.0
        %1147 = vmatprep.subr.mxu0 0.0
        %1148 = vmatpush1.msra.mxu0 0.0
        %1149 = vmatprep.subr.mxu0 0.0
        %1150 = vmatpush1.msra.mxu0 0.0
        %1151 = vmatprep.subr.mxu0 0.0
        %1152 = vmatpush1.msra.mxu0 0.0
        %1153 = vmatprep.subr.mxu0 0.0
        %1154 = vmatpush1.msra.mxu0 0.0
        %1155 = vmatprep.subr.mxu0 0.0
        %1156 = vmatpush1.msra.mxu0 0.0
        %1157 = vmatprep.subr.mxu0 0.0
        %1158 = vmatpush1.msra.mxu0 0.0
        %1159 = vmatprep.subr.mxu0 0.0
        %1160 = vmatpush1.msra.mxu0 0.0
        %1161 = vmatprep.mubr.f32.mxu0 0.0
        %1162 = vmatmul.mubr.f32.gmra.mrb[0].mxu0 %v1089
        %v1163 = vpop.f32.mrb[0].mxu0
        %v1164 = vadd.f32 0.0, %v1163
        %v1165 = vpop.f32.mrb[0].mxu0
        %v1166 = vadd.f32 0.0, %v1165
        %1167 = vmatprep.mubr.f32.mxu0 0.0
        %1168 = vmatmul.mubr.f32.gmra.mrb[0].mxu0 %v1091
        %v1169 = vpop.f32.mrb[0].mxu0
        %v1170 = vadd.f32 0.0, %v1169
        %v1171 = vpop.f32.mrb[0].mxu0
        %v1172 = vadd.f32 0.0, %v1171
        %1173 = vmatprep.mubr.f32.mxu0 0.0
        %1174 = vmatmul.mubr.f32.gmra.mrb[0].mxu0 %v1093
        %v1175 = vpop.f32.mrb[0].mxu0
        %v1176 = vadd.f32 0.0, %v1175
        %v1177 = vpop.f32.mrb[0].mxu0
        %v1178 = vadd.f32 0.0, %v1177
        %1179 = vmatprep.mubr.f32.mxu0 0.0
        %1180 = vmatmul.mubr.f32.gmra.mrb[0].mxu0 %v1095
        %v1181 = vpop.f32.mrb[0].mxu0
        %v1182 = vadd.f32 0.0, %v1181
        %v1183 = vpop.f32.mrb[0].mxu0
        %v1184 = vadd.f32 0.0, %v1183
        %1185 = vdwg.mxu0
        %v1186 = vadd.f32 %v1064, %v1164
        %v1187 = vadd.f32 %v1065, %v1166
        %v1188 = vadd.f32 %v1066, %v1170
        %v1189 = vadd.f32 %v1067, %v1172
        %v1190 = vadd.f32 %v1068, %v1176
        %v1191 = vadd.f32 %v1069, %v1178
        %v1192 = vadd.f32 %v1070, %v1182
        %v1193 = vadd.f32 %v1071, %v1184
        %v1194 = vld [vmem:[%s2] sm:$0x3]
        %v1196 = vlaneseq
        %v1197 = vshrl.u32 %v1196, 7
        %v1198 = vsub.s32 0, %v1197
        %v1199 = vrot.slane %v1194, %v1198
        %v1200 = vlaneseq
        %v1201 = vshrl.u32 %v1200, 7
        %v1202 = vsub.s32 1, %v1201
        %v1203 = vrot.slane %v1194, %v1202
        %v1206 = vadd.f32 %v1186, %v1199
        %v1207 = vadd.f32 %v1187, %v1203
        %v1208 = vadd.f32 %v1188, %v1199
        %v1209 = vadd.f32 %v1189, %v1203
        %v1210 = vadd.f32 %v1190, %v1199
        %v1211 = vadd.f32 %v1191, %v1203
        %v1212 = vadd.f32 %v1192, %v1199
        %v1213 = vadd.f32 %v1193, %v1203
        %v1214 = vmax.f32 %v1206, 0.0
        %v1215 = vmax.f32 %v1207, 0.0
        %v1216 = vmax.f32 %v1208, 0.0
        %v1217 = vmax.f32 %v1209, 0.0
        %v1218 = vmax.f32 %v1210, 0.0
        %v1219 = vmax.f32 %v1211, 0.0
        %v1220 = vmax.f32 %v1212, 0.0
        %v1221 = vmax.f32 %v1213, 0.0
        %v1222 = vld [vmem:[%s3] sm:$0xff]
        %v1223 = vld [vmem:[%s3 + $0x8] sm:$0x3f]
        %vm1224 = vcmask 228352
        %v1226 = vsel %vm1224, %v1222, 0
        %v1229 = vsel %vm1224, %v1223, 0
        %v1232 = vsel %vm1081, %v1220, 0
        %v1235 = vsel %vm1081, %v1221, 0
        %1237 = vmatprep.subr.mxu0 %v1215
        %1238 = vmatpush1.msra.mxu0 %v1214
        %1239 = vmatprep.subr.mxu0 %v1217
        %1240 = vmatpush1.msra.mxu0 %v1216
        %1241 = vmatprep.subr.mxu0 %v1219
        %1242 = vmatpush1.msra.mxu0 %v1218
        %1243 = vmatprep.subr.mxu0 %v1235
        %1244 = vmatpush1.msra.mxu0 %v1232
        %1245 = vmatprep.subr.mxu0 0.0
        %1246 = vmatpush1.msra.mxu0 0.0
        %1247 = vmatprep.subr.mxu0 0.0
        %1248 = vmatpush1.msra.mxu0 0.0
        %1249 = vmatprep.subr.mxu0 0.0
        %1250 = vmatpush1.msra.mxu0 0.0
        %1251 = vmatprep.subr.mxu0 0.0
        %1252 = vmatpush1.msra.mxu0 0.0
        %1253 = vmatprep.subr.mxu0 0.0
        %1254 = vmatpush1.msra.mxu0 0.0
        %1255 = vmatprep.subr.mxu0 0.0
        %1256 = vmatpush1.msra.mxu0 0.0
        %1257 = vmatprep.subr.mxu0 0.0
        %1258 = vmatpush1.msra.mxu0 0.0
        %1259 = vmatprep.subr.mxu0 0.0
        %1260 = vmatpush1.msra.mxu0 0.0
        %1261 = vmatprep.subr.mxu0 0.0
        %1262 = vmatpush1.msra.mxu0 0.0
        %1263 = vmatprep.subr.mxu0 0.0
        %1264 = vmatpush1.msra.mxu0 0.0
        %1265 = vmatprep.subr.mxu0 0.0
        %1266 = vmatpush1.msra.mxu0 0.0
        %1267 = vmatprep.subr.mxu0 0.0
        %1268 = vmatpush1.msra.mxu0 0.0
        %1269 = vmatprep.subr.mxu0 0.0
        %1270 = vmatpush1.msra.mxu0 0.0
        %1271 = vmatprep.subr.mxu0 0.0
        %1272 = vmatpush1.msra.mxu0 0.0
        %1273 = vmatprep.subr.mxu0 0.0
        %1274 = vmatpush1.msra.mxu0 0.0
        %1275 = vmatprep.subr.mxu0 0.0
        %1276 = vmatpush1.msra.mxu0 0.0
        %1277 = vmatprep.subr.mxu0 0.0
        %1278 = vmatpush1.msra.mxu0 0.0
        %1279 = vmatprep.subr.mxu0 0.0
        %1280 = vmatpush1.msra.mxu0 0.0
        %1281 = vmatprep.subr.mxu0 0.0
        %1282 = vmatpush1.msra.mxu0 0.0
        %1283 = vmatprep.subr.mxu0 0.0
        %1284 = vmatpush1.msra.mxu0 0.0
        %1285 = vmatprep.subr.mxu0 0.0
        %1286 = vmatpush1.msra.mxu0 0.0
        %1287 = vmatprep.subr.mxu0 0.0
        %1288 = vmatpush1.msra.mxu0 0.0
        %1289 = vmatprep.subr.mxu0 0.0
        %1290 = vmatpush1.msra.mxu0 0.0
        %1291 = vmatprep.subr.mxu0 0.0
        %1292 = vmatpush1.msra.mxu0 0.0
        %1293 = vmatprep.subr.mxu0 0.0
        %1294 = vmatpush1.msra.mxu0 0.0
        %1295 = vmatprep.subr.mxu0 0.0
        %1296 = vmatpush1.msra.mxu0 0.0
        %1297 = vmatprep.subr.mxu0 0.0
        %1298 = vmatpush1.msra.mxu0 0.0
        %1299 = vmatprep.subr.mxu0 0.0
        %1300 = vmatpush1.msra.mxu0 0.0
        %1301 = vmatprep.mubr.f32.mxu0 0.0
        %1302 = vmatmul.mubr.f32.gmra.mrb[0].mxu0 %v1226
        %v1303 = vpop.f32.mrb[0].mxu0
        %v1304 = vadd.f32 0.0, %v1303
        %v1305 = vpop.f32.mrb[0].mxu0
        %v1306 = vadd.f32 0.0, %v1305
        %1307 = vmatprep.mubr.f32.mxu0 0.0
        %1308 = vmatmul.mubr.f32.gmra.mrb[0].mxu0 %v1229
        %v1309 = vpop.f32.mrb[0].mxu0
        %v1310 = vadd.f32 0.0, %v1309
        %v1311 = vpop.f32.mrb[0].mxu0
        %v1312 = vadd.f32 0.0, %v1311
        %1313 = vdwg.mxu0
        %v1314 = vld [vmem:[%s4] sm:$0xff]
        %v1315 = vld [vmem:[%s4 + $0x8] sm:$0x3f]
        %v1317 = vsel %vm1224, %v1314, 0
        %v1320 = vsel %vm1224, %v1315, 0
        %1322 = vmatprep.subr.mxu0 %v1215
        %1323 = vmatpush1.msra.mxu0 %v1214
        %1324 = vmatprep.subr.mxu0 %v1217
        %1325 = vmatpush1.msra.mxu0 %v1216
        %1326 = vmatprep.subr.mxu0 %v1219
        %1327 = vmatpush1.msra.mxu0 %v1218
        %1328 = vmatprep.subr.mxu0 %v1235
        %1329 = vmatpush1.msra.mxu0 %v1232
        %1330 = vmatprep.subr.mxu0 0.0
        %1331 = vmatpush1.msra.mxu0 0.0
        %1332 = vmatprep.subr.mxu0 0.0
        %1333 = vmatpush1.msra.mxu0 0.0
        %1334 = vmatprep.subr.mxu0 0.0
        %1335 = vmatpush1.msra.mxu0 0.0
        %1336 = vmatprep.subr.mxu0 0.0
        %1337 = vmatpush1.msra.mxu0 0.0
        %1338 = vmatprep.subr.mxu0 0.0
        %1339 = vmatpush1.msra.mxu0 0.0
        %1340 = vmatprep.subr.mxu0 0.0
        %1341 = vmatpush1.msra.mxu0 0.0
        %1342 = vmatprep.subr.mxu0 0.0
        %1343 = vmatpush1.msra.mxu0 0.0
        %1344 = vmatprep.subr.mxu0 0.0
        %1345 = vmatpush1.msra.mxu0 0.0
        %1346 = vmatprep.subr.mxu0 0.0
        %1347 = vmatpush1.msra.mxu0 0.0
        %1348 = vmatprep.subr.mxu0 0.0
        %1349 = vmatpush1.msra.mxu0 0.0
        %1350 = vmatprep.subr.mxu0 0.0
        %1351 = vmatpush1.msra.mxu0 0.0
        %1352 = vmatprep.subr.mxu0 0.0
        %1353 = vmatpush1.msra.mxu0 0.0
        %1354 = vmatprep.subr.mxu0 0.0
        %1355 = vmatpush1.msra.mxu0 0.0
        %1356 = vmatprep.subr.mxu0 0.0
        %1357 = vmatpush1.msra.mxu0 0.0
        %1358 = vmatprep.subr.mxu0 0.0
        %1359 = vmatpush1.msra.mxu0 0.0
        %1360 = vmatprep.subr.mxu0 0.0
        %1361 = vmatpush1.msra.mxu0 0.0
        %1362 = vmatprep.subr.mxu0 0.0
        %1363 = vmatpush1.msra.mxu0 0.0
        %1364 = vmatprep.subr.mxu0 0.0
        %1365 = vmatpush1.msra.mxu0 0.0
        %1366 = vmatprep.subr.mxu0 0.0
        %1367 = vmatpush1.msra.mxu0 0.0
        %1368 = vmatprep.subr.mxu0 0.0
        %1369 = vmatpush1.msra.mxu0 0.0
        %1370 = vmatprep.subr.mxu0 0.0
        %1371 = vmatpush1.msra.mxu0 0.0
        %1372 = vmatprep.subr.mxu0 0.0
        %1373 = vmatpush1.msra.mxu0 0.0
        %1374 = vmatprep.subr.mxu0 0.0
        %1375 = vmatpush1.msra.mxu0 0.0
        %1376 = vmatprep.subr.mxu0 0.0
        %1377 = vmatpush1.msra.mxu0 0.0
        %1378 = vmatprep.subr.mxu0 0.0
        %1379 = vmatpush1.msra.mxu0 0.0
        %1380 = vmatprep.subr.mxu0 0.0
        %1381 = vmatpush1.msra.mxu0 0.0
        %1382 = vmatprep.subr.mxu0 0.0
        %1383 = vmatpush1.msra.mxu0 0.0
        %1384 = vmatprep.subr.mxu0 0.0
        %1385 = vmatpush1.msra.mxu0 0.0
        %1386 = vmatprep.mubr.f32.mxu0 0.0
        %1387 = vmatmul.mubr.f32.gmra.mrb[0].mxu0 %v1317
        %v1388 = vpop.f32.mrb[0].mxu0
        %v1389 = vadd.f32 0.0, %v1388
        %v1390 = vpop.f32.mrb[0].mxu0
        %v1391 = vadd.f32 0.0, %v1390
        %1392 = vmatprep.mubr.f32.mxu0 0.0
        %1393 = vmatmul.mubr.f32.gmra.mrb[0].mxu0 %v1320
        %v1394 = vpop.f32.mrb[0].mxu0
        %v1395 = vadd.f32 0.0, %v1394
        %v1396 = vpop.f32.mrb[0].mxu0
        %v1397 = vadd.f32 0.0, %v1396
        %1398 = vdwg.mxu0
        %v1399 = vmax.f32 %v1304, %v1389
        %v1400 = vmax.f32 %v1306, %v1391
        %v1401 = vmax.f32 %v1310, %v1395
        %v1402 = vmax.f32 %v1312, %v1397
        %v1403 = vld [vmem:[%s5] sm:$0xff]
        %v1404 = vld [vmem:[%s5 + $0x8] sm:$0xff]
        %v1405 = vld [vmem:[%s5 + $0x10] sm:$0xff]
        %v1406 = vld [vmem:[%s5 + $0x18] sm:$0xff]
        %v1407 = vld [vmem:[%s5 + $0x20] sm:$0xff]
        %v1408 = vld [vmem:[%s5 + $0x28] sm:$0xff]
        %v1409 = vld [vmem:[%s5 + $0x30] sm:$0xff]
        %v1410 = vld [vmem:[%s5 + $0x38] sm:$0xff]
        %v1411 = vld [vmem:[%s5 + $0x40] sm:$0xff]
        %v1412 = vld [vmem:[%s5 + $0x48] sm:$0xff]
        %v1413 = vld [vmem:[%s5 + $0x50] sm:$0xff]
        %v1414 = vld [vmem:[%s5 + $0x58] sm:$0xff]
        %v1415 = vld [vmem:[%s5 + $0x60] sm:$0xff]
        %v1416 = vld [vmem:[%s5 + $0x68] sm:$0xff]
        %v1417 = vld [vmem:[%s5 + $0x70] sm:$0xff]
        %v1418 = vld [vmem:[%s5 + $0x78] sm:$0xff]
        %v1419 = vld [vmem:[%s5 + $0x80] sm:$0xff]
        %v1420 = vld [vmem:[%s5 + $0x88] sm:$0xff]
        %v1421 = vld [vmem:[%s5 + $0x90] sm:$0xff]
        %v1422 = vld [vmem:[%s5 + $0x98] sm:$0xff]
        %v1423 = vld [vmem:[%s5 + $0xa0] sm:$0xff]
        %vm1424 = vcmask 326656
        %v1426 = vsel %vm1424, %v1400, 0
        %v1429 = vsel %vm1424, %v1402, 0
        %1431 = vmatprep.subr.mxu0 0.0
        %1432 = vmatpush1.msra.mxu0 %v1403
        %1433 = vmatprep.subr.mxu0 0.0
        %1434 = vmatpush1.msra.mxu0 %v1404
        %1435 = vmatprep.subr.mxu0 0.0
        %1436 = vmatpush1.msra.mxu0 %v1405
        %1437 = vmatprep.subr.mxu0 0.0
        %1438 = vmatpush1.msra.mxu0 %v1406
        %1439 = vmatprep.subr.mxu0 0.0
        %1440 = vmatpush1.msra.mxu0 %v1407
        %1441 = vmatprep.subr.mxu0 0.0
        %1442 = vmatpush1.msra.mxu0 %v1408
        %1443 = vmatprep.subr.mxu0 0.0
        %1444 = vmatpush1.msra.mxu0 %v1409
        %1445 = vmatprep.subr.mxu0 0.0
        %1446 = vmatpush1.msra.mxu0 %v1410
        %1447 = vmatprep.subr.mxu0 0.0
        %1448 = vmatpush1.msra.mxu0 %v1411
        %1449 = vmatprep.subr.mxu0 0.0
        %1450 = vmatpush1.msra.mxu0 %v1412
        %1451 = vmatprep.subr.mxu0 0.0
        %1452 = vmatpush1.msra.mxu0 %v1413
        %1453 = vmatprep.subr.mxu0 0.0
        %1454 = vmatpush1.msra.mxu0 %v1414
        %1455 = vmatprep.subr.mxu0 0.0
        %1456 = vmatpush1.msra.mxu0 %v1415
        %1457 = vmatprep.subr.mxu0 0.0
        %1458 = vmatpush1.msra.mxu0 %v1416
        %1459 = vmatprep.subr.mxu0 0.0
        %1460 = vmatpush1.msra.mxu0 %v1417
        %1461 = vmatprep.subr.mxu0 0.0
        %1462 = vmatpush1.msra.mxu0 %v1418
        %1463 = vmatprep.subr.mxu0 0.0
        %1464 = vmatpush1.msra.mxu0 %v1419
        %1465 = vmatprep.subr.mxu0 0.0
        %1466 = vmatpush1.msra.mxu0 %v1420
        %1467 = vmatprep.subr.mxu0 0.0
        %1468 = vmatpush1.msra.mxu0 %v1421
        %1469 = vmatprep.subr.mxu0 0.0
        %1470 = vmatpush1.msra.mxu0 %v1422
        %1471 = vmatprep.subr.mxu0 0.0
        %1472 = vmatpush1.msra.mxu0 %v1423
        %1473 = vmatprep.subr.mxu0 0.0
        %1474 = vmatpush1.msra.mxu0 0.0
        %1475 = vmatprep.subr.mxu0 0.0
        %1476 = vmatpush1.msra.mxu0 0.0
        %1477 = vmatprep.subr.mxu0 0.0
        %1478 = vmatpush1.msra.mxu0 0.0
        %1479 = vmatprep.subr.mxu0 0.0
        %1480 = vmatpush1.msra.mxu0 0.0
        %1481 = vmatprep.subr.mxu0 0.0
        %1482 = vmatpush1.msra.mxu0 0.0
        %1483 = vmatprep.subr.mxu0 0.0
        %1484 = vmatpush1.msra.mxu0 0.0
        %1485 = vmatprep.subr.mxu0 0.0
        %1486 = vmatpush1.msra.mxu0 0.0
        %1487 = vmatprep.subr.mxu0 0.0
        %1488 = vmatpush1.msra.mxu0 0.0
        %1489 = vmatprep.subr.mxu0 0.0
        %1490 = vmatpush1.msra.mxu0 0.0
        %1491 = vmatprep.subr.mxu0 0.0
        %1492 = vmatpush1.msra.mxu0 0.0
        %1493 = vmatprep.subr.mxu0 0.0
        %1494 = vmatpush1.msra.mxu0 0.0
        %1495 = vmatprep.mubr.f32.mxu0 %v1426
        %1496 = vmatmul.mubr.f32.gmra.mrb[0].mxu0 %v1399
        %v1497 = vpop.f32.mrb[0].mxu0
        %v1498 = vadd.f32 0.0, %v1497
        %v1499 = vpop.f32.mrb[0].mxu0
        %1500 = vmatprep.mubr.f32.mxu0 %v1429
        %1501 = vmatmul.mubr.f32.gmra.mrb[0].mxu0 %v1401
        %v1502 = vpop.f32.mrb[0].mxu0
        %v1503 = vadd.f32 0.0, %v1502
        %v1504 = vpop.f32.mrb[0].mxu0
        %1505 = vdwg.mxu0
        %v1506 = vld [vmem:[%s6] sm:$0xff]
        %v1507 = vld [vmem:[%s6 + $0x8] sm:$0xff]
        %v1508 = vld [vmem:[%s6 + $0x10] sm:$0xff]
        %v1509 = vld [vmem:[%s6 + $0x18] sm:$0xff]
        %v1510 = vld [vmem:[%s6 + $0x20] sm:$0xff]
        %v1511 = vld [vmem:[%s6 + $0x28] sm:$0xff]
        %v1512 = vld [vmem:[%s6 + $0x30] sm:$0xff]
        %v1513 = vld [vmem:[%s6 + $0x38] sm:$0xff]
        %v1514 = vld [vmem:[%s6 + $0x40] sm:$0xff]
        %v1515 = vld [vmem:[%s6 + $0x48] sm:$0xff]
        %v1516 = vld [vmem:[%s6 + $0x50] sm:$0xff]
        %v1517 = vld [vmem:[%s6 + $0x58] sm:$0xff]
        %v1518 = vld [vmem:[%s6 + $0x60] sm:$0xff]
        %v1519 = vld [vmem:[%s6 + $0x68] sm:$0xff]
        %v1520 = vld [vmem:[%s6 + $0x70] sm:$0xff]
        %v1521 = vld [vmem:[%s6 + $0x78] sm:$0xff]
        %v1522 = vld [vmem:[%s6 + $0x80] sm:$0xff]
        %v1523 = vld [vmem:[%s6 + $0x88] sm:$0xff]
        %v1524 = vld [vmem:[%s6 + $0x90] sm:$0xff]
        %v1525 = vld [vmem:[%s6 + $0x98] sm:$0xff]
        %v1526 = vld [vmem:[%s6 + $0xa0] sm:$0xff]
        %1527 = vmatprep.subr.mxu0 0.0
        %1528 = vmatpush1.msra.mxu0 %v1506
        %1529 = vmatprep.subr.mxu0 0.0
        %1530 = vmatpush1.msra.mxu0 %v1507
        %1531 = vmatprep.subr.mxu0 0.0
        %1532 = vmatpush1.msra.mxu0 %v1508
        %1533 = vmatprep.subr.mxu0 0.0
        %1534 = vmatpush1.msra.mxu0 %v1509
        %1535 = vmatprep.subr.mxu0 0.0
        %1536 = vmatpush1.msra.mxu0 %v1510
        %1537 = vmatprep.subr.mxu0 0.0
        %1538 = vmatpush1.msra.mxu0 %v1511
        %1539 = vmatprep.subr.mxu0 0.0
        %1540 = vmatpush1.msra.mxu0 %v1512
        %1541 = vmatprep.subr.mxu0 0.0
        %1542 = vmatpush1.msra.mxu0 %v1513
        %1543 = vmatprep.subr.mxu0 0.0
        %1544 = vmatpush1.msra.mxu0 %v1514
        %1545 = vmatprep.subr.mxu0 0.0
        %1546 = vmatpush1.msra.mxu0 %v1515
        %1547 = vmatprep.subr.mxu0 0.0
        %1548 = vmatpush1.msra.mxu0 %v1516
        %1549 = vmatprep.subr.mxu0 0.0
        %1550 = vmatpush1.msra.mxu0 %v1517
        %1551 = vmatprep.subr.mxu0 0.0
        %1552 = vmatpush1.msra.mxu0 %v1518
        %1553 = vmatprep.subr.mxu0 0.0
        %1554 = vmatpush1.msra.mxu0 %v1519
        %1555 = vmatprep.subr.mxu0 0.0
        %1556 = vmatpush1.msra.mxu0 %v1520
        %1557 = vmatprep.subr.mxu0 0.0
        %1558 = vmatpush1.msra.mxu0 %v1521
        %1559 = vmatprep.subr.mxu0 0.0
        %1560 = vmatpush1.msra.mxu0 %v1522
        %1561 = vmatprep.subr.mxu0 0.0
        %1562 = vmatpush1.msra.mxu0 %v1523
        %1563 = vmatprep.subr.mxu0 0.0
        %1564 = vmatpush1.msra.mxu0 %v1524
        %1565 = vmatprep.subr.mxu0 0.0
        %1566 = vmatpush1.msra.mxu0 %v1525
        %1567 = vmatprep.subr.mxu0 0.0
        %1568 = vmatpush1.msra.mxu0 %v1526
        %1569 = vmatprep.subr.mxu0 0.0
        %1570 = vmatpush1.msra.mxu0 0.0
        %1571 = vmatprep.subr.mxu0 0.0
        %1572 = vmatpush1.msra.mxu0 0.0
        %1573 = vmatprep.subr.mxu0 0.0
        %1574 = vmatpush1.msra.mxu0 0.0
        %1575 = vmatprep.subr.mxu0 0.0
        %1576 = vmatpush1.msra.mxu0 0.0
        %1577 = vmatprep.subr.mxu0 0.0
        %1578 = vmatpush1.msra.mxu0 0.0
        %1579 = vmatprep.subr.mxu0 0.0
        %1580 = vmatpush1.msra.mxu0 0.0
        %1581 = vmatprep.subr.mxu0 0.0
        %1582 = vmatpush1.msra.mxu0 0.0
        %1583 = vmatprep.subr.mxu0 0.0
        %1584 = vmatpush1.msra.mxu0 0.0
        %1585 = vmatprep.subr.mxu0 0.0
        %1586 = vmatpush1.msra.mxu0 0.0
        %1587 = vmatprep.subr.mxu0 0.0
        %1588 = vmatpush1.msra.mxu0 0.0
        %1589 = vmatprep.subr.mxu0 0.0
        %1590 = vmatpush1.msra.mxu0 0.0
        %1591 = vmatprep.mubr.f32.mxu0 %v1426
        %1592 = vmatmul.mubr.f32.gmra.mrb[0].mxu0 %v1399
        %v1593 = vpop.f32.mrb[0].mxu0
        %v1594 = vadd.f32 0.0, %v1593
        %v1595 = vpop.f32.mrb[0].mxu0
        %1596 = vmatprep.mubr.f32.mxu0 %v1429
        %1597 = vmatmul.mubr.f32.gmra.mrb[0].mxu0 %v1401
        %v1598 = vpop.f32.mrb[0].mxu0
        %v1599 = vadd.f32 0.0, %v1598
        %v1600 = vpop.f32.mrb[0].mxu0
        %1601 = vdwg.mxu0
        %v1602 = vmax.f32 %v1498, %v1594
        %v1603 = vmax.f32 %v1503, %v1599
        %v1604 = vld [vmem:[%s7] sm:$0xff]
        %v1605 = vld [vmem:[%s7 + $0x8] sm:$0xff]
        %v1606 = vld [vmem:[%s7 + $0x10] sm:$0xff]
        %v1607 = vld [vmem:[%s7 + $0x18] sm:$0xff]
        %v1608 = vld [vmem:[%s7 + $0x20] sm:$0xff]
        %v1609 = vld [vmem:[%s7 + $0x28] sm:$0xff]
        %v1610 = vld [vmem:[%s7 + $0x30] sm:$0xff]
        %v1611 = vld [vmem:[%s7 + $0x38] sm:$0xff]
        %v1612 = vld [vmem:[%s7 + $0x40] sm:$0xff]
        %v1613 = vld [vmem:[%s7 + $0x48] sm:$0xff]
        %v1614 = vld [vmem:[%s7 + $0x50] sm:$0xff]
        %v1615 = vld [vmem:[%s7 + $0x58] sm:$0xff]
        %v1616 = vld [vmem:[%s7 + $0x60] sm:$0xff]
        %v1617 = vld [vmem:[%s7 + $0x68] sm:$0xff]
        %v1618 = vld [vmem:[%s7 + $0x70] sm:$0xff]
        %v1619 = vld [vmem:[%s7 + $0x78] sm:$0xff]
        %v1620 = vld [vmem:[%s7 + $0x80] sm:$0xff]
        %v1621 = vld [vmem:[%s7 + $0x88] sm:$0xff]
        %v1622 = vld [vmem:[%s7 + $0x90] sm:$0xff]
        %v1623 = vld [vmem:[%s7 + $0x98] sm:$0xff]
        %v1624 = vld [vmem:[%s7 + $0xa0] sm:$0xf]
        %v1625 = vld [vmem:[%s7 + $0xa8] sm:$0xf]
        %s1626 = scalar_lea.vmem %s7, 176
        %v1627 = vld [vmem:[%s1626] sm:$0xff]
        %v1628 = vld [vmem:[%s1626 + $0x8] sm:$0xff]
        %v1629 = vld [vmem:[%s1626 + $0x10] sm:$0xff]
        %v1630 = vld [vmem:[%s1626 + $0x18] sm:$0xff]
        %v1631 = vld [vmem:[%s1626 + $0x20] sm:$0xff]
        %v1632 = vld [vmem:[%s1626 + $0x28] sm:$0xff]
        %v1633 = vld [vmem:[%s1626 + $0x30] sm:$0xff]
        %v1634 = vld [vmem:[%s1626 + $0x38] sm:$0xff]
        %v1635 = vld [vmem:[%s1626 + $0x40] sm:$0xff]
        %v1636 = vld [vmem:[%s1626 + $0x48] sm:$0xff]
        %v1637 = vld [vmem:[%s1626 + $0x50] sm:$0xff]
        %v1638 = vld [vmem:[%s1626 + $0x58] sm:$0xff]
        %v1639 = vld [vmem:[%s1626 + $0x60] sm:$0xff]
        %v1640 = vld [vmem:[%s1626 + $0x68] sm:$0xff]
        %v1641 = vld [vmem:[%s1626 + $0x70] sm:$0xff]
        %v1642 = vld [vmem:[%s1626 + $0x78] sm:$0xff]
        %v1643 = vld [vmem:[%s1626 + $0x80] sm:$0xff]
        %v1644 = vld [vmem:[%s1626 + $0x88] sm:$0xff]
        %v1645 = vld [vmem:[%s1626 + $0x90] sm:$0xff]
        %v1646 = vld [vmem:[%s1626 + $0x98] sm:$0xff]
        %v1647 = vld [vmem:[%s1626 + $0xa0] sm:$0xf]
        %v1648 = vld [vmem:[%s1626 + $0xa8] sm:$0xf]
        %v1651 = vrot.slane %v1602, 1
        %v1652 = vrot.slane %v1603, 1
        %v1653 = vsel %vm625, %v1651, %v1652
        %vm1654 = vcmask 687104
        %v1655 = vsel %vm1654, %v1653, 0
        %v1657 = vsel %vm1654, %v1652, 0
        %v1660 = vsel %vm1081, %v1647, 0
        %v1663 = vsel %vm1081, %v1648, 0
        %1665 = vmatprep.subr.mxu0 %v1628
        %1666 = vmatpush1.msra.mxu0 %v1627
        %1667 = vmatprep.subr.mxu0 %v1630
        %1668 = vmatpush1.msra.mxu0 %v1629
        %1669 = vmatprep.subr.mxu0 %v1632
        %1670 = vmatpush1.msra.mxu0 %v1631
        %1671 = vmatprep.subr.mxu0 %v1634
        %1672 = vmatpush1.msra.mxu0 %v1633
        %1673 = vmatprep.subr.mxu0 %v1636
        %1674 = vmatpush1.msra.mxu0 %v1635
        %1675 = vmatprep.subr.mxu0 %v1638
        %1676 = vmatpush1.msra.mxu0 %v1637
        %1677 = vmatprep.subr.mxu0 %v1640
        %1678 = vmatpush1.msra.mxu0 %v1639
        %1679 = vmatprep.subr.mxu0 %v1642
        %1680 = vmatpush1.msra.mxu0 %v1641
        %1681 = vmatprep.subr.mxu0 %v1644
        %1682 = vmatpush1.msra.mxu0 %v1643
        %1683 = vmatprep.subr.mxu0 %v1646
        %1684 = vmatpush1.msra.mxu0 %v1645
        %1685 = vmatprep.subr.mxu0 %v1663
        %1686 = vmatpush1.msra.mxu0 %v1660
        %1687 = vmatprep.subr.mxu0 0.0
        %1688 = vmatpush1.msra.mxu0 0.0
        %1689 = vmatprep.subr.mxu0 0.0
        %1690 = vmatpush1.msra.mxu0 0.0
        %1691 = vmatprep.subr.mxu0 0.0
        %1692 = vmatpush1.msra.mxu0 0.0
        %1693 = vmatprep.subr.mxu0 0.0
        %1694 = vmatpush1.msra.mxu0 0.0
        %1695 = vmatprep.subr.mxu0 0.0
        %1696 = vmatpush1.msra.mxu0 0.0
        %1697 = vmatprep.subr.mxu0 0.0
        %1698 = vmatpush1.msra.mxu0 0.0
        %1699 = vmatprep.subr.mxu0 0.0
        %1700 = vmatpush1.msra.mxu0 0.0
        %1701 = vmatprep.subr.mxu0 0.0
        %1702 = vmatpush1.msra.mxu0 0.0
        %1703 = vmatprep.subr.mxu0 0.0
        %1704 = vmatpush1.msra.mxu0 0.0
        %1705 = vmatprep.subr.mxu0 0.0
        %1706 = vmatpush1.msra.mxu0 0.0
        %1707 = vmatprep.subr.mxu0 0.0
        %1708 = vmatpush1.msra.mxu0 0.0
        %1709 = vmatprep.subr.mxu0 0.0
        %1710 = vmatpush1.msra.mxu0 0.0
        %1711 = vmatprep.subr.mxu0 0.0
        %1712 = vmatpush1.msra.mxu0 0.0
        %1713 = vmatprep.subr.mxu0 0.0
        %1714 = vmatpush1.msra.mxu0 0.0
        %1715 = vmatprep.subr.mxu0 0.0
        %1716 = vmatpush1.msra.mxu0 0.0
        %1717 = vmatprep.subr.mxu0 0.0
        %1718 = vmatpush1.msra.mxu0 0.0
        %1719 = vmatprep.subr.mxu0 0.0
        %1720 = vmatpush1.msra.mxu0 0.0
        %1721 = vmatprep.subr.mxu0 0.0
        %1722 = vmatpush1.msra.mxu0 0.0
        %1723 = vmatprep.subr.mxu0 0.0
        %1724 = vmatpush1.msra.mxu0 0.0
        %1725 = vmatprep.subr.mxu0 0.0
        %1726 = vmatpush1.msra.mxu0 0.0
        %1727 = vmatprep.subr.mxu0 0.0
        %1728 = vmatpush1.msra.mxu0 0.0
        %1729 = vmatprep.mubr.f32.mxu0 0.0
        %1730 = vmatmul.mubr.f32.gmra.mrb[0].mxu0 %v1655
        %v1731 = vpop.f32.mrb[0].mxu0
        %v1732 = vadd.f32 0.0, %v1731
        %v1733 = vpop.f32.mrb[0].mxu0
        %v1734 = vadd.f32 0.0, %v1733
        %1735 = vmatprep.mubr.f32.mxu0 0.0
        %1736 = vmatmul.mubr.f32.gmra.mrb[0].mxu0 %v1657
        %v1737 = vpop.f32.mrb[0].mxu0
        %v1738 = vadd.f32 0.0, %v1737
        %v1739 = vpop.f32.mrb[0].mxu0
        %v1740 = vadd.f32 0.0, %v1739
        %1741 = vdwg.mxu0
        %v1742 = vsel %vm1654, %v1602, 0
        %v1744 = vsel %vm1654, %v1603, 0
        %v1747 = vsel %vm1081, %v1624, 0
        %v1750 = vsel %vm1081, %v1625, 0
        %1752 = vmatprep.subr.mxu0 %v1605
        %1753 = vmatpush1.msra.mxu0 %v1604
        %1754 = vmatprep.subr.mxu0 %v1607
        %1755 = vmatpush1.msra.mxu0 %v1606
        %1756 = vmatprep.subr.mxu0 %v1609
        %1757 = vmatpush1.msra.mxu0 %v1608
        %1758 = vmatprep.subr.mxu0 %v1611
        %1759 = vmatpush1.msra.mxu0 %v1610
        %1760 = vmatprep.subr.mxu0 %v1613
        %1761 = vmatpush1.msra.mxu0 %v1612
        %1762 = vmatprep.subr.mxu0 %v1615
        %1763 = vmatpush1.msra.mxu0 %v1614
        %1764 = vmatprep.subr.mxu0 %v1617
        %1765 = vmatpush1.msra.mxu0 %v1616
        %1766 = vmatprep.subr.mxu0 %v1619
        %1767 = vmatpush1.msra.mxu0 %v1618
        %1768 = vmatprep.subr.mxu0 %v1621
        %1769 = vmatpush1.msra.mxu0 %v1620
        %1770 = vmatprep.subr.mxu0 %v1623
        %1771 = vmatpush1.msra.mxu0 %v1622
        %1772 = vmatprep.subr.mxu0 %v1750
        %1773 = vmatpush1.msra.mxu0 %v1747
        %1774 = vmatprep.subr.mxu0 0.0
        %1775 = vmatpush1.msra.mxu0 0.0
        %1776 = vmatprep.subr.mxu0 0.0
        %1777 = vmatpush1.msra.mxu0 0.0
        %1778 = vmatprep.subr.mxu0 0.0
        %1779 = vmatpush1.msra.mxu0 0.0
        %1780 = vmatprep.subr.mxu0 0.0
        %1781 = vmatpush1.msra.mxu0 0.0
        %1782 = vmatprep.subr.mxu0 0.0
        %1783 = vmatpush1.msra.mxu0 0.0
        %1784 = vmatprep.subr.mxu0 0.0
        %1785 = vmatpush1.msra.mxu0 0.0
        %1786 = vmatprep.subr.mxu0 0.0
        %1787 = vmatpush1.msra.mxu0 0.0
        %1788 = vmatprep.subr.mxu0 0.0
        %1789 = vmatpush1.msra.mxu0 0.0
        %1790 = vmatprep.subr.mxu0 0.0
        %1791 = vmatpush1.msra.mxu0 0.0
        %1792 = vmatprep.subr.mxu0 0.0
        %1793 = vmatpush1.msra.mxu0 0.0
        %1794 = vmatprep.subr.mxu0 0.0
        %1795 = vmatpush1.msra.mxu0 0.0
        %1796 = vmatprep.subr.mxu0 0.0
        %1797 = vmatpush1.msra.mxu0 0.0
        %1798 = vmatprep.subr.mxu0 0.0
        %1799 = vmatpush1.msra.mxu0 0.0
        %1800 = vmatprep.subr.mxu0 0.0
        %1801 = vmatpush1.msra.mxu0 0.0
        %1802 = vmatprep.subr.mxu0 0.0
        %1803 = vmatpush1.msra.mxu0 0.0
        %1804 = vmatprep.subr.mxu0 0.0
        %1805 = vmatpush1.msra.mxu0 0.0
        %1806 = vmatprep.subr.mxu0 0.0
        %1807 = vmatpush1.msra.mxu0 0.0
        %1808 = vmatprep.subr.mxu0 0.0
        %1809 = vmatpush1.msra.mxu0 0.0
        %1810 = vmatprep.subr.mxu0 0.0
        %1811 = vmatpush1.msra.mxu0 0.0
        %1812 = vmatprep.subr.mxu0 0.0
        %1813 = vmatpush1.msra.mxu0 0.0
        %1814 = vmatprep.subr.mxu0 0.0
        %1815 = vmatpush1.msra.mxu0 0.0
        %1816 = vmatprep.mubr.f32.mxu0 0.0
        %1817 = vmatmul.mubr.f32.gmra.mrb[0].mxu0 %v1742
        %v1818 = vpop.f32.mrb[0].mxu0
        %v1819 = vadd.f32 %v1732, %v1818
        %v1820 = vpop.f32.mrb[0].mxu0
        %v1821 = vadd.f32 %v1734, %v1820
        %1822 = vmatprep.mubr.f32.mxu0 0.0
        %1823 = vmatmul.mubr.f32.gmra.mrb[0].mxu0 %v1744
        %v1824 = vpop.f32.mrb[0].mxu0
        %v1825 = vadd.f32 %v1738, %v1824
        %v1826 = vpop.f32.mrb[0].mxu0
        %v1827 = vadd.f32 %v1740, %v1826
        %1828 = vdwg.mxu0
        %s1829 = scalar_lea.vmem %s7, 352
        %v1830 = vld [vmem:[%s1829] sm:$0xff]
        %v1831 = vld [vmem:[%s1829 + $0x8] sm:$0xff]
        %v1832 = vld [vmem:[%s1829 + $0x10] sm:$0xff]
        %v1833 = vld [vmem:[%s1829 + $0x18] sm:$0xff]
        %v1834 = vld [vmem:[%s1829 + $0x20] sm:$0xff]
        %v1835 = vld [vmem:[%s1829 + $0x28] sm:$0xff]
        %v1836 = vld [vmem:[%s1829 + $0x30] sm:$0xff]
        %v1837 = vld [vmem:[%s1829 + $0x38] sm:$0xff]
        %v1838 = vld [vmem:[%s1829 + $0x40] sm:$0xff]
        %v1839 = vld [vmem:[%s1829 + $0x48] sm:$0xff]
        %v1840 = vld [vmem:[%s1829 + $0x50] sm:$0xff]
        %v1841 = vld [vmem:[%s1829 + $0x58] sm:$0xff]
        %v1842 = vld [vmem:[%s1829 + $0x60] sm:$0xff]
        %v1843 = vld [vmem:[%s1829 + $0x68] sm:$0xff]
        %v1844 = vld [vmem:[%s1829 + $0x70] sm:$0xff]
        %v1845 = vld [vmem:[%s1829 + $0x78] sm:$0xff]
        %v1846 = vld [vmem:[%s1829 + $0x80] sm:$0xff]
        %v1847 = vld [vmem:[%s1829 + $0x88] sm:$0xff]
        %v1848 = vld [vmem:[%s1829 + $0x90] sm:$0xff]
        %v1849 = vld [vmem:[%s1829 + $0x98] sm:$0xff]
        %v1850 = vld [vmem:[%s1829 + $0xa0] sm:$0xf]
        %v1851 = vld [vmem:[%s1829 + $0xa8] sm:$0xf]
        %v1852 = vrot.slane %v1602, 2
        %v1853 = vrot.slane %v1603, 2
        %v1854 = vsel %vm837, %v1852, %v1853
        %v1855 = vsel %vm1654, %v1854, 0
        %v1857 = vsel %vm1654, %v1853, 0
        %v1860 = vsel %vm1081, %v1850, 0
        %v1863 = vsel %vm1081, %v1851, 0
        %1865 = vmatprep.subr.mxu0 %v1831
        %1866 = vmatpush1.msra.mxu0 %v1830
        %1867 = vmatprep.subr.mxu0 %v1833
        %1868 = vmatpush1.msra.mxu0 %v1832
        %1869 = vmatprep.subr.mxu0 %v1835
        %1870 = vmatpush1.msra.mxu0 %v1834
        %1871 = vmatprep.subr.mxu0 %v1837
        %1872 = vmatpush1.msra.mxu0 %v1836
        %1873 = vmatprep.subr.mxu0 %v1839
        %1874 = vmatpush1.msra.mxu0 %v1838
        %1875 = vmatprep.subr.mxu0 %v1841
        %1876 = vmatpush1.msra.mxu0 %v1840
        %1877 = vmatprep.subr.mxu0 %v1843
        %1878 = vmatpush1.msra.mxu0 %v1842
        %1879 = vmatprep.subr.mxu0 %v1845
        %1880 = vmatpush1.msra.mxu0 %v1844
        %1881 = vmatprep.subr.mxu0 %v1847
        %1882 = vmatpush1.msra.mxu0 %v1846
        %1883 = vmatprep.subr.mxu0 %v1849
        %1884 = vmatpush1.msra.mxu0 %v1848
        %1885 = vmatprep.subr.mxu0 %v1863
        %1886 = vmatpush1.msra.mxu0 %v1860
        %1887 = vmatprep.subr.mxu0 0.0
        %1888 = vmatpush1.msra.mxu0 0.0
        %1889 = vmatprep.subr.mxu0 0.0
        %1890 = vmatpush1.msra.mxu0 0.0
        %1891 = vmatprep.subr.mxu0 0.0
        %1892 = vmatpush1.msra.mxu0 0.0
        %1893 = vmatprep.subr.mxu0 0.0
        %1894 = vmatpush1.msra.mxu0 0.0
        %1895 = vmatprep.subr.mxu0 0.0
        %1896 = vmatpush1.msra.mxu0 0.0
        %1897 = vmatprep.subr.mxu0 0.0
        %1898 = vmatpush1.msra.mxu0 0.0
        %1899 = vmatprep.subr.mxu0 0.0
        %1900 = vmatpush1.msra.mxu0 0.0
        %1901 = vmatprep.subr.mxu0 0.0
        %1902 = vmatpush1.msra.mxu0 0.0
        %1903 = vmatprep.subr.mxu0 0.0
        %1904 = vmatpush1.msra.mxu0 0.0
        %1905 = vmatprep.subr.mxu0 0.0
        %1906 = vmatpush1.msra.mxu0 0.0
        %1907 = vmatprep.subr.mxu0 0.0
        %1908 = vmatpush1.msra.mxu0 0.0
        %1909 = vmatprep.subr.mxu0 0.0
        %1910 = vmatpush1.msra.mxu0 0.0
        %1911 = vmatprep.subr.mxu0 0.0
        %1912 = vmatpush1.msra.mxu0 0.0
        %1913 = vmatprep.subr.mxu0 0.0
        %1914 = vmatpush1.msra.mxu0 0.0
        %1915 = vmatprep.subr.mxu0 0.0
        %1916 = vmatpush1.msra.mxu0 0.0
        %1917 = vmatprep.subr.mxu0 0.0
        %1918 = vmatpush1.msra.mxu0 0.0
        %1919 = vmatprep.subr.mxu0 0.0
        %1920 = vmatpush1.msra.mxu0 0.0
        %1921 = vmatprep.subr.mxu0 0.0
        %1922 = vmatpush1.msra.mxu0 0.0
        %1923 = vmatprep.subr.mxu0 0.0
        %1924 = vmatpush1.msra.mxu0 0.0
        %1925 = vmatprep.subr.mxu0 0.0
        %1926 = vmatpush1.msra.mxu0 0.0
        %1927 = vmatprep.subr.mxu0 0.0
        %1928 = vmatpush1.msra.mxu0 0.0
        %1929 = vmatprep.mubr.f32.mxu0 0.0
        %1930 = vmatmul.mubr.f32.gmra.mrb[0].mxu0 %v1855
        %v1931 = vpop.f32.mrb[0].mxu0
        %v1932 = vadd.f32 0.0, %v1931
        %v1933 = vpop.f32.mrb[0].mxu0
        %v1934 = vadd.f32 0.0, %v1933
        %1935 = vmatprep.mubr.f32.mxu0 0.0
        %1936 = vmatmul.mubr.f32.gmra.mrb[0].mxu0 %v1857
        %v1937 = vpop.f32.mrb[0].mxu0
        %v1938 = vadd.f32 0.0, %v1937
        %v1939 = vpop.f32.mrb[0].mxu0
        %v1940 = vadd.f32 0.0, %v1939
        %1941 = vdwg.mxu0
        %v1942 = vadd.f32 %v1819, %v1932
        %v1943 = vadd.f32 %v1821, %v1934
        %v1944 = vadd.f32 %v1825, %v1938
        %v1945 = vadd.f32 %v1827, %v1940
        %s1946 = scalar_lea.vmem %s7, 528
        %v1947 = vld [vmem:[%s1946] sm:$0xff]
        %v1948 = vld [vmem:[%s1946 + $0x8] sm:$0xff]
        %v1949 = vld [vmem:[%s1946 + $0x10] sm:$0xff]
        %v1950 = vld [vmem:[%s1946 + $0x18] sm:$0xff]
        %v1951 = vld [vmem:[%s1946 + $0x20] sm:$0xff]
        %v1952 = vld [vmem:[%s1946 + $0x28] sm:$0xff]
        %v1953 = vld [vmem:[%s1946 + $0x30] sm:$0xff]
        %v1954 = vld [vmem:[%s1946 + $0x38] sm:$0xff]
        %v1955 = vld [vmem:[%s1946 + $0x40] sm:$0xff]
        %v1956 = vld [vmem:[%s1946 + $0x48] sm:$0xff]
        %v1957 = vld [vmem:[%s1946 + $0x50] sm:$0xff]
        %v1958 = vld [vmem:[%s1946 + $0x58] sm:$0xff]
        %v1959 = vld [vmem:[%s1946 + $0x60] sm:$0xff]
        %v1960 = vld [vmem:[%s1946 + $0x68] sm:$0xff]
        %v1961 = vld [vmem:[%s1946 + $0x70] sm:$0xff]
        %v1962 = vld [vmem:[%s1946 + $0x78] sm:$0xff]
        %v1963 = vld [vmem:[%s1946 + $0x80] sm:$0xff]
        %v1964 = vld [vmem:[%s1946 + $0x88] sm:$0xff]
        %v1965 = vld [vmem:[%s1946 + $0x90] sm:$0xff]
        %v1966 = vld [vmem:[%s1946 + $0x98] sm:$0xff]
        %v1967 = vld [vmem:[%s1946 + $0xa0] sm:$0xf]
        %v1968 = vld [vmem:[%s1946 + $0xa8] sm:$0xf]
        %v1969 = vrot.slane %v1602, 3
        %v1970 = vrot.slane %v1603, 3
        %v1971 = vsel %vm959, %v1969, %v1970
        %v1972 = vsel %vm1654, %v1971, 0
        %v1974 = vsel %vm1654, %v1970, 0
        %v1977 = vsel %vm1081, %v1967, 0
        %v1980 = vsel %vm1081, %v1968, 0
        %1982 = vmatprep.subr.mxu0 %v1948
        %1983 = vmatpush1.msra.mxu0 %v1947
        %1984 = vmatprep.subr.mxu0 %v1950
        %1985 = vmatpush1.msra.mxu0 %v1949
        %1986 = vmatprep.subr.mxu0 %v1952
        %1987 = vmatpush1.msra.mxu0 %v1951
        %1988 = vmatprep.subr.mxu0 %v1954
        %1989 = vmatpush1.msra.mxu0 %v1953
        %1990 = vmatprep.subr.mxu0 %v1956
        %1991 = vmatpush1.msra.mxu0 %v1955
        %1992 = vmatprep.subr.mxu0 %v1958
        %1993 = vmatpush1.msra.mxu0 %v1957
        %1994 = vmatprep.subr.mxu0 %v1960
        %1995 = vmatpush1.msra.mxu0 %v1959
        %1996 = vmatprep.subr.mxu0 %v1962
        %1997 = vmatpush1.msra.mxu0 %v1961
        %1998 = vmatprep.subr.mxu0 %v1964
        %1999 = vmatpush1.msra.mxu0 %v1963
        %2000 = vmatprep.subr.mxu0 %v1966
        %2001 = vmatpush1.msra.mxu0 %v1965
        %2002 = vmatprep.subr.mxu0 %v1980
        %2003 = vmatpush1.msra.mxu0 %v1977
        %2004 = vmatprep.subr.mxu0 0.0
        %2005 = vmatpush1.msra.mxu0 0.0
        %2006 = vmatprep.subr.mxu0 0.0
        %2007 = vmatpush1.msra.mxu0 0.0
        %2008 = vmatprep.subr.mxu0 0.0
        %2009 = vmatpush1.msra.mxu0 0.0
        %2010 = vmatprep.subr.mxu0 0.0
        %2011 = vmatpush1.msra.mxu0 0.0
        %2012 = vmatprep.subr.mxu0 0.0
        %2013 = vmatpush1.msra.mxu0 0.0
        %2014 = vmatprep.subr.mxu0 0.0
        %2015 = vmatpush1.msra.mxu0 0.0
        %2016 = vmatprep.subr.mxu0 0.0
        %2017 = vmatpush1.msra.mxu0 0.0
        %2018 = vmatprep.subr.mxu0 0.0
        %2019 = vmatpush1.msra.mxu0 0.0
        %2020 = vmatprep.subr.mxu0 0.0
        %2021 = vmatpush1.msra.mxu0 0.0
        %2022 = vmatprep.subr.mxu0 0.0
        %2023 = vmatpush1.msra.mxu0 0.0
        %2024 = vmatprep.subr.mxu0 0.0
        %2025 = vmatpush1.msra.mxu0 0.0
        %2026 = vmatprep.subr.mxu0 0.0
        %2027 = vmatpush1.msra.mxu0 0.0
        %2028 = vmatprep.subr.mxu0 0.0
        %2029 = vmatpush1.msra.mxu0 0.0
        %2030 = vmatprep.subr.mxu0 0.0
        %2031 = vmatpush1.msra.mxu0 0.0
        %2032 = vmatprep.subr.mxu0 0.0
        %2033 = vmatpush1.msra.mxu0 0.0
        %2034 = vmatprep.subr.mxu0 0.0
        %2035 = vmatpush1.msra.mxu0 0.0
        %2036 = vmatprep.subr.mxu0 0.0
        %2037 = vmatpush1.msra.mxu0 0.0
        %2038 = vmatprep.subr.mxu0 0.0
        %2039 = vmatpush1.msra.mxu0 0.0
        %2040 = vmatprep.subr.mxu0 0.0
        %2041 = vmatpush1.msra.mxu0 0.0
        %2042 = vmatprep.subr.mxu0 0.0
        %2043 = vmatpush1.msra.mxu0 0.0
        %2044 = vmatprep.subr.mxu0 0.0
        %2045 = vmatpush1.msra.mxu0 0.0
        %2046 = vmatprep.mubr.f32.mxu0 0.0
        %2047 = vmatmul.mubr.f32.gmra.mrb[0].mxu0 %v1972
        %v2048 = vpop.f32.mrb[0].mxu0
        %v2049 = vadd.f32 0.0, %v2048
        %v2050 = vpop.f32.mrb[0].mxu0
        %v2051 = vadd.f32 0.0, %v2050
        %2052 = vmatprep.mubr.f32.mxu0 0.0
        %2053 = vmatmul.mubr.f32.gmra.mrb[0].mxu0 %v1974
        %v2054 = vpop.f32.mrb[0].mxu0
        %v2055 = vadd.f32 0.0, %v2054
        %v2056 = vpop.f32.mrb[0].mxu0
        %v2057 = vadd.f32 0.0, %v2056
        %2058 = vdwg.mxu0
        %v2059 = vadd.f32 %v1942, %v2049
        %v2060 = vadd.f32 %v1943, %v2051
        %v2061 = vadd.f32 %v1944, %v2055
        %v2062 = vadd.f32 %v1945, %v2057
        %s2063 = scalar_lea.vmem %s7, 704
        %v2064 = vld [vmem:[%s2063] sm:$0xff]
        %v2065 = vld [vmem:[%s2063 + $0x8] sm:$0xff]
        %v2066 = vld [vmem:[%s2063 + $0x10] sm:$0xff]
        %v2067 = vld [vmem:[%s2063 + $0x18] sm:$0xff]
        %v2068 = vld [vmem:[%s2063 + $0x20] sm:$0xff]
        %v2069 = vld [vmem:[%s2063 + $0x28] sm:$0xff]
        %v2070 = vld [vmem:[%s2063 + $0x30] sm:$0xff]
        %v2071 = vld [vmem:[%s2063 + $0x38] sm:$0xff]
        %v2072 = vld [vmem:[%s2063 + $0x40] sm:$0xff]
        %v2073 = vld [vmem:[%s2063 + $0x48] sm:$0xff]
        %v2074 = vld [vmem:[%s2063 + $0x50] sm:$0xff]
        %v2075 = vld [vmem:[%s2063 + $0x58] sm:$0xff]
        %v2076 = vld [vmem:[%s2063 + $0x60] sm:$0xff]
        %v2077 = vld [vmem:[%s2063 + $0x68] sm:$0xff]
        %v2078 = vld [vmem:[%s2063 + $0x70] sm:$0xff]
        %v2079 = vld [vmem:[%s2063 + $0x78] sm:$0xff]
        %v2080 = vld [vmem:[%s2063 + $0x80] sm:$0xff]
        %v2081 = vld [vmem:[%s2063 + $0x88] sm:$0xff]
        %v2082 = vld [vmem:[%s2063 + $0x90] sm:$0xff]
        %v2083 = vld [vmem:[%s2063 + $0x98] sm:$0xff]
        %v2084 = vld [vmem:[%s2063 + $0xa0] sm:$0xf]
        %v2085 = vld [vmem:[%s2063 + $0xa8] sm:$0xf]
        %v2086 = vrot.slane %v1602, 4
        %v2087 = vrot.slane %v1603, 4
        %v2088 = vsel %vm1081, %v2086, %v2087
        %v2089 = vsel %vm1654, %v2088, 0
        %v2091 = vsel %vm1654, %v2087, 0
        %v2094 = vsel %vm1081, %v2084, 0
        %v2097 = vsel %vm1081, %v2085, 0
        %2099 = vmatprep.subr.mxu0 %v2065
        %2100 = vmatpush1.msra.mxu0 %v2064
        %2101 = vmatprep.subr.mxu0 %v2067
        %2102 = vmatpush1.msra.mxu0 %v2066
        %2103 = vmatprep.subr.mxu0 %v2069
        %2104 = vmatpush1.msra.mxu0 %v2068
        %2105 = vmatprep.subr.mxu0 %v2071
        %2106 = vmatpush1.msra.mxu0 %v2070
        %2107 = vmatprep.subr.mxu0 %v2073
        %2108 = vmatpush1.msra.mxu0 %v2072
        %2109 = vmatprep.subr.mxu0 %v2075
        %2110 = vmatpush1.msra.mxu0 %v2074
        %2111 = vmatprep.subr.mxu0 %v2077
        %2112 = vmatpush1.msra.mxu0 %v2076
        %2113 = vmatprep.subr.mxu0 %v2079
        %2114 = vmatpush1.msra.mxu0 %v2078
        %2115 = vmatprep.subr.mxu0 %v2081
        %2116 = vmatpush1.msra.mxu0 %v2080
        %2117 = vmatprep.subr.mxu0 %v2083
        %2118 = vmatpush1.msra.mxu0 %v2082
        %2119 = vmatprep.subr.mxu0 %v2097
        %2120 = vmatpush1.msra.mxu0 %v2094
        %2121 = vmatprep.subr.mxu0 0.0
        %2122 = vmatpush1.msra.mxu0 0.0
        %2123 = vmatprep.subr.mxu0 0.0
        %2124 = vmatpush1.msra.mxu0 0.0
        %2125 = vmatprep.subr.mxu0 0.0
        %2126 = vmatpush1.msra.mxu0 0.0
        %2127 = vmatprep.subr.mxu0 0.0
        %2128 = vmatpush1.msra.mxu0 0.0
        %2129 = vmatprep.subr.mxu0 0.0
        %2130 = vmatpush1.msra.mxu0 0.0
        %2131 = vmatprep.subr.mxu0 0.0
        %2132 = vmatpush1.msra.mxu0 0.0
        %2133 = vmatprep.subr.mxu0 0.0
        %2134 = vmatpush1.msra.mxu0 0.0
        %2135 = vmatprep.subr.mxu0 0.0
        %2136 = vmatpush1.msra.mxu0 0.0
        %2137 = vmatprep.subr.mxu0 0.0
        %2138 = vmatpush1.msra.mxu0 0.0
        %2139 = vmatprep.subr.mxu0 0.0
        %2140 = vmatpush1.msra.mxu0 0.0
        %2141 = vmatprep.subr.mxu0 0.0
        %2142 = vmatpush1.msra.mxu0 0.0
        %2143 = vmatprep.subr.mxu0 0.0
        %2144 = vmatpush1.msra.mxu0 0.0
        %2145 = vmatprep.subr.mxu0 0.0
        %2146 = vmatpush1.msra.mxu0 0.0
        %2147 = vmatprep.subr.mxu0 0.0
        %2148 = vmatpush1.msra.mxu0 0.0
        %2149 = vmatprep.subr.mxu0 0.0
        %2150 = vmatpush1.msra.mxu0 0.0
        %2151 = vmatprep.subr.mxu0 0.0
        %2152 = vmatpush1.msra.mxu0 0.0
        %2153 = vmatprep.subr.mxu0 0.0
        %2154 = vmatpush1.msra.mxu0 0.0
        %2155 = vmatprep.subr.mxu0 0.0
        %2156 = vmatpush1.msra.mxu0 0.0
        %2157 = vmatprep.subr.mxu0 0.0
        %2158 = vmatpush1.msra.mxu0 0.0
        %2159 = vmatprep.subr.mxu0 0.0
        %2160 = vmatpush1.msra.mxu0 0.0
        %2161 = vmatprep.subr.mxu0 0.0
        %2162 = vmatpush1.msra.mxu0 0.0
        %2163 = vmatprep.mubr.f32.mxu0 0.0
        %2164 = vmatmul.mubr.f32.gmra.mrb[0].mxu0 %v2089
        %v2165 = vpop.f32.mrb[0].mxu0
        %v2166 = vadd.f32 0.0, %v2165
        %v2167 = vpop.f32.mrb[0].mxu0
        %v2168 = vadd.f32 0.0, %v2167
        %2169 = vmatprep.mubr.f32.mxu0 0.0
        %2170 = vmatmul.mubr.f32.gmra.mrb[0].mxu0 %v2091
        %v2171 = vpop.f32.mrb[0].mxu0
        %v2172 = vadd.f32 0.0, %v2171
        %v2173 = vpop.f32.mrb[0].mxu0
        %v2174 = vadd.f32 0.0, %v2173
        %2175 = vdwg.mxu0
        %v2176 = vadd.f32 %v2059, %v2166
        %v2177 = vadd.f32 %v2060, %v2168
        %v2178 = vadd.f32 %v2061, %v2172
        %v2179 = vadd.f32 %v2062, %v2174
        %v2180 = vld [vmem:[%s8] sm:$0x3]
        %v2182 = vlaneseq
        %v2183 = vshrl.u32 %v2182, 7
        %v2184 = vsub.s32 0, %v2183
        %v2185 = vrot.slane %v2180, %v2184
        %v2186 = vlaneseq
        %v2187 = vshrl.u32 %v2186, 7
        %v2188 = vsub.s32 1, %v2187
        %v2189 = vrot.slane %v2180, %v2188
        %v2192 = vadd.f32 %v2176, %v2185
        %v2193 = vadd.f32 %v2177, %v2189
        %v2194 = vadd.f32 %v2178, %v2185
        %v2195 = vadd.f32 %v2179, %v2189
        %v2196 = vmax.f32 %v2192, 0.0
        %v2197 = vmax.f32 %v2193, 0.0
        %v2198 = vmax.f32 %v2194, 0.0
        %v2199 = vmax.f32 %v2195, 0.0
        %v2200 = vld [vmem:[%s9] sm:$0x1f]
        %vm2201 = vcmask 80896
        %v2203 = vsel %vm2201, %v2200, 0
        %vm2205 = vcmask 1041408
        %v2207 = vsel %vm2205, %v2198, 0
        %v2210 = vsel %vm2205, %v2199, 0
        %2212 = vmatprep.subr.mxu0 %v2197
        %2213 = vmatpush1.msra.mxu0 %v2196
        %2214 = vmatprep.subr.mxu0 %v2210
        %2215 = vmatpush1.msra.mxu0 %v2207
        %2216 = vmatprep.subr.mxu0 0.0
        %2217 = vmatpush1.msra.mxu0 0.0
        %2218 = vmatprep.subr.mxu0 0.0
        %2219 = vmatpush1.msra.mxu0 0.0
        %2220 = vmatprep.subr.mxu0 0.0
        %2221 = vmatpush1.msra.mxu0 0.0
        %2222 = vmatprep.subr.mxu0 0.0
        %2223 = vmatpush1.msra.mxu0 0.0
        %2224 = vmatprep.subr.mxu0 0.0
        %2225 = vmatpush1.msra.mxu0 0.0
        %2226 = vmatprep.subr.mxu0 0.0
        %2227 = vmatpush1.msra.mxu0 0.0
        %2228 = vmatprep.subr.mxu0 0.0
        %2229 = vmatpush1.msra.mxu0 0.0
        %2230 = vmatprep.subr.mxu0 0.0
        %2231 = vmatpush1.msra.mxu0 0.0
        %2232 = vmatprep.subr.mxu0 0.0
        %2233 = vmatpush1.msra.mxu0 0.0
        %2234 = vmatprep.subr.mxu0 0.0
        %2235 = vmatpush1.msra.mxu0 0.0
        %2236 = vmatprep.subr.mxu0 0.0
        %2237 = vmatpush1.msra.mxu0 0.0
        %2238 = vmatprep.subr.mxu0 0.0
        %2239 = vmatpush1.msra.mxu0 0.0
        %2240 = vmatprep.subr.mxu0 0.0
        %2241 = vmatpush1.msra.mxu0 0.0
        %2242 = vmatprep.subr.mxu0 0.0
        %2243 = vmatpush1.msra.mxu0 0.0
        %2244 = vmatprep.subr.mxu0 0.0
        %2245 = vmatpush1.msra.mxu0 0.0
        %2246 = vmatprep.subr.mxu0 0.0
        %2247 = vmatpush1.msra.mxu0 0.0
        %2248 = vmatprep.subr.mxu0 0.0
        %2249 = vmatpush1.msra.mxu0 0.0
        %2250 = vmatprep.subr.mxu0 0.0
        %2251 = vmatpush1.msra.mxu0 0.0
        %2252 = vmatprep.subr.mxu0 0.0
        %2253 = vmatpush1.msra.mxu0 0.0
        %2254 = vmatprep.subr.mxu0 0.0
        %2255 = vmatpush1.msra.mxu0 0.0
        %2256 = vmatprep.subr.mxu0 0.0
        %2257 = vmatpush1.msra.mxu0 0.0
        %2258 = vmatprep.subr.mxu0 0.0
        %2259 = vmatpush1.msra.mxu0 0.0
        %2260 = vmatprep.subr.mxu0 0.0
        %2261 = vmatpush1.msra.mxu0 0.0
        %2262 = vmatprep.subr.mxu0 0.0
        %2263 = vmatpush1.msra.mxu0 0.0
        %2264 = vmatprep.subr.mxu0 0.0
        %2265 = vmatpush1.msra.mxu0 0.0
        %2266 = vmatprep.subr.mxu0 0.0
        %2267 = vmatpush1.msra.mxu0 0.0
        %2268 = vmatprep.subr.mxu0 0.0
        %2269 = vmatpush1.msra.mxu0 0.0
        %2270 = vmatprep.subr.mxu0 0.0
        %2271 = vmatpush1.msra.mxu0 0.0
        %2272 = vmatprep.subr.mxu0 0.0
        %2273 = vmatpush1.msra.mxu0 0.0
        %2274 = vmatprep.subr.mxu0 0.0
        %2275 = vmatpush1.msra.mxu0 0.0
        %2276 = vmatprep.mubr.f32.mxu0 0.0
        %2277 = vmatmul.mubr.f32.gmra.mrb[0].mxu0 %v2203
        %v2278 = vpop.f32.mrb[0].mxu0
        %v2279 = vadd.f32 0.0, %v2278
        %v2280 = vpop.f32.mrb[0].mxu0
        %v2281 = vadd.f32 0.0, %v2280
        %2282 = vdwg.mxu0
        %v2283 = vld [vmem:[%s10] sm:$0x1f]
        %v2285 = vsel %vm2201, %v2283, 0
        %2287 = vmatprep.subr.mxu0 %v2197
        %2288 = vmatpush1.msra.mxu0 %v2196
        %2289 = vmatprep.subr.mxu0 %v2210
        %2290 = vmatpush1.msra.mxu0 %v2207
        %2291 = vmatprep.subr.mxu0 0.0
        %2292 = vmatpush1.msra.mxu0 0.0
        %2293 = vmatprep.subr.mxu0 0.0
        %2294 = vmatpush1.msra.mxu0 0.0
        %2295 = vmatprep.subr.mxu0 0.0
        %2296 = vmatpush1.msra.mxu0 0.0
        %2297 = vmatprep.subr.mxu0 0.0
        %2298 = vmatpush1.msra.mxu0 0.0
        %2299 = vmatprep.subr.mxu0 0.0
        %2300 = vmatpush1.msra.mxu0 0.0
        %2301 = vmatprep.subr.mxu0 0.0
        %2302 = vmatpush1.msra.mxu0 0.0
        %2303 = vmatprep.subr.mxu0 0.0
        %2304 = vmatpush1.msra.mxu0 0.0
        %2305 = vmatprep.subr.mxu0 0.0
        %2306 = vmatpush1.msra.mxu0 0.0
        %2307 = vmatprep.subr.mxu0 0.0
        %2308 = vmatpush1.msra.mxu0 0.0
        %2309 = vmatprep.subr.mxu0 0.0
        %2310 = vmatpush1.msra.mxu0 0.0
        %2311 = vmatprep.subr.mxu0 0.0
        %2312 = vmatpush1.msra.mxu0 0.0
        %2313 = vmatprep.subr.mxu0 0.0
        %2314 = vmatpush1.msra.mxu0 0.0
        %2315 = vmatprep.subr.mxu0 0.0
        %2316 = vmatpush1.msra.mxu0 0.0
        %2317 = vmatprep.subr.mxu0 0.0
        %2318 = vmatpush1.msra.mxu0 0.0
        %2319 = vmatprep.subr.mxu0 0.0
        %2320 = vmatpush1.msra.mxu0 0.0
        %2321 = vmatprep.subr.mxu0 0.0
        %2322 = vmatpush1.msra.mxu0 0.0
        %2323 = vmatprep.subr.mxu0 0.0
        %2324 = vmatpush1.msra.mxu0 0.0
        %2325 = vmatprep.subr.mxu0 0.0
        %2326 = vmatpush1.msra.mxu0 0.0
        %2327 = vmatprep.subr.mxu0 0.0
        %2328 = vmatpush1.msra.mxu0 0.0
        %2329 = vmatprep.subr.mxu0 0.0
        %2330 = vmatpush1.msra.mxu0 0.0
        %2331 = vmatprep.subr.mxu0 0.0
        %2332 = vmatpush1.msra.mxu0 0.0
        %2333 = vmatprep.subr.mxu0 0.0
        %2334 = vmatpush1.msra.mxu0 0.0
        %2335 = vmatprep.subr.mxu0 0.0
        %2336 = vmatpush1.msra.mxu0 0.0
        %2337 = vmatprep.subr.mxu0 0.0
        %2338 = vmatpush1.msra.mxu0 0.0
        %2339 = vmatprep.subr.mxu0 0.0
        %2340 = vmatpush1.msra.mxu0 0.0
        %2341 = vmatprep.subr.mxu0 0.0
        %2342 = vmatpush1.msra.mxu0 0.0
        %2343 = vmatprep.subr.mxu0 0.0
        %2344 = vmatpush1.msra.mxu0 0.0
        %2345 = vmatprep.subr.mxu0 0.0
        %2346 = vmatpush1.msra.mxu0 0.0
        %2347 = vmatprep.subr.mxu0 0.0
        %2348 = vmatpush1.msra.mxu0 0.0
        %2349 = vmatprep.subr.mxu0 0.0
        %2350 = vmatpush1.msra.mxu0 0.0
        %2351 = vmatprep.mubr.f32.mxu0 0.0
        %2352 = vmatmul.mubr.f32.gmra.mrb[0].mxu0 %v2285
        %v2353 = vpop.f32.mrb[0].mxu0
        %v2354 = vadd.f32 0.0, %v2353
        %v2355 = vpop.f32.mrb[0].mxu0
        %v2356 = vadd.f32 0.0, %v2355
        %2357 = vdwg.mxu0
        %v2358 = vmax.f32 %v2279, %v2354
        %v2359 = vmax.f32 %v2281, %v2356
        %v2360 = vld [vmem:[%s11] sm:$0xff]
        %v2361 = vld [vmem:[%s11 + $0x8] sm:$0xff]
        %v2362 = vld [vmem:[%s11 + $0x10] sm:$0xff]
        %v2363 = vld [vmem:[%s11 + $0x18] sm:$0xff]
        %v2364 = vld [vmem:[%s11 + $0x20] sm:$0xff]
        %v2365 = vld [vmem:[%s11 + $0x28] sm:$0xff]
        %v2366 = vld [vmem:[%s11 + $0x30] sm:$0xff]
        %v2367 = vld [vmem:[%s11 + $0x38] sm:$0xff]
        %v2368 = vld [vmem:[%s11 + $0x40] sm:$0xff]
        %v2369 = vld [vmem:[%s11 + $0x48] sm:$0xff]
        %v2370 = vld [vmem:[%s11 + $0x50] sm:$0xff]
        %v2371 = vld [vmem:[%s11 + $0x58] sm:$0xff]
        %v2372 = vld [vmem:[%s11 + $0x60] sm:$0xff]
        %v2373 = vld [vmem:[%s11 + $0x68] sm:$0xff]
        %v2374 = vld [vmem:[%s11 + $0x70] sm:$0xff]
        %v2375 = vld [vmem:[%s11 + $0x78] sm:$0xff]
        %v2376 = vld [vmem:[%s11 + $0x80] sm:$0xff]
        %v2377 = vld [vmem:[%s11 + $0x88] sm:$0xff]
        %v2378 = vld [vmem:[%s11 + $0x90] sm:$0xff]
        %v2379 = vld [vmem:[%s11 + $0x98] sm:$0xff]
        %v2381 = vsel %vm633, %v2359, 0
        %2383 = vmatprep.subr.mxu0 0.0
        %2384 = vmatpush1.msra.mxu0 %v2360
        %2385 = vmatprep.subr.mxu0 0.0
        %2386 = vmatpush1.msra.mxu0 %v2361
        %2387 = vmatprep.subr.mxu0 0.0
        %2388 = vmatpush1.msra.mxu0 %v2362
        %2389 = vmatprep.subr.mxu0 0.0
        %2390 = vmatpush1.msra.mxu0 %v2363
        %2391 = vmatprep.subr.mxu0 0.0
        %2392 = vmatpush1.msra.mxu0 %v2364
        %2393 = vmatprep.subr.mxu0 0.0
        %2394 = vmatpush1.msra.mxu0 %v2365
        %2395 = vmatprep.subr.mxu0 0.0
        %2396 = vmatpush1.msra.mxu0 %v2366
        %2397 = vmatprep.subr.mxu0 0.0
        %2398 = vmatpush1.msra.mxu0 %v2367
        %2399 = vmatprep.subr.mxu0 0.0
        %2400 = vmatpush1.msra.mxu0 %v2368
        %2401 = vmatprep.subr.mxu0 0.0
        %2402 = vmatpush1.msra.mxu0 %v2369
        %2403 = vmatprep.subr.mxu0 0.0
        %2404 = vmatpush1.msra.mxu0 %v2370
        %2405 = vmatprep.subr.mxu0 0.0
        %2406 = vmatpush1.msra.mxu0 %v2371
        %2407 = vmatprep.subr.mxu0 0.0
        %2408 = vmatpush1.msra.mxu0 %v2372
        %2409 = vmatprep.subr.mxu0 0.0
        %2410 = vmatpush1.msra.mxu0 %v2373
        %2411 = vmatprep.subr.mxu0 0.0
        %2412 = vmatpush1.msra.mxu0 %v2374
        %2413 = vmatprep.subr.mxu0 0.0
        %2414 = vmatpush1.msra.mxu0 %v2375
        %2415 = vmatprep.subr.mxu0 0.0
        %2416 = vmatpush1.msra.mxu0 %v2376
        %2417 = vmatprep.subr.mxu0 0.0
        %2418 = vmatpush1.msra.mxu0 %v2377
        %2419 = vmatprep.subr.mxu0 0.0
        %2420 = vmatpush1.msra.mxu0 %v2378
        %2421 = vmatprep.subr.mxu0 0.0
        %2422 = vmatpush1.msra.mxu0 %v2379
        %2423 = vmatprep.subr.mxu0 0.0
        %2424 = vmatpush1.msra.mxu0 0.0
        %2425 = vmatprep.subr.mxu0 0.0
        %2426 = vmatpush1.msra.mxu0 0.0
        %2427 = vmatprep.subr.mxu0 0.0
        %2428 = vmatpush1.msra.mxu0 0.0
        %2429 = vmatprep.subr.mxu0 0.0
        %2430 = vmatpush1.msra.mxu0 0.0
        %2431 = vmatprep.subr.mxu0 0.0
        %2432 = vmatpush1.msra.mxu0 0.0
        %2433 = vmatprep.subr.mxu0 0.0
        %2434 = vmatpush1.msra.mxu0 0.0
        %2435 = vmatprep.subr.mxu0 0.0
        %2436 = vmatpush1.msra.mxu0 0.0
        %2437 = vmatprep.subr.mxu0 0.0
        %2438 = vmatpush1.msra.mxu0 0.0
        %2439 = vmatprep.subr.mxu0 0.0
        %2440 = vmatpush1.msra.mxu0 0.0
        %2441 = vmatprep.subr.mxu0 0.0
        %2442 = vmatpush1.msra.mxu0 0.0
        %2443 = vmatprep.subr.mxu0 0.0
        %2444 = vmatpush1.msra.mxu0 0.0
        %2445 = vmatprep.subr.mxu0 0.0
        %2446 = vmatpush1.msra.mxu0 0.0
        %2447 = vmatprep.mubr.f32.mxu0 %v2381
        %2448 = vmatmul.mubr.f32.gmra.mrb[0].mxu0 %v2358
        %v2449 = vpop.f32.mrb[0].mxu0
        %v2450 = vadd.f32 0.0, %v2449
        %v2451 = vpop.f32.mrb[0].mxu0
        %2452 = vdwg.mxu0
        %v2453 = vld [vmem:[%s12] sm:$0xff]
        %v2454 = vld [vmem:[%s12 + $0x8] sm:$0xff]
        %v2455 = vld [vmem:[%s12 + $0x10] sm:$0xff]
        %v2456 = vld [vmem:[%s12 + $0x18] sm:$0xff]
        %v2457 = vld [vmem:[%s12 + $0x20] sm:$0xff]
        %v2458 = vld [vmem:[%s12 + $0x28] sm:$0xff]
        %v2459 = vld [vmem:[%s12 + $0x30] sm:$0xff]
        %v2460 = vld [vmem:[%s12 + $0x38] sm:$0xff]
        %v2461 = vld [vmem:[%s12 + $0x40] sm:$0xff]
        %v2462 = vld [vmem:[%s12 + $0x48] sm:$0xff]
        %v2463 = vld [vmem:[%s12 + $0x50] sm:$0xff]
        %v2464 = vld [vmem:[%s12 + $0x58] sm:$0xff]
        %v2465 = vld [vmem:[%s12 + $0x60] sm:$0xff]
        %v2466 = vld [vmem:[%s12 + $0x68] sm:$0xff]
        %v2467 = vld [vmem:[%s12 + $0x70] sm:$0xff]
        %v2468 = vld [vmem:[%s12 + $0x78] sm:$0xff]
        %v2469 = vld [vmem:[%s12 + $0x80] sm:$0xff]
        %v2470 = vld [vmem:[%s12 + $0x88] sm:$0xff]
        %v2471 = vld [vmem:[%s12 + $0x90] sm:$0xff]
        %v2472 = vld [vmem:[%s12 + $0x98] sm:$0xff]
        %2473 = vmatprep.subr.mxu0 0.0
        %2474 = vmatpush1.msra.mxu0 %v2453
        %2475 = vmatprep.subr.mxu0 0.0
        %2476 = vmatpush1.msra.mxu0 %v2454
        %2477 = vmatprep.subr.mxu0 0.0
        %2478 = vmatpush1.msra.mxu0 %v2455
        %2479 = vmatprep.subr.mxu0 0.0
        %2480 = vmatpush1.msra.mxu0 %v2456
        %2481 = vmatprep.subr.mxu0 0.0
        %2482 = vmatpush1.msra.mxu0 %v2457
        %2483 = vmatprep.subr.mxu0 0.0
        %2484 = vmatpush1.msra.mxu0 %v2458
        %2485 = vmatprep.subr.mxu0 0.0
        %2486 = vmatpush1.msra.mxu0 %v2459
        %2487 = vmatprep.subr.mxu0 0.0
        %2488 = vmatpush1.msra.mxu0 %v2460
        %2489 = vmatprep.subr.mxu0 0.0
        %2490 = vmatpush1.msra.mxu0 %v2461
        %2491 = vmatprep.subr.mxu0 0.0
        %2492 = vmatpush1.msra.mxu0 %v2462
        %2493 = vmatprep.subr.mxu0 0.0
        %2494 = vmatpush1.msra.mxu0 %v2463
        %2495 = vmatprep.subr.mxu0 0.0
        %2496 = vmatpush1.msra.mxu0 %v2464
        %2497 = vmatprep.subr.mxu0 0.0
        %2498 = vmatpush1.msra.mxu0 %v2465
        %2499 = vmatprep.subr.mxu0 0.0
        %2500 = vmatpush1.msra.mxu0 %v2466
        %2501 = vmatprep.subr.mxu0 0.0
        %2502 = vmatpush1.msra.mxu0 %v2467
        %2503 = vmatprep.subr.mxu0 0.0
        %2504 = vmatpush1.msra.mxu0 %v2468
        %2505 = vmatprep.subr.mxu0 0.0
        %2506 = vmatpush1.msra.mxu0 %v2469
        %2507 = vmatprep.subr.mxu0 0.0
        %2508 = vmatpush1.msra.mxu0 %v2470
        %2509 = vmatprep.subr.mxu0 0.0
        %2510 = vmatpush1.msra.mxu0 %v2471
        %2511 = vmatprep.subr.mxu0 0.0
        %2512 = vmatpush1.msra.mxu0 %v2472
        %2513 = vmatprep.subr.mxu0 0.0
        %2514 = vmatpush1.msra.mxu0 0.0
        %2515 = vmatprep.subr.mxu0 0.0
        %2516 = vmatpush1.msra.mxu0 0.0
        %2517 = vmatprep.subr.mxu0 0.0
        %2518 = vmatpush1.msra.mxu0 0.0
        %2519 = vmatprep.subr.mxu0 0.0
        %2520 = vmatpush1.msra.mxu0 0.0
        %2521 = vmatprep.subr.mxu0 0.0
        %2522 = vmatpush1.msra.mxu0 0.0
        %2523 = vmatprep.subr.mxu0 0.0
        %2524 = vmatpush1.msra.mxu0 0.0
        %2525 = vmatprep.subr.mxu0 0.0
        %2526 = vmatpush1.msra.mxu0 0.0
        %2527 = vmatprep.subr.mxu0 0.0
        %2528 = vmatpush1.msra.mxu0 0.0
        %2529 = vmatprep.subr.mxu0 0.0
        %2530 = vmatpush1.msra.mxu0 0.0
        %2531 = vmatprep.subr.mxu0 0.0
        %2532 = vmatpush1.msra.mxu0 0.0
        %2533 = vmatprep.subr.mxu0 0.0
        %2534 = vmatpush1.msra.mxu0 0.0
        %2535 = vmatprep.subr.mxu0 0.0
        %2536 = vmatpush1.msra.mxu0 0.0
        %2537 = vmatprep.mubr.f32.mxu0 %v2381
        %2538 = vmatmul.mubr.f32.gmra.mrb[0].mxu0 %v2358
        %v2539 = vpop.f32.mrb[0].mxu0
        %v2540 = vadd.f32 0.0, %v2539
        %v2541 = vpop.f32.mrb[0].mxu0
        %2542 = vdwg.mxu0
        %v2543 = vmax.f32 %v2450, %v2540
        %v2544 = vld [vmem:[%s13] sm:$0xff]
        %v2545 = vld [vmem:[%s13 + $0x8] sm:$0xff]
        %v2546 = vld [vmem:[%s13 + $0x10] sm:$0xff]
        %v2547 = vld [vmem:[%s13 + $0x18] sm:$0xff]
        %v2548 = vld [vmem:[%s13 + $0x20] sm:$0xff]
        %v2549 = vld [vmem:[%s13 + $0x28] sm:$0xff]
        %v2550 = vld [vmem:[%s13 + $0x30] sm:$0xff]
        %v2551 = vld [vmem:[%s13 + $0x38] sm:$0xff]
        %v2552 = vld [vmem:[%s13 + $0x40] sm:$0xff]
        %v2553 = vld [vmem:[%s13 + $0x48] sm:$0xff]
        %s2554 = scalar_lea.vmem %s13, 80
        %v2555 = vld [vmem:[%s2554] sm:$0xff]
        %v2556 = vld [vmem:[%s2554 + $0x8] sm:$0xff]
        %v2557 = vld [vmem:[%s2554 + $0x10] sm:$0xff]
        %v2558 = vld [vmem:[%s2554 + $0x18] sm:$0xff]
        %v2559 = vld [vmem:[%s2554 + $0x20] sm:$0xff]
        %v2560 = vld [vmem:[%s2554 + $0x28] sm:$0xff]
        %v2561 = vld [vmem:[%s2554 + $0x30] sm:$0xff]
        %v2562 = vld [vmem:[%s2554 + $0x38] sm:$0xff]
        %v2563 = vld [vmem:[%s2554 + $0x40] sm:$0xff]
        %v2564 = vld [vmem:[%s2554 + $0x48] sm:$0xff]
        %v2566 = vrot.slane %v2543, 1
        %vm2567 = vcmask 654336
        %v2568 = vsel %vm2567, %v2566, 0
        %2570 = vmatprep.subr.mxu0 0.0
        %2571 = vmatpush1.msra.mxu0 %v2555
        %2572 = vmatprep.subr.mxu0 0.0
        %2573 = vmatpush1.msra.mxu0 %v2556
        %2574 = vmatprep.subr.mxu0 0.0
        %2575 = vmatpush1.msra.mxu0 %v2557
        %2576 = vmatprep.subr.mxu0 0.0
        %2577 = vmatpush1.msra.mxu0 %v2558
        %2578 = vmatprep.subr.mxu0 0.0
        %2579 = vmatpush1.msra.mxu0 %v2559
        %2580 = vmatprep.subr.mxu0 0.0
        %2581 = vmatpush1.msra.mxu0 %v2560
        %2582 = vmatprep.subr.mxu0 0.0
        %2583 = vmatpush1.msra.mxu0 %v2561
        %2584 = vmatprep.subr.mxu0 0.0
        %2585 = vmatpush1.msra.mxu0 %v2562
        %2586 = vmatprep.subr.mxu0 0.0
        %2587 = vmatpush1.msra.mxu0 %v2563
        %2588 = vmatprep.subr.mxu0 0.0
        %2589 = vmatpush1.msra.mxu0 %v2564
        %2590 = vmatprep.subr.mxu0 0.0
        %2591 = vmatpush1.msra.mxu0 0.0
        %2592 = vmatprep.subr.mxu0 0.0
        %2593 = vmatpush1.msra.mxu0 0.0
        %2594 = vmatprep.subr.mxu0 0.0
        %2595 = vmatpush1.msra.mxu0 0.0
        %2596 = vmatprep.subr.mxu0 0.0
        %2597 = vmatpush1.msra.mxu0 0.0
        %2598 = vmatprep.subr.mxu0 0.0
        %2599 = vmatpush1.msra.mxu0 0.0
        %2600 = vmatprep.subr.mxu0 0.0
        %2601 = vmatpush1.msra.mxu0 0.0
        %2602 = vmatprep.subr.mxu0 0.0
        %2603 = vmatpush1.msra.mxu0 0.0
        %2604 = vmatprep.subr.mxu0 0.0
        %2605 = vmatpush1.msra.mxu0 0.0
        %2606 = vmatprep.subr.mxu0 0.0
        %2607 = vmatpush1.msra.mxu0 0.0
        %2608 = vmatprep.subr.mxu0 0.0
        %2609 = vmatpush1.msra.mxu0 0.0
        %2610 = vmatprep.subr.mxu0 0.0
        %2611 = vmatpush1.msra.mxu0 0.0
        %2612 = vmatprep.subr.mxu0 0.0
        %2613 = vmatpush1.msra.mxu0 0.0
        %2614 = vmatprep.subr.mxu0 0.0
        %2615 = vmatpush1.msra.mxu0 0.0
        %2616 = vmatprep.subr.mxu0 0.0
        %2617 = vmatpush1.msra.mxu0 0.0
        %2618 = vmatprep.subr.mxu0 0.0
        %2619 = vmatpush1.msra.mxu0 0.0
        %2620 = vmatprep.subr.mxu0 0.0
        %2621 = vmatpush1.msra.mxu0 0.0
        %2622 = vmatprep.subr.mxu0 0.0
        %2623 = vmatpush1.msra.mxu0 0.0
        %2624 = vmatprep.subr.mxu0 0.0
        %2625 = vmatpush1.msra.mxu0 0.0
        %2626 = vmatprep.subr.mxu0 0.0
        %2627 = vmatpush1.msra.mxu0 0.0
        %2628 = vmatprep.subr.mxu0 0.0
        %2629 = vmatpush1.msra.mxu0 0.0
        %2630 = vmatprep.subr.mxu0 0.0
        %2631 = vmatpush1.msra.mxu0 0.0
        %2632 = vmatprep.subr.mxu0 0.0
        %2633 = vmatpush1.msra.mxu0 0.0
        %2634 = vmatprep.mubr.f32.mxu0 0.0
        %2635 = vmatmul.mubr.f32.gmra.mrb[0].mxu0 %v2568
        %v2636 = vpop.f32.mrb[0].mxu0
        %v2637 = vadd.f32 0.0, %v2636
        %v2638 = vpop.f32.mrb[0].mxu0
        %2639 = vdwg.mxu0
        %v2640 = vsel %vm2567, %v2543, 0
        %2642 = vmatprep.subr.mxu0 0.0
        %2643 = vmatpush1.msra.mxu0 %v2544
        %2644 = vmatprep.subr.mxu0 0.0
        %2645 = vmatpush1.msra.mxu0 %v2545
        %2646 = vmatprep.subr.mxu0 0.0
        %2647 = vmatpush1.msra.mxu0 %v2546
        %2648 = vmatprep.subr.mxu0 0.0
        %2649 = vmatpush1.msra.mxu0 %v2547
        %2650 = vmatprep.subr.mxu0 0.0
        %2651 = vmatpush1.msra.mxu0 %v2548
        %2652 = vmatprep.subr.mxu0 0.0
        %2653 = vmatpush1.msra.mxu0 %v2549
        %2654 = vmatprep.subr.mxu0 0.0
        %2655 = vmatpush1.msra.mxu0 %v2550
        %2656 = vmatprep.subr.mxu0 0.0
        %2657 = vmatpush1.msra.mxu0 %v2551
        %2658 = vmatprep.subr.mxu0 0.0
        %2659 = vmatpush1.msra.mxu0 %v2552
        %2660 = vmatprep.subr.mxu0 0.0
        %2661 = vmatpush1.msra.mxu0 %v2553
        %2662 = vmatprep.subr.mxu0 0.0
        %2663 = vmatpush1.msra.mxu0 0.0
        %2664 = vmatprep.subr.mxu0 0.0
        %2665 = vmatpush1.msra.mxu0 0.0
        %2666 = vmatprep.subr.mxu0 0.0
        %2667 = vmatpush1.msra.mxu0 0.0
        %2668 = vmatprep.subr.mxu0 0.0
        %2669 = vmatpush1.msra.mxu0 0.0
        %2670 = vmatprep.subr.mxu0 0.0
        %2671 = vmatpush1.msra.mxu0 0.0
        %2672 = vmatprep.subr.mxu0 0.0
        %2673 = vmatpush1.msra.mxu0 0.0
        %2674 = vmatprep.subr.mxu0 0.0
        %2675 = vmatpush1.msra.mxu0 0.0
        %2676 = vmatprep.subr.mxu0 0.0
        %2677 = vmatpush1.msra.mxu0 0.0
        %2678 = vmatprep.subr.mxu0 0.0
        %2679 = vmatpush1.msra.mxu0 0.0
        %2680 = vmatprep.subr.mxu0 0.0
        %2681 = vmatpush1.msra.mxu0 0.0
        %2682 = vmatprep.subr.mxu0 0.0
        %2683 = vmatpush1.msra.mxu0 0.0
        %2684 = vmatprep.subr.mxu0 0.0
        %2685 = vmatpush1.msra.mxu0 0.0
        %2686 = vmatprep.subr.mxu0 0.0
        %2687 = vmatpush1.msra.mxu0 0.0
        %2688 = vmatprep.subr.mxu0 0.0
        %2689 = vmatpush1.msra.mxu0 0.0
        %2690 = vmatprep.subr.mxu0 0.0
        %2691 = vmatpush1.msra.mxu0 0.0
        %2692 = vmatprep.subr.mxu0 0.0
        %2693 = vmatpush1.msra.mxu0 0.0
        %2694 = vmatprep.subr.mxu0 0.0
        %2695 = vmatpush1.msra.mxu0 0.0
        %2696 = vmatprep.subr.mxu0 0.0
        %2697 = vmatpush1.msra.mxu0 0.0
        %2698 = vmatprep.subr.mxu0 0.0
        %2699 = vmatpush1.msra.mxu0 0.0
        %2700 = vmatprep.subr.mxu0 0.0
        %2701 = vmatpush1.msra.mxu0 0.0
        %2702 = vmatprep.subr.mxu0 0.0
        %2703 = vmatpush1.msra.mxu0 0.0
        %2704 = vmatprep.subr.mxu0 0.0
        %2705 = vmatpush1.msra.mxu0 0.0
        %2706 = vmatprep.mubr.f32.mxu0 0.0
        %2707 = vmatmul.mubr.f32.gmra.mrb[0].mxu0 %v2640
        %v2708 = vpop.f32.mrb[0].mxu0
        %v2709 = vadd.f32 %v2637, %v2708
        %v2710 = vpop.f32.mrb[0].mxu0
        %2711 = vdwg.mxu0
        %s2712 = scalar_lea.vmem %s13, 160
        %v2713 = vld [vmem:[%s2712] sm:$0xff]
        %v2714 = vld [vmem:[%s2712 + $0x8] sm:$0xff]
        %v2715 = vld [vmem:[%s2712 + $0x10] sm:$0xff]
        %v2716 = vld [vmem:[%s2712 + $0x18] sm:$0xff]
        %v2717 = vld [vmem:[%s2712 + $0x20] sm:$0xff]
        %v2718 = vld [vmem:[%s2712 + $0x28] sm:$0xff]
        %v2719 = vld [vmem:[%s2712 + $0x30] sm:$0xff]
        %v2720 = vld [vmem:[%s2712 + $0x38] sm:$0xff]
        %v2721 = vld [vmem:[%s2712 + $0x40] sm:$0xff]
        %v2722 = vld [vmem:[%s2712 + $0x48] sm:$0xff]
        %v2723 = vrot.slane %v2543, 2
        %v2724 = vsel %vm2567, %v2723, 0
        %2726 = vmatprep.subr.mxu0 0.0
        %2727 = vmatpush1.msra.mxu0 %v2713
        %2728 = vmatprep.subr.mxu0 0.0
        %2729 = vmatpush1.msra.mxu0 %v2714
        %2730 = vmatprep.subr.mxu0 0.0
        %2731 = vmatpush1.msra.mxu0 %v2715
        %2732 = vmatprep.subr.mxu0 0.0
        %2733 = vmatpush1.msra.mxu0 %v2716
        %2734 = vmatprep.subr.mxu0 0.0
        %2735 = vmatpush1.msra.mxu0 %v2717
        %2736 = vmatprep.subr.mxu0 0.0
        %2737 = vmatpush1.msra.mxu0 %v2718
        %2738 = vmatprep.subr.mxu0 0.0
        %2739 = vmatpush1.msra.mxu0 %v2719
        %2740 = vmatprep.subr.mxu0 0.0
        %2741 = vmatpush1.msra.mxu0 %v2720
        %2742 = vmatprep.subr.mxu0 0.0
        %2743 = vmatpush1.msra.mxu0 %v2721
        %2744 = vmatprep.subr.mxu0 0.0
        %2745 = vmatpush1.msra.mxu0 %v2722
        %2746 = vmatprep.subr.mxu0 0.0
        %2747 = vmatpush1.msra.mxu0 0.0
        %2748 = vmatprep.subr.mxu0 0.0
        %2749 = vmatpush1.msra.mxu0 0.0
        %2750 = vmatprep.subr.mxu0 0.0
        %2751 = vmatpush1.msra.mxu0 0.0
        %2752 = vmatprep.subr.mxu0 0.0
        %2753 = vmatpush1.msra.mxu0 0.0
        %2754 = vmatprep.subr.mxu0 0.0
        %2755 = vmatpush1.msra.mxu0 0.0
        %2756 = vmatprep.subr.mxu0 0.0
        %2757 = vmatpush1.msra.mxu0 0.0
        %2758 = vmatprep.subr.mxu0 0.0
        %2759 = vmatpush1.msra.mxu0 0.0
        %2760 = vmatprep.subr.mxu0 0.0
        %2761 = vmatpush1.msra.mxu0 0.0
        %2762 = vmatprep.subr.mxu0 0.0
        %2763 = vmatpush1.msra.mxu0 0.0
        %2764 = vmatprep.subr.mxu0 0.0
        %2765 = vmatpush1.msra.mxu0 0.0
        %2766 = vmatprep.subr.mxu0 0.0
        %2767 = vmatpush1.msra.mxu0 0.0
        %2768 = vmatprep.subr.mxu0 0.0
        %2769 = vmatpush1.msra.mxu0 0.0
        %2770 = vmatprep.subr.mxu0 0.0
        %2771 = vmatpush1.msra.mxu0 0.0
        %2772 = vmatprep.subr.mxu0 0.0
        %2773 = vmatpush1.msra.mxu0 0.0
        %2774 = vmatprep.subr.mxu0 0.0
        %2775 = vmatpush1.msra.mxu0 0.0
        %2776 = vmatprep.subr.mxu0 0.0
        %2777 = vmatpush1.msra.mxu0 0.0
        %2778 = vmatprep.subr.mxu0 0.0
        %2779 = vmatpush1.msra.mxu0 0.0
        %2780 = vmatprep.subr.mxu0 0.0
        %2781 = vmatpush1.msra.mxu0 0.0
        %2782 = vmatprep.subr.mxu0 0.0
        %2783 = vmatpush1.msra.mxu0 0.0
        %2784 = vmatprep.subr.mxu0 0.0
        %2785 = vmatpush1.msra.mxu0 0.0
        %2786 = vmatprep.subr.mxu0 0.0
        %2787 = vmatpush1.msra.mxu0 0.0
        %2788 = vmatprep.subr.mxu0 0.0
        %2789 = vmatpush1.msra.mxu0 0.0
        %2790 = vmatprep.mubr.f32.mxu0 0.0
        %2791 = vmatmul.mubr.f32.gmra.mrb[0].mxu0 %v2724
        %v2792 = vpop.f32.mrb[0].mxu0
        %v2793 = vadd.f32 0.0, %v2792
        %v2794 = vpop.f32.mrb[0].mxu0
        %2795 = vdwg.mxu0
        %v2796 = vadd.f32 %v2709, %v2793
        %s2797 = scalar_lea.vmem %s13, 240
        %v2798 = vld [vmem:[%s2797] sm:$0xff]
        %v2799 = vld [vmem:[%s2797 + $0x8] sm:$0xff]
        %v2800 = vld [vmem:[%s2797 + $0x10] sm:$0xff]
        %v2801 = vld [vmem:[%s2797 + $0x18] sm:$0xff]
        %v2802 = vld [vmem:[%s2797 + $0x20] sm:$0xff]
        %v2803 = vld [vmem:[%s2797 + $0x28] sm:$0xff]
        %v2804 = vld [vmem:[%s2797 + $0x30] sm:$0xff]
        %v2805 = vld [vmem:[%s2797 + $0x38] sm:$0xff]
        %v2806 = vld [vmem:[%s2797 + $0x40] sm:$0xff]
        %v2807 = vld [vmem:[%s2797 + $0x48] sm:$0xff]
        %v2808 = vrot.slane %v2543, 3
        %v2809 = vsel %vm2567, %v2808, 0
        %2811 = vmatprep.subr.mxu0 0.0
        %2812 = vmatpush1.msra.mxu0 %v2798
        %2813 = vmatprep.subr.mxu0 0.0
        %2814 = vmatpush1.msra.mxu0 %v2799
        %2815 = vmatprep.subr.mxu0 0.0
        %2816 = vmatpush1.msra.mxu0 %v2800
        %2817 = vmatprep.subr.mxu0 0.0
        %2818 = vmatpush1.msra.mxu0 %v2801
        %2819 = vmatprep.subr.mxu0 0.0
        %2820 = vmatpush1.msra.mxu0 %v2802
        %2821 = vmatprep.subr.mxu0 0.0
        %2822 = vmatpush1.msra.mxu0 %v2803
        %2823 = vmatprep.subr.mxu0 0.0
        %2824 = vmatpush1.msra.mxu0 %v2804
        %2825 = vmatprep.subr.mxu0 0.0
        %2826 = vmatpush1.msra.mxu0 %v2805
        %2827 = vmatprep.subr.mxu0 0.0
        %2828 = vmatpush1.msra.mxu0 %v2806
        %2829 = vmatprep.subr.mxu0 0.0
        %2830 = vmatpush1.msra.mxu0 %v2807
        %2831 = vmatprep.subr.mxu0 0.0
        %2832 = vmatpush1.msra.mxu0 0.0
        %2833 = vmatprep.subr.mxu0 0.0
        %2834 = vmatpush1.msra.mxu0 0.0
        %2835 = vmatprep.subr.mxu0 0.0
        %2836 = vmatpush1.msra.mxu0 0.0
        %2837 = vmatprep.subr.mxu0 0.0
        %2838 = vmatpush1.msra.mxu0 0.0
        %2839 = vmatprep.subr.mxu0 0.0
        %2840 = vmatpush1.msra.mxu0 0.0
        %2841 = vmatprep.subr.mxu0 0.0
        %2842 = vmatpush1.msra.mxu0 0.0
        %2843 = vmatprep.subr.mxu0 0.0
        %2844 = vmatpush1.msra.mxu0 0.0
        %2845 = vmatprep.subr.mxu0 0.0
        %2846 = vmatpush1.msra.mxu0 0.0
        %2847 = vmatprep.subr.mxu0 0.0
        %2848 = vmatpush1.msra.mxu0 0.0
        %2849 = vmatprep.subr.mxu0 0.0
        %2850 = vmatpush1.msra.mxu0 0.0
        %2851 = vmatprep.subr.mxu0 0.0
        %2852 = vmatpush1.msra.mxu0 0.0
        %2853 = vmatprep.subr.mxu0 0.0
        %2854 = vmatpush1.msra.mxu0 0.0
        %2855 = vmatprep.subr.mxu0 0.0
        %2856 = vmatpush1.msra.mxu0 0.0
        %2857 = vmatprep.subr.mxu0 0.0
        %2858 = vmatpush1.msra.mxu0 0.0
        %2859 = vmatprep.subr.mxu0 0.0
        %2860 = vmatpush1.msra.mxu0 0.0
        %2861 = vmatprep.subr.mxu0 0.0
        %2862 = vmatpush1.msra.mxu0 0.0
        %2863 = vmatprep.subr.mxu0 0.0
        %2864 = vmatpush1.msra.mxu0 0.0
        %2865 = vmatprep.subr.mxu0 0.0
        %2866 = vmatpush1.msra.mxu0 0.0
        %2867 = vmatprep.subr.mxu0 0.0
        %2868 = vmatpush1.msra.mxu0 0.0
        %2869 = vmatprep.subr.mxu0 0.0
        %2870 = vmatpush1.msra.mxu0 0.0
        %2871 = vmatprep.subr.mxu0 0.0
        %2872 = vmatpush1.msra.mxu0 0.0
        %2873 = vmatprep.subr.mxu0 0.0
        %2874 = vmatpush1.msra.mxu0 0.0
        %2875 = vmatprep.mubr.f32.mxu0 0.0
        %2876 = vmatmul.mubr.f32.gmra.mrb[0].mxu0 %v2809
        %v2877 = vpop.f32.mrb[0].mxu0
        %v2878 = vadd.f32 0.0, %v2877
        %v2879 = vpop.f32.mrb[0].mxu0
        %2880 = vdwg.mxu0
        %v2881 = vadd.f32 %v2796, %v2878
        %s2882 = scalar_lea.vmem %s13, 320
        %v2883 = vld [vmem:[%s2882] sm:$0xff]
        %v2884 = vld [vmem:[%s2882 + $0x8] sm:$0xff]
        %v2885 = vld [vmem:[%s2882 + $0x10] sm:$0xff]
        %v2886 = vld [vmem:[%s2882 + $0x18] sm:$0xff]
        %v2887 = vld [vmem:[%s2882 + $0x20] sm:$0xff]
        %v2888 = vld [vmem:[%s2882 + $0x28] sm:$0xff]
        %v2889 = vld [vmem:[%s2882 + $0x30] sm:$0xff]
        %v2890 = vld [vmem:[%s2882 + $0x38] sm:$0xff]
        %v2891 = vld [vmem:[%s2882 + $0x40] sm:$0xff]
        %v2892 = vld [vmem:[%s2882 + $0x48] sm:$0xff]
        %v2893 = vrot.slane %v2543, 4
        %v2894 = vsel %vm2567, %v2893, 0
        %2896 = vmatprep.subr.mxu0 0.0
        %2897 = vmatpush1.msra.mxu0 %v2883
        %2898 = vmatprep.subr.mxu0 0.0
        %2899 = vmatpush1.msra.mxu0 %v2884
        %2900 = vmatprep.subr.mxu0 0.0
        %2901 = vmatpush1.msra.mxu0 %v2885
        %2902 = vmatprep.subr.mxu0 0.0
        %2903 = vmatpush1.msra.mxu0 %v2886
        %2904 = vmatprep.subr.mxu0 0.0
        %2905 = vmatpush1.msra.mxu0 %v2887
        %2906 = vmatprep.subr.mxu0 0.0
        %2907 = vmatpush1.msra.mxu0 %v2888
        %2908 = vmatprep.subr.mxu0 0.0
        %2909 = vmatpush1.msra.mxu0 %v2889
        %2910 = vmatprep.subr.mxu0 0.0
        %2911 = vmatpush1.msra.mxu0 %v2890
        %2912 = vmatprep.subr.mxu0 0.0
        %2913 = vmatpush1.msra.mxu0 %v2891
        %2914 = vmatprep.subr.mxu0 0.0
        %2915 = vmatpush1.msra.mxu0 %v2892
        %2916 = vmatprep.subr.mxu0 0.0
        %2917 = vmatpush1.msra.mxu0 0.0
        %2918 = vmatprep.subr.mxu0 0.0
        %2919 = vmatpush1.msra.mxu0 0.0
        %2920 = vmatprep.subr.mxu0 0.0
        %2921 = vmatpush1.msra.mxu0 0.0
        %2922 = vmatprep.subr.mxu0 0.0
        %2923 = vmatpush1.msra.mxu0 0.0
        %2924 = vmatprep.subr.mxu0 0.0
        %2925 = vmatpush1.msra.mxu0 0.0
        %2926 = vmatprep.subr.mxu0 0.0
        %2927 = vmatpush1.msra.mxu0 0.0
        %2928 = vmatprep.subr.mxu0 0.0
        %2929 = vmatpush1.msra.mxu0 0.0
        %2930 = vmatprep.subr.mxu0 0.0
        %2931 = vmatpush1.msra.mxu0 0.0
        %2932 = vmatprep.subr.mxu0 0.0
        %2933 = vmatpush1.msra.mxu0 0.0
        %2934 = vmatprep.subr.mxu0 0.0
        %2935 = vmatpush1.msra.mxu0 0.0
        %2936 = vmatprep.subr.mxu0 0.0
        %2937 = vmatpush1.msra.mxu0 0.0
        %2938 = vmatprep.subr.mxu0 0.0
        %2939 = vmatpush1.msra.mxu0 0.0
        %2940 = vmatprep.subr.mxu0 0.0
        %2941 = vmatpush1.msra.mxu0 0.0
        %2942 = vmatprep.subr.mxu0 0.0
        %2943 = vmatpush1.msra.mxu0 0.0
        %2944 = vmatprep.subr.mxu0 0.0
        %2945 = vmatpush1.msra.mxu0 0.0
        %2946 = vmatprep.subr.mxu0 0.0
        %2947 = vmatpush1.msra.mxu0 0.0
        %2948 = vmatprep.subr.mxu0 0.0
        %2949 = vmatpush1.msra.mxu0 0.0
        %2950 = vmatprep.subr.mxu0 0.0
        %2951 = vmatpush1.msra.mxu0 0.0
        %2952 = vmatprep.subr.mxu0 0.0
        %2953 = vmatpush1.msra.mxu0 0.0
        %2954 = vmatprep.subr.mxu0 0.0
        %2955 = vmatpush1.msra.mxu0 0.0
        %2956 = vmatprep.subr.mxu0 0.0
        %2957 = vmatpush1.msra.mxu0 0.0
        %2958 = vmatprep.subr.mxu0 0.0
        %2959 = vmatpush1.msra.mxu0 0.0
        %2960 = vmatprep.mubr.f32.mxu0 0.0
        %2961 = vmatmul.mubr.f32.gmra.mrb[0].mxu0 %v2894
        %v2962 = vpop.f32.mrb[0].mxu0
        %v2963 = vadd.f32 0.0, %v2962
        %v2964 = vpop.f32.mrb[0].mxu0
        %2965 = vdwg.mxu0
        %v2966 = vadd.f32 %v2881, %v2963
        %v2967 = vld [vmem:[%s14] sm:$0x1]
        %v2968 = vadd.f32 %v2966, %v2967
        %v2969 = vmax.f32 %v2968, 0.0
        %v2970 = vld [vmem:[%s15] sm:$0xff]
        %v2971 = vld [vmem:[%s15 + $0x8] sm:$0xff]
        %v2972 = vld [vmem:[%s15 + $0x10] sm:$0xff]
        %v2973 = vld [vmem:[%s15 + $0x18] sm:$0xff]
        %v2974 = vld [vmem:[%s15 + $0x20] sm:$0xff]
        %v2975 = vld [vmem:[%s15 + $0x28] sm:$0xff]
        %v2976 = vld [vmem:[%s15 + $0x30] sm:$0xff]
        %v2977 = vld [vmem:[%s15 + $0x38] sm:$0xff]
        %v2978 = vld [vmem:[%s15 + $0x40] sm:$0xff]
        %v2979 = vld [vmem:[%s15 + $0x48] sm:$0xff]
        %v2980 = vld [vmem:[%s15 + $0x50] sm:$0xff]
        %v2981 = vld [vmem:[%s15 + $0x58] sm:$0xff]
        %v2982 = vld [vmem:[%s15 + $0x60] sm:$0xff]
        %v2983 = vld [vmem:[%s15 + $0x68] sm:$0xff]
        %v2984 = vld [vmem:[%s15 + $0x70] sm:$0xff]
        %v2985 = vld [vmem:[%s15 + $0x78] sm:$0xff]
        %v2986 = vld [vmem:[%s16] sm:$0x1]
        %2987 = vmatprep.subr.mxu0 0.0
        %2988 = vmatpush1.msra.mxu0 %v2970
        %2989 = vmatprep.subr.mxu0 0.0
        %2990 = vmatpush1.msra.mxu0 %v2971
        %2991 = vmatprep.subr.mxu0 0.0
        %2992 = vmatpush1.msra.mxu0 %v2972
        %2993 = vmatprep.subr.mxu0 0.0
        %2994 = vmatpush1.msra.mxu0 %v2973
        %2995 = vmatprep.subr.mxu0 0.0
        %2996 = vmatpush1.msra.mxu0 %v2974
        %2997 = vmatprep.subr.mxu0 0.0
        %2998 = vmatpush1.msra.mxu0 %v2975
        %2999 = vmatprep.subr.mxu0 0.0
        %3000 = vmatpush1.msra.mxu0 %v2976
        %3001 = vmatprep.subr.mxu0 0.0
        %3002 = vmatpush1.msra.mxu0 %v2977
        %3003 = vmatprep.subr.mxu0 0.0
        %3004 = vmatpush1.msra.mxu0 %v2978
        %3005 = vmatprep.subr.mxu0 0.0
        %3006 = vmatpush1.msra.mxu0 %v2979
        %3007 = vmatprep.subr.mxu0 0.0
        %3008 = vmatpush1.msra.mxu0 %v2980
        %3009 = vmatprep.subr.mxu0 0.0
        %3010 = vmatpush1.msra.mxu0 %v2981
        %3011 = vmatprep.subr.mxu0 0.0
        %3012 = vmatpush1.msra.mxu0 %v2982
        %3013 = vmatprep.subr.mxu0 0.0
        %3014 = vmatpush1.msra.mxu0 %v2983
        %3015 = vmatprep.subr.mxu0 0.0
        %3016 = vmatpush1.msra.mxu0 %v2984
        %3017 = vmatprep.subr.mxu0 0.0
        %3018 = vmatpush1.msra.mxu0 %v2985
        %3019 = vmatprep.subr.mxu0 0.0
        %3020 = vmatpush1.msra.mxu0 0.0
        %3021 = vmatprep.subr.mxu0 0.0
        %3022 = vmatpush1.msra.mxu0 0.0
        %3023 = vmatprep.subr.mxu0 0.0
        %3024 = vmatpush1.msra.mxu0 0.0
        %3025 = vmatprep.subr.mxu0 0.0
        %3026 = vmatpush1.msra.mxu0 0.0
        %3027 = vmatprep.subr.mxu0 0.0
        %3028 = vmatpush1.msra.mxu0 0.0
        %3029 = vmatprep.subr.mxu0 0.0
        %3030 = vmatpush1.msra.mxu0 0.0
        %3031 = vmatprep.subr.mxu0 0.0
        %3032 = vmatpush1.msra.mxu0 0.0
        %3033 = vmatprep.subr.mxu0 0.0
        %3034 = vmatpush1.msra.mxu0 0.0
        %3035 = vmatprep.subr.mxu0 0.0
        %3036 = vmatpush1.msra.mxu0 0.0
        %3037 = vmatprep.subr.mxu0 0.0
        %3038 = vmatpush1.msra.mxu0 0.0
        %3039 = vmatprep.subr.mxu0 0.0
        %3040 = vmatpush1.msra.mxu0 0.0
        %3041 = vmatprep.subr.mxu0 0.0
        %3042 = vmatpush1.msra.mxu0 0.0
        %3043 = vmatprep.subr.mxu0 0.0
        %3044 = vmatpush1.msra.mxu0 0.0
        %3045 = vmatprep.subr.mxu0 0.0
        %3046 = vmatpush1.msra.mxu0 0.0
        %3047 = vmatprep.subr.mxu0 0.0
        %3048 = vmatpush1.msra.mxu0 0.0
        %3049 = vmatprep.subr.mxu0 0.0
        %3050 = vmatpush1.msra.mxu0 0.0
        %3051 = vmatprep.mubr.f32.mxu0 0.0
        %3052 = vmatmul.mubr.f32.gmra.mrb[0].mxu0 %v2969
        %v3053 = vpop.f32.mrb[0].mxu0
        %v3054 = vadd.f32 %v2986, %v3053
        %v3055 = vpop.f32.mrb[0].mxu0
        %3056 = vdwg.mxu0
        %v3057 = vmax.f32 %v3054, 0.0
        %v3058 = vld [vmem:[%s17] sm:$0xff]
        %v3059 = vld [vmem:[%s17 + $0x8] sm:$0xff]
        %v3060 = vld [vmem:[%s17 + $0x10] sm:$0xff]
        %v3061 = vld [vmem:[%s17 + $0x18] sm:$0xff]
        %v3062 = vld [vmem:[%s17 + $0x20] sm:$0xff]
        %v3063 = vld [vmem:[%s17 + $0x28] sm:$0xff]
        %v3064 = vld [vmem:[%s17 + $0x30] sm:$0xff]
        %v3065 = vld [vmem:[%s17 + $0x38] sm:$0xff]
        %v3066 = vld [vmem:[%s17 + $0x40] sm:$0xff]
        %v3067 = vld [vmem:[%s17 + $0x48] sm:$0xff]
        %v3068 = vld [vmem:[%s17 + $0x50] sm:$0xff]
        %v3069 = vld [vmem:[%s17 + $0x58] sm:$0xff]
        %v3070 = vld [vmem:[%s17 + $0x60] sm:$0xff]
        %v3071 = vld [vmem:[%s17 + $0x68] sm:$0xff]
        %v3072 = vld [vmem:[%s17 + $0x70] sm:$0xff]
        %v3073 = vld [vmem:[%s17 + $0x78] sm:$0xff]
        %v3074 = vld [vmem:[%s18] sm:$0x1]
        %3075 = vmatprep.subr.mxu0 0.0
        %3076 = vmatpush1.msra.mxu0 %v3058
        %3077 = vmatprep.subr.mxu0 0.0
        %3078 = vmatpush1.msra.mxu0 %v3059
        %3079 = vmatprep.subr.mxu0 0.0
        %3080 = vmatpush1.msra.mxu0 %v3060
        %3081 = vmatprep.subr.mxu0 0.0
        %3082 = vmatpush1.msra.mxu0 %v3061
        %3083 = vmatprep.subr.mxu0 0.0
        %3084 = vmatpush1.msra.mxu0 %v3062
        %3085 = vmatprep.subr.mxu0 0.0
        %3086 = vmatpush1.msra.mxu0 %v3063
        %3087 = vmatprep.subr.mxu0 0.0
        %3088 = vmatpush1.msra.mxu0 %v3064
        %3089 = vmatprep.subr.mxu0 0.0
        %3090 = vmatpush1.msra.mxu0 %v3065
        %3091 = vmatprep.subr.mxu0 0.0
        %3092 = vmatpush1.msra.mxu0 %v3066
        %3093 = vmatprep.subr.mxu0 0.0
        %3094 = vmatpush1.msra.mxu0 %v3067
        %3095 = vmatprep.subr.mxu0 0.0
        %3096 = vmatpush1.msra.mxu0 %v3068
        %3097 = vmatprep.subr.mxu0 0.0
        %3098 = vmatpush1.msra.mxu0 %v3069
        %3099 = vmatprep.subr.mxu0 0.0
        %3100 = vmatpush1.msra.mxu0 %v3070
        %3101 = vmatprep.subr.mxu0 0.0
        %3102 = vmatpush1.msra.mxu0 %v3071
        %3103 = vmatprep.subr.mxu0 0.0
        %3104 = vmatpush1.msra.mxu0 %v3072
        %3105 = vmatprep.subr.mxu0 0.0
        %3106 = vmatpush1.msra.mxu0 %v3073
        %3107 = vmatprep.subr.mxu0 0.0
        %3108 = vmatpush1.msra.mxu0 0.0
        %3109 = vmatprep.subr.mxu0 0.0
        %3110 = vmatpush1.msra.mxu0 0.0
        %3111 = vmatprep.subr.mxu0 0.0
        %3112 = vmatpush1.msra.mxu0 0.0
        %3113 = vmatprep.subr.mxu0 0.0
        %3114 = vmatpush1.msra.mxu0 0.0
        %3115 = vmatprep.subr.mxu0 0.0
        %3116 = vmatpush1.msra.mxu0 0.0
        %3117 = vmatprep.subr.mxu0 0.0
        %3118 = vmatpush1.msra.mxu0 0.0
        %3119 = vmatprep.subr.mxu0 0.0
        %3120 = vmatpush1.msra.mxu0 0.0
        %3121 = vmatprep.subr.mxu0 0.0
        %3122 = vmatpush1.msra.mxu0 0.0
        %3123 = vmatprep.subr.mxu0 0.0
        %3124 = vmatpush1.msra.mxu0 0.0
        %3125 = vmatprep.subr.mxu0 0.0
        %3126 = vmatpush1.msra.mxu0 0.0
        %3127 = vmatprep.subr.mxu0 0.0
        %3128 = vmatpush1.msra.mxu0 0.0
        %3129 = vmatprep.subr.mxu0 0.0
        %3130 = vmatpush1.msra.mxu0 0.0
        %3131 = vmatprep.subr.mxu0 0.0
        %3132 = vmatpush1.msra.mxu0 0.0
        %3133 = vmatprep.subr.mxu0 0.0
        %3134 = vmatpush1.msra.mxu0 0.0
        %3135 = vmatprep.subr.mxu0 0.0
        %3136 = vmatpush1.msra.mxu0 0.0
        %3137 = vmatprep.subr.mxu0 0.0
        %3138 = vmatpush1.msra.mxu0 0.0
        %3139 = vmatprep.mubr.f32.mxu0 0.0
        %3140 = vmatmul.mubr.f32.gmra.mrb[0].mxu0 %v3057
        %v3141 = vpop.f32.mrb[0].mxu0
        %v3142 = vadd.f32 %v3074, %v3141
        %v3143 = vpop.f32.mrb[0].mxu0
        %3144 = vdwg.mxu0
        %3145 = vst [vmem:[%s594] sm:$0x1] %v3142
        %s3146 = sand.u32 %s445, 1
        %s3147 = scalar_lea.sflag [#allocation3], %s3146
        %s3148 = sand.u32 %s445, 1
        %s3149 = scalar_lea.vmem [#allocation2], %s3148
        // Predicated region
        $region97: #{lenet_pallas.1} parent=95 // pred_check
          %p3150 = pneg %p455
        $region98: #{lenet_pallas.1} parent=95 // pred_check_branch
          %3152 = sbr.rel (%p3150) target = $region100
        $region99: #{lenet_pallas.1} parent=95 // pred_region
          %s3154 = ssub.s32 16, 16
          %3155 = vsyncadd %s3147, %s3154
          %s3156 = smul.addr %s33, 16
          %s3157 = scalar_lea.hbm %s19, %s3156
          %s3159 = sshll.u32 %s3149, 4
          %s3160 = int_to_ptr.vmem [resolvable:$true] %s3159
          %3162 = dma.vmem_to_hbm [thread:$0]  %s3160, 16, %s3157, %s3147
        $region100: #{lenet_pallas.1} parent=95 // pred_fallthru
          _
      $region96: #{lenet_pallas.1} parent=5 // pred_fallthru
        _
      %p3163 = scmp.le.s32.totalorder 2, %s28
      // Predicated region
      $region101: #{lenet_pallas.1} parent=5 // pred_check
        %p3164 = pneg %p3163
      $region102: #{lenet_pallas.1} parent=5 // pred_check_branch
        %3166 = sbr.rel (%p3164) target = $region104
      $region103: #{lenet_pallas.1} parent=5 // pred_region
        %s3167 = ssub.s32 %s28, 2
        // Predicated region
        $region105: #{lenet_pallas.1} parent=103 // pred_check
          %p3168 = pneg %p461
        $region106: #{lenet_pallas.1} parent=103 // pred_check_branch
          %3170 = sbr.rel (%p3168) target = $region108
        $region107: #{lenet_pallas.1} parent=103 // pred_region
          %s3171 = sand.u32 %s446, 1
          %s3172 = scalar_lea.sflag [#allocation3], %s3171
          %s3173 = sand.u32 %s446, 1
          %s3174 = scalar_lea.vmem [#allocation2], %s3173
          %3175 = dma.done %s3172, 16
        $region108: #{lenet_pallas.1} parent=103 // pred_fallthru
          _
      $region104: #{lenet_pallas.1} parent=5 // pred_fallthru
        _
    $region6: #{lenet_pallas.1} parent=1 // loop_footer
      %s32 = sadd.s32 1, %s28
    $region7: #{lenet_pallas.1} parent=1 // loop_footer_branch
      %27 = sbr.rel target = $region3
    $region8: #{lenet_pallas.1} parent=1 // loop_exit
      _
    %3176 = vsyncpa [#allocation3], 1
    %s3177 = scalar_lea.sflag [#allocation3], 1
    %3178 = vsyncpa %s3177, 1

</llo_original>
